<compile_context>
chip_gen: v7x
topology: tpu7x:2x2x1
jax: 0.10.0
libtpu: 0.0.40
codegen_flags: <defaults>
</compile_context>

<pallas_src>
import math
import jax
import jax.numpy as jnp
from jax.experimental import pallas as pl
from jax.experimental.pallas import tpu as pltpu


def sentiment_lstm_kernel(
    x_ref,      # (T, Bb, E)   time-major embedded inputs (MXU dtype, e.g. bf16)
    wih0_ref,   # (E, 4H)      layer-0 input weights (transposed)
    whh0_ref,   # (H, 4H)      layer-0 recurrent weights (transposed)
    b0_ref,     # (1, 4H)      layer-0 combined bias (b_ih + b_hh), f32
    wih1_ref,   # (H, 4H)      layer-1 input weights (transposed)
    whh1_ref,   # (H, 4H)      layer-1 recurrent weights (transposed)
    b1_ref,     # (1, 4H)      layer-1 combined bias, f32
    fcw_ref,    # (1, H)       fc weight row, f32
    fcb_ref,    # (1, 1)       fc bias, f32
    h0_ref,     # (2, Bb, H)   initial hidden, f32
    c0_ref,     # (2, Bb, H)   initial cell, f32
    out_ref,    # (1, Bb)      sigmoid(fc(h_T of layer 1)), batch on lane axis
    hn_ref,     # (2, Bb, H)
    cn_ref,     # (2, Bb, H)
):
    T, Bb, E = x_ref.shape
    H = whh0_ref.shape[0]
    G = 4 * H
    mxu_dtype = whh0_ref.dtype

    # ---- Batched time-invariant input projection for layer 0 -----------------
    # One (T*Bb, E) @ (E, 4H) GEMM replaces T tiny matmuls on the critical
    # recurrence path; the bias broadcast is emitted exactly once here.
    x_all = x_ref[...].reshape(T * Bb, E)
    gx0 = jnp.dot(x_all, wih0_ref[...], preferred_element_type=jnp.float32)
    gx0 = gx0.reshape(T, Bb, G) + b0_ref[...]          # (T, Bb, 4H), f32
    # TODO(synk): for production-size T (100s) keep gx0 in bf16 or tile T via a
    # grid axis / BlockSpec on x so this intermediate stays bounded in v7x's
    # 64 MiB VMEM.

    whh0 = whh0_ref[...]
    wih1 = wih1_ref[...]
    whh1 = whh1_ref[...]
    b1b = jnp.broadcast_to(b1_ref[...], (Bb, G))       # hoisted out of the loop

    def apply_cell(gates, c):
        # One full-width (Bb, 4H) sigmoid (single full-vreg EUP pass) plus tanh
        # on only the g slice; gate order i, f, g, o.  6H*Bb transcendental
        # elements per cell vs 9H*Bb with the old tanh+sigmoid+select form.
        sig = jax.nn.sigmoid(gates)
        i_g = sig[:, 0 * H:1 * H]
        f_g = sig[:, 1 * H:2 * H]
        o_g = sig[:, 3 * H:4 * H]
        g_g = jnp.tanh(gates[:, 2 * H:3 * H])
        c_new = f_g * c + i_g * g_g
        h_new = o_g * jnp.tanh(c_new)
        return h_new, c_new

    h0 = h0_ref[0]
    c0 = c0_ref[0]
    h1 = h0_ref[1]
    c1 = c0_ref[1]

    # ---- Fused layer-0 / layer-1 recurrence ----------------------------------
    # T is small & static here, so the loop is unrolled.
    # TODO(synk): for T > ~16 switch to lax.fori_loop(..., unroll=2..4) with
    # (h0, c0, h1, c1) as the carry and gx0 indexed by the loop variable.
    for t in range(T):
        # Layer-1 recurrent contribution depends only on LAST step's h1, so it
        # is issued at the top of the step and hides under layer-0's
        # matmul -> EUP -> VPU chain instead of extending it.
        rec1 = jnp.dot(h1.astype(mxu_dtype), whh1,
                       preferred_element_type=jnp.float32) + b1b

        # layer 0: precomputed input projection + recurrent matmul
        g0 = gx0[t] + jnp.dot(h0.astype(mxu_dtype), whh0,
                              preferred_element_type=jnp.float32)
        h0, c0 = apply_cell(g0, c0)

        # layer 1: input matmul on the freshly computed h0 + precomputed rec1
        g1 = jnp.dot(h0.astype(mxu_dtype), wih1,
                     preferred_element_type=jnp.float32) + rec1
        h1, c1 = apply_cell(g1, c1)

    hn_ref[0] = h0
    cn_ref[0] = c0
    hn_ref[1] = h1
    cn_ref[1] = c1
    # TODO(synk): pack h/c state into one (Bb, 4H=128) lane-dense buffer for
    # full 128-lane VPU / unmasked-store utilization at H=32 (modest win,
    # skipped because layer-0/1 cell updates are inherently sequential).

    # TODO(synk): inter-layer LSTM dropout (p=0.5) and self.drop (p=0.3) are
    # identity in eval mode; training-mode dropout masks are not implemented.

    # ---- fc + sigmoid on the last timestep (== out.view(B,-1)[:, -1] since
    # output_size == 1).  N=1 MXU matmul replaced by VPU mul + lane reduction;
    # output is (1, Bb) with the batch on the lane axis (lane-dense store).
    logits = jnp.sum(h1 * fcw_ref[...], axis=-1)[None, :] + fcb_ref[...]
    out_ref[...] = jax.nn.sigmoid(logits)


def make_params(key, vocab_size, embed_dim, hidden_dim, output_size):
    ks = jax.random.split(key, 12)
    H = hidden_dim
    k = 1.0 / math.sqrt(H)

    def uni(kk, shape):
        return jax.random.uniform(kk, shape, jnp.float32, minval=-k, maxval=k)

    return {
        "embed": jax.random.normal(ks[0], (vocab_size, embed_dim), jnp.float32),
        # layer 0
        "w_ih0": uni(ks[1], (4 * H, embed_dim)),
        "w_hh0": uni(ks[2], (4 * H, H)),
        "b_ih0": uni(ks[3], (4 * H,)),
        "b_hh0": uni(ks[4], (4 * H,)),
        # layer 1
        "w_ih1": uni(ks[5], (4 * H, H)),
        "w_hh1": uni(ks[6], (4 * H, H)),
        "b_ih1": uni(ks[7], (4 * H,)),
        "b_hh1": uni(ks[8], (4 * H,)),
        # fc
        "fc_w": uni(ks[9], (output_size, H)),
        "fc_b": uni(ks[10], (output_size,)),
    }


def sentiment_lstm_forward(tokens, params, hidden, *, mxu_dtype=jnp.bfloat16):
    """tokens: (B, T) int32; hidden: (h0, c0) each (2, B, H). Returns (out[B], (hn, cn))."""
    B, T = tokens.shape
    H = params["w_hh0"].shape[1]
    E = params["w_ih0"].shape[1]
    assert params["fc_w"].shape[0] == 1, (
        "out.view(B,-1)[:, -1] only equals sigmoid(fc(h_T)) when output_size == 1")

    # Embedding gather stays in plain JAX (glue); MXU operands fed in bf16,
    # accumulation / gate math stays f32 inside the kernel.
    # TODO(synk): for very long sequences fuse the gather into the kernel via
    # scalar-prefetched token ids + per-row DMA to avoid an extra HBM round trip.
    emb = jnp.take(params["embed"], tokens, axis=0)                   # (B, T, E) f32
    x_tm = jnp.transpose(emb, (1, 0, 2)).astype(mxu_dtype)            # (T, B, E) time-major

    wih0 = params["w_ih0"].T.astype(mxu_dtype)                        # (E, 4H)
    whh0 = params["w_hh0"].T.astype(mxu_dtype)                        # (H, 4H)
    b0 = (params["b_ih0"] + params["b_hh0"]).reshape(1, 4 * H).astype(jnp.float32)
    wih1 = params["w_ih1"].T.astype(mxu_dtype)                        # (H, 4H)
    whh1 = params["w_hh1"].T.astype(mxu_dtype)                        # (H, 4H)
    b1 = (params["b_ih1"] + params["b_hh1"]).reshape(1, 4 * H).astype(jnp.float32)
    fcw = params["fc_w"].reshape(1, H).astype(jnp.float32)
    fcb = params["fc_b"].reshape(1, 1).astype(jnp.float32)

    h0, c0 = hidden
    h0 = h0.astype(jnp.float32)
    c0 = c0.astype(jnp.float32)

    # Single batch block.  v5e/v6e have one TensorCore per chip, so a >1 grid
    # with dimension_semantics=("parallel",) would just rerun the entire
    # T-step recurrence serially per block (~2x slower).  The recurrence is
    # latency-bound (small K matmul -> EUP -> VPU chain), so splitting the
    # batch across v7x's 2 TCs would mostly duplicate weights/prologue too.
    bb = B
    grid = (B // bb,)

    flops = 2 * B * T * (E * 4 * H + 3 * H * 4 * H) + 2 * B * H
    transcendentals = B * T * 2 * 6 * H + B
    operands = (x_tm, wih0, whh0, b0, wih1, whh1, b1, fcw, fcb, h0, c0)
    bytes_accessed = sum(int(a.size) * a.dtype.itemsize for a in operands)
    bytes_accessed += (B + 4 * B * H) * 4  # outputs: (1,B) + 2x (2,B,H) f32

    out, hn, cn = pl.pallas_call(
        sentiment_lstm_kernel,
        out_shape=(
            jax.ShapeDtypeStruct((1, B), jnp.float32),
            jax.ShapeDtypeStruct((2, B, H), jnp.float32),
            jax.ShapeDtypeStruct((2, B, H), jnp.float32),
        ),
        grid=grid,
        in_specs=[
            pl.BlockSpec((T, bb, E), lambda i: (0, i, 0)),        # x (time-major)
            pl.BlockSpec((E, 4 * H), lambda i: (0, 0)),           # wih0
            pl.BlockSpec((H, 4 * H), lambda i: (0, 0)),           # whh0
            pl.BlockSpec((1, 4 * H), lambda i: (0, 0)),           # b0
            pl.BlockSpec((H, 4 * H), lambda i: (0, 0)),           # wih1
            pl.BlockSpec((H, 4 * H), lambda i: (0, 0)),           # whh1
            pl.BlockSpec((1, 4 * H), lambda i: (0, 0)),           # b1
            pl.BlockSpec((1, H), lambda i: (0, 0)),               # fcw
            pl.BlockSpec((1, 1), lambda i: (0, 0)),               # fcb
            pl.BlockSpec((2, bb, H), lambda i: (0, i, 0)),        # h0
            pl.BlockSpec((2, bb, H), lambda i: (0, i, 0)),        # c0
        ],
        out_specs=(
            pl.BlockSpec((1, bb), lambda i: (0, i)),              # lane-dense logits
            pl.BlockSpec((2, bb, H), lambda i: (0, i, 0)),
            pl.BlockSpec((2, bb, H), lambda i: (0, i, 0)),
        ),
        compiler_params=pltpu.CompilerParams(
            dimension_semantics=("parallel",)),
        cost_estimate=pl.CostEstimate(
            flops=flops,
            transcendentals=transcendentals,
            bytes_accessed=bytes_accessed),
    )(*operands)

    return out[0], (hn, cn)


def sentiment_lstm_reference(tokens, params, hidden):
    """Pure-JAX f32 reference (eval mode: dropout == identity)."""
    H = params["w_hh0"].shape[1]
    emb = jnp.take(params["embed"], tokens, axis=0)
    h0, c0 = hidden

    def cell(x_t, h, c, wih, whh, b_ih, b_hh):
        g = x_t @ wih.T + h @ whh.T + b_ih + b_hh
        i = jax.nn.sigmoid(g[:, 0 * H:1 * H])
        f = jax.nn.sigmoid(g[:, 1 * H:2 * H])
        gg = jnp.tanh(g[:, 2 * H:3 * H])
        o = jax.nn.sigmoid(g[:, 3 * H:4 * H])
        c_new = f * c + i * gg
        return o * jnp.tanh(c_new), c_new

    h_a, c_a = h0[0], c0[0]
    h_b, c_b = h0[1], c0[1]
    for t in range(tokens.shape[1]):
        h_a, c_a = cell(emb[:, t, :], h_a, c_a,
                        params["w_ih0"], params["w_hh0"],
                        params["b_ih0"], params["b_hh0"])
        h_b, c_b = cell(h_a, h_b, c_b,
                        params["w_ih1"], params["w_hh1"],
                        params["b_ih1"], params["b_hh1"])
    logits = h_b @ params["fc_w"].T + params["fc_b"]
    out = jax.nn.sigmoid(logits)[:, 0]
    return out, (jnp.stack([h_a, h_b]), jnp.stack([c_a, c_b]))


if __name__ == "__main__":
    # Small, forward-consistent shapes.
    vocab_size = 128
    embed_dim = 32
    hidden_dim = 32
    output_size = 1
    n_layers = 2
    batch = 32
    seq = 8

    root = jax.random.PRNGKey(0)
    pkey, tkey = jax.random.split(root)

    params = make_params(pkey, vocab_size, embed_dim, hidden_dim, output_size)
    tokens = jax.random.randint(tkey, (batch, seq), 0, vocab_size, dtype=jnp.int32)

    # init_hidden: zeros, shape (n_layers, batch, hidden_dim)
    h0 = jnp.zeros((n_layers, batch, hidden_dim), jnp.float32)
    c0 = jnp.zeros((n_layers, batch, hidden_dim), jnp.float32)

    out, (hn, cn) = sentiment_lstm_forward(tokens, params, (h0, c0))
    jax.block_until_ready((out, hn, cn))

    assert out.shape == (batch,)
    assert hn.shape == (n_layers, batch, hidden_dim)
    assert cn.shape == (n_layers, batch, hidden_dim)

    # Numerical check against pure-JAX f32 reference (bf16 MXU operands ->
    # loose tolerance).
    ref_out, (ref_hn, ref_cn) = sentiment_lstm_reference(tokens, params, (h0, c0))
    assert float(jnp.max(jnp.abs(out - ref_out))) < 5e-2
    assert float(jnp.max(jnp.abs(hn - ref_hn))) < 5e-2
    assert float(jnp.max(jnp.abs(cn - ref_cn))) < 5e-2

    print("KERNEL_OK")
</pallas_src>

<mosaic_0001>
module attributes {stable_mosaic.version = 11 : i64} {
  func.func @sentiment_lstm_kernel(%arg0: i32, %arg1: memref<8x32x32xbf16, #tpu.memory_space<vmem>>, %arg2: memref<32x128xbf16, #tpu.memory_space<vmem>>, %arg3: memref<32x128xbf16, #tpu.memory_space<vmem>>, %arg4: memref<1x128xf32, #tpu.memory_space<vmem>>, %arg5: memref<32x128xbf16, #tpu.memory_space<vmem>>, %arg6: memref<32x128xbf16, #tpu.memory_space<vmem>>, %arg7: memref<1x128xf32, #tpu.memory_space<vmem>>, %arg8: memref<1x32xf32, #tpu.memory_space<vmem>>, %arg9: memref<1x1xf32, #tpu.memory_space<vmem>>, %arg10: memref<2x32x32xf32, #tpu.memory_space<vmem>>, %arg11: memref<2x32x32xf32, #tpu.memory_space<vmem>>, %arg12: memref<1x32xf32, #tpu.memory_space<vmem>>, %arg13: memref<2x32x32xf32, #tpu.memory_space<vmem>>, %arg14: memref<2x32x32xf32, #tpu.memory_space<vmem>>) attributes {dimension_semantics = [#tpu.dimension_semantics<parallel>], iteration_bounds = array<i64: 1>, scalar_prefetch = 0 : i64, scratch_operands = 0 : i64, tpu.core_type = #tpu.core_type<tc>, window_params = [{transform_indices = @transform_0, window_bounds = array<i64: 8, 32, 32>}, {pipeline_mode = #tpu.pipeline_mode<synchronous>, transform_indices = @transform_1, window_bounds = array<i64: 32, 128>}, {pipeline_mode = #tpu.pipeline_mode<synchronous>, transform_indices = @transform_2, window_bounds = array<i64: 32, 128>}, {pipeline_mode = #tpu.pipeline_mode<synchronous>, transform_indices = @transform_3, window_bounds = array<i64: 1, 128>}, {pipeline_mode = #tpu.pipeline_mode<synchronous>, transform_indices = @transform_4, window_bounds = array<i64: 32, 128>}, {pipeline_mode = #tpu.pipeline_mode<synchronous>, transform_indices = @transform_5, window_bounds = array<i64: 32, 128>}, {pipeline_mode = #tpu.pipeline_mode<synchronous>, transform_indices = @transform_6, window_bounds = array<i64: 1, 128>}, {pipeline_mode = #tpu.pipeline_mode<synchronous>, transform_indices = @transform_7, window_bounds = array<i64: 1, 32>}, {pipeline_mode = #tpu.pipeline_mode<synchronous>, transform_indices = @transform_8, window_bounds = array<i64: 1, 1>}, {transform_indices = @transform_9, window_bounds = array<i64: 2, 32, 32>}, {transform_indices = @transform_10, window_bounds = array<i64: 2, 32, 32>}, {transform_indices = @transform_11, window_bounds = array<i64: 1, 32>}, {transform_indices = @transform_12, window_bounds = array<i64: 2, 32, 32>}, {transform_indices = @transform_13, window_bounds = array<i64: 2, 32, 32>}]} {
    %c0 = arith.constant 0 : index
    %c0_0 = arith.constant 0 : index
    %c0_1 = arith.constant 0 : index
    %0 = vector.load %arg1[%c0, %c0_0, %c0_1] : memref<8x32x32xbf16, #tpu.memory_space<vmem>>, vector<8x32x32xbf16>
    %1 = vector.shape_cast %0 : vector<8x32x32xbf16> to vector<256x32xbf16>
    %c0_2 = arith.constant 0 : index
    %c0_3 = arith.constant 0 : index
    %2 = vector.load %arg2[%c0_2, %c0_3] : memref<32x128xbf16, #tpu.memory_space<vmem>>, vector<32x128xbf16>
    %cst = arith.constant dense<0.000000e+00> : vector<256x128xf32>
    %3 = tpu.matmul %1, %2, %cst {dimension_numbers = #tpu.dot_dimension_numbers<[1], [0], [0], [1], [0, 0, 1, 1], [], []>} : vector<256x32xbf16>, vector<32x128xbf16>, vector<256x128xf32> -> vector<256x128xf32>
    %4 = vector.shape_cast %3 : vector<256x128xf32> to vector<8x32x128xf32>
    %c0_4 = arith.constant 0 : index
    %c0_5 = arith.constant 0 : index
    %5 = vector.load %arg4[%c0_4, %c0_5] : memref<1x128xf32, #tpu.memory_space<vmem>>, vector<1x128xf32>
    %6 = vector.shape_cast %5 : vector<1x128xf32> to vector<1x1x128xf32>
    %7 = vector.broadcast %6 : vector<1x1x128xf32> to vector<8x32x128xf32>
    %8 = arith.addf %4, %7 : vector<8x32x128xf32>
    %c0_6 = arith.constant 0 : index
    %c0_7 = arith.constant 0 : index
    %9 = vector.load %arg3[%c0_6, %c0_7] : memref<32x128xbf16, #tpu.memory_space<vmem>>, vector<32x128xbf16>
    %c0_8 = arith.constant 0 : index
    %c0_9 = arith.constant 0 : index
    %10 = vector.load %arg5[%c0_8, %c0_9] : memref<32x128xbf16, #tpu.memory_space<vmem>>, vector<32x128xbf16>
    %c0_10 = arith.constant 0 : index
    %c0_11 = arith.constant 0 : index
    %11 = vector.load %arg6[%c0_10, %c0_11] : memref<32x128xbf16, #tpu.memory_space<vmem>>, vector<32x128xbf16>
    %c0_12 = arith.constant 0 : index
    %c0_13 = arith.constant 0 : index
    %12 = vector.load %arg7[%c0_12, %c0_13] : memref<1x128xf32, #tpu.memory_space<vmem>>, vector<1x128xf32>
    %13 = vector.shape_cast %12 : vector<1x128xf32> to vector<1x128xf32>
    %14 = vector.broadcast %13 : vector<1x128xf32> to vector<32x128xf32>
    %c0_14 = arith.constant 0 : index
    %c0_15 = arith.constant 0 : index
    %c0_16 = arith.constant 0 : index
    %15 = vector.load %arg10[%c0_14, %c0_15, %c0_16] : memref<2x32x32xf32, #tpu.memory_space<vmem>>, vector<1x32x32xf32>
    %16 = vector.shape_cast %15 : vector<1x32x32xf32> to vector<32x32xf32>
    %c0_17 = arith.constant 0 : index
    %c0_18 = arith.constant 0 : index
    %c0_19 = arith.constant 0 : index
    %17 = vector.load %arg11[%c0_17, %c0_18, %c0_19] : memref<2x32x32xf32, #tpu.memory_space<vmem>>, vector<1x32x32xf32>
    %18 = vector.shape_cast %17 : vector<1x32x32xf32> to vector<32x32xf32>
    %c1 = arith.constant 1 : index
    %c0_20 = arith.constant 0 : index
    %c0_21 = arith.constant 0 : index
    %19 = vector.load %arg10[%c1, %c0_20, %c0_21] : memref<2x32x32xf32, #tpu.memory_space<vmem>>, vector<1x32x32xf32>
    %20 = vector.shape_cast %19 : vector<1x32x32xf32> to vector<32x32xf32>
    %c1_22 = arith.constant 1 : index
    %c0_23 = arith.constant 0 : index
    %c0_24 = arith.constant 0 : index
    %21 = vector.load %arg11[%c1_22, %c0_23, %c0_24] : memref<2x32x32xf32, #tpu.memory_space<vmem>>, vector<1x32x32xf32>
    %22 = vector.shape_cast %21 : vector<1x32x32xf32> to vector<32x32xf32>
    %23 = arith.truncf %20 : vector<32x32xf32> to vector<32x32xbf16>
    %cst_25 = arith.constant dense<0.000000e+00> : vector<32x128xf32>
    %24 = tpu.matmul %23, %11, %cst_25 {dimension_numbers = #tpu.dot_dimension_numbers<[1], [0], [0], [1], [0, 0, 1, 1], [], []>} : vector<32x32xbf16>, vector<32x128xbf16>, vector<32x128xf32> -> vector<32x128xf32>
    %25 = arith.addf %24, %14 : vector<32x128xf32>
    %26 = vector.extract_strided_slice %8 {offsets = [0, 0, 0], sizes = [1, 32, 128], strides = [1, 1, 1]} : vector<8x32x128xf32> to vector<1x32x128xf32>
    %27 = vector.shape_cast %26 : vector<1x32x128xf32> to vector<32x128xf32>
    %28 = arith.truncf %16 : vector<32x32xf32> to vector<32x32xbf16>
    %cst_26 = arith.constant dense<0.000000e+00> : vector<32x128xf32>
    %29 = tpu.matmul %28, %9, %cst_26 {dimension_numbers = #tpu.dot_dimension_numbers<[1], [0], [0], [1], [0, 0, 1, 1], [], []>} : vector<32x32xbf16>, vector<32x128xbf16>, vector<32x128xf32> -> vector<32x128xf32>
    %30 = arith.addf %27, %29 : vector<32x128xf32>
    %31 = arith.negf %30 : vector<32x128xf32>
    %32 = math.exp %31 : vector<32x128xf32>
    %cst_27 = arith.constant 1.000000e+00 : f32
    %33 = vector.broadcast %cst_27 : f32 to vector<32x128xf32>
    %34 = arith.addf %33, %32 : vector<32x128xf32>
    %35 = arith.divf %33, %34 : vector<32x128xf32>
    %36 = vector.extract_strided_slice %35 {offsets = [0, 0], sizes = [32, 32], strides = [1, 1]} : vector<32x128xf32> to vector<32x32xf32>
    %37 = vector.extract_strided_slice %35 {offsets = [0, 32], sizes = [32, 32], strides = [1, 1]} : vector<32x128xf32> to vector<32x32xf32>
    %38 = vector.extract_strided_slice %35 {offsets = [0, 96], sizes = [32, 32], strides = [1, 1]} : vector<32x128xf32> to vector<32x32xf32>
    %39 = vector.extract_strided_slice %30 {offsets = [0, 64], sizes = [32, 32], strides = [1, 1]} : vector<32x128xf32> to vector<32x32xf32>
    %40 = math.tanh %39 : vector<32x32xf32>
    %41 = arith.mulf %37, %18 : vector<32x32xf32>
    %42 = arith.mulf %36, %40 : vector<32x32xf32>
    %43 = arith.addf %41, %42 : vector<32x32xf32>
    %44 = math.tanh %43 : vector<32x32xf32>
    %45 = arith.mulf %38, %44 : vector<32x32xf32>
    %46 = arith.truncf %45 : vector<32x32xf32> to vector<32x32xbf16>
    %cst_28 = arith.constant dense<0.000000e+00> : vector<32x128xf32>
    %47 = tpu.matmul %46, %10, %cst_28 {dimension_numbers = #tpu.dot_dimension_numbers<[1], [0], [0], [1], [0, 0, 1, 1], [], []>} : vector<32x32xbf16>, vector<32x128xbf16>, vector<32x128xf32> -> vector<32x128xf32>
    %48 = arith.addf %47, %25 : vector<32x128xf32>
    %49 = arith.negf %48 : vector<32x128xf32>
    %50 = math.exp %49 : vector<32x128xf32>
    %cst_29 = arith.constant 1.000000e+00 : f32
    %51 = vector.broadcast %cst_29 : f32 to vector<32x128xf32>
    %52 = arith.addf %51, %50 : vector<32x128xf32>
    %53 = arith.divf %51, %52 : vector<32x128xf32>
    %54 = vector.extract_strided_slice %53 {offsets = [0, 0], sizes = [32, 32], strides = [1, 1]} : vector<32x128xf32> to vector<32x32xf32>
    %55 = vector.extract_strided_slice %53 {offsets = [0, 32], sizes = [32, 32], strides = [1, 1]} : vector<32x128xf32> to vector<32x32xf32>
    %56 = vector.extract_strided_slice %53 {offsets = [0, 96], sizes = [32, 32], strides = [1, 1]} : vector<32x128xf32> to vector<32x32xf32>
    %57 = vector.extract_strided_slice %48 {offsets = [0, 64], sizes = [32, 32], strides = [1, 1]} : vector<32x128xf32> to vector<32x32xf32>
    %58 = math.tanh %57 : vector<32x32xf32>
    %59 = arith.mulf %55, %22 : vector<32x32xf32>
    %60 = arith.mulf %54, %58 : vector<32x32xf32>
    %61 = arith.addf %59, %60 : vector<32x32xf32>
    %62 = math.tanh %61 : vector<32x32xf32>
    %63 = arith.mulf %56, %62 : vector<32x32xf32>
    %64 = arith.truncf %63 : vector<32x32xf32> to vector<32x32xbf16>
    %cst_30 = arith.constant dense<0.000000e+00> : vector<32x128xf32>
    %65 = tpu.matmul %64, %11, %cst_30 {dimension_numbers = #tpu.dot_dimension_numbers<[1], [0], [0], [1], [0, 0, 1, 1], [], []>} : vector<32x32xbf16>, vector<32x128xbf16>, vector<32x128xf32> -> vector<32x128xf32>
    %66 = arith.addf %65, %14 : vector<32x128xf32>
    %67 = vector.extract_strided_slice %8 {offsets = [1, 0, 0], sizes = [1, 32, 128], strides = [1, 1, 1]} : vector<8x32x128xf32> to vector<1x32x128xf32>
    %68 = vector.shape_cast %67 : vector<1x32x128xf32> to vector<32x128xf32>
    %69 = arith.truncf %45 : vector<32x32xf32> to vector<32x32xbf16>
    %cst_31 = arith.constant dense<0.000000e+00> : vector<32x128xf32>
    %70 = tpu.matmul %69, %9, %cst_31 {dimension_numbers = #tpu.dot_dimension_numbers<[1], [0], [0], [1], [0, 0, 1, 1], [], []>} : vector<32x32xbf16>, vector<32x128xbf16>, vector<32x128xf32> -> vector<32x128xf32>
    %71 = arith.addf %68, %70 : vector<32x128xf32>
    %72 = arith.negf %71 : vector<32x128xf32>
    %73 = math.exp %72 : vector<32x128xf32>
    %cst_32 = arith.constant 1.000000e+00 : f32
    %74 = vector.broadcast %cst_32 : f32 to vector<32x128xf32>
    %75 = arith.addf %74, %73 : vector<32x128xf32>
    %76 = arith.divf %74, %75 : vector<32x128xf32>
    %77 = vector.extract_strided_slice %76 {offsets = [0, 0], sizes = [32, 32], strides = [1, 1]} : vector<32x128xf32> to vector<32x32xf32>
    %78 = vector.extract_strided_slice %76 {offsets = [0, 32], sizes = [32, 32], strides = [1, 1]} : vector<32x128xf32> to vector<32x32xf32>
    %79 = vector.extract_strided_slice %76 {offsets = [0, 96], sizes = [32, 32], strides = [1, 1]} : vector<32x128xf32> to vector<32x32xf32>
    %80 = vector.extract_strided_slice %71 {offsets = [0, 64], sizes = [32, 32], strides = [1, 1]} : vector<32x128xf32> to vector<32x32xf32>
    %81 = math.tanh %80 : vector<32x32xf32>
    %82 = arith.mulf %78, %43 : vector<32x32xf32>
    %83 = arith.mulf %77, %81 : vector<32x32xf32>
    %84 = arith.addf %82, %83 : vector<32x32xf32>
    %85 = math.tanh %84 : vector<32x32xf32>
    %86 = arith.mulf %79, %85 : vector<32x32xf32>
    %87 = arith.truncf %86 : vector<32x32xf32> to vector<32x32xbf16>
    %cst_33 = arith.constant dense<0.000000e+00> : vector<32x128xf32>
    %88 = tpu.matmul %87, %10, %cst_33 {dimension_numbers = #tpu.dot_dimension_numbers<[1], [0], [0], [1], [0, 0, 1, 1], [], []>} : vector<32x32xbf16>, vector<32x128xbf16>, vector<32x128xf32> -> vector<32x128xf32>
    %89 = arith.addf %88, %66 : vector<32x128xf32>
    %90 = arith.negf %89 : vector<32x128xf32>
    %91 = math.exp %90 : vector<32x128xf32>
    %cst_34 = arith.constant 1.000000e+00 : f32
    %92 = vector.broadcast %cst_34 : f32 to vector<32x128xf32>
    %93 = arith.addf %92, %91 : vector<32x128xf32>
    %94 = arith.divf %92, %93 : vector<32x128xf32>
    %95 = vector.extract_strided_slice %94 {offsets = [0, 0], sizes = [32, 32], strides = [1, 1]} : vector<32x128xf32> to vector<32x32xf32>
    %96 = vector.extract_strided_slice %94 {offsets = [0, 32], sizes = [32, 32], strides = [1, 1]} : vector<32x128xf32> to vector<32x32xf32>
    %97 = vector.extract_strided_slice %94 {offsets = [0, 96], sizes = [32, 32], strides = [1, 1]} : vector<32x128xf32> to vector<32x32xf32>
    %98 = vector.extract_strided_slice %89 {offsets = [0, 64], sizes = [32, 32], strides = [1, 1]} : vector<32x128xf32> to vector<32x32xf32>
    %99 = math.tanh %98 : vector<32x32xf32>
    %100 = arith.mulf %96, %61 : vector<32x32xf32>
    %101 = arith.mulf %95, %99 : vector<32x32xf32>
    %102 = arith.addf %100, %101 : vector<32x32xf32>
    %103 = math.tanh %102 : vector<32x32xf32>
    %104 = arith.mulf %97, %103 : vector<32x32xf32>
    %105 = arith.truncf %104 : vector<32x32xf32> to vector<32x32xbf16>
    %cst_35 = arith.constant dense<0.000000e+00> : vector<32x128xf32>
    %106 = tpu.matmul %105, %11, %cst_35 {dimension_numbers = #tpu.dot_dimension_numbers<[1], [0], [0], [1], [0, 0, 1, 1], [], []>} : vector<32x32xbf16>, vector<32x128xbf16>, vector<32x128xf32> -> vector<32x128xf32>
    %107 = arith.addf %106, %14 : vector<32x128xf32>
    %108 = vector.extract_strided_slice %8 {offsets = [2, 0, 0], sizes = [1, 32, 128], strides = [1, 1, 1]} : vector<8x32x128xf32> to vector<1x32x128xf32>
    %109 = vector.shape_cast %108 : vector<1x32x128xf32> to vector<32x128xf32>
    %110 = arith.truncf %86 : vector<32x32xf32> to vector<32x32xbf16>
    %cst_36 = arith.constant dense<0.000000e+00> : vector<32x128xf32>
    %111 = tpu.matmul %110, %9, %cst_36 {dimension_numbers = #tpu.dot_dimension_numbers<[1], [0], [0], [1], [0, 0, 1, 1], [], []>} : vector<32x32xbf16>, vector<32x128xbf16>, vector<32x128xf32> -> vector<32x128xf32>
    %112 = arith.addf %109, %111 : vector<32x128xf32>
    %113 = arith.negf %112 : vector<32x128xf32>
    %114 = math.exp %113 : vector<32x128xf32>
    %cst_37 = arith.constant 1.000000e+00 : f32
    %115 = vector.broadcast %cst_37 : f32 to vector<32x128xf32>
    %116 = arith.addf %115, %114 : vector<32x128xf32>
    %117 = arith.divf %115, %116 : vector<32x128xf32>
    %118 = vector.extract_strided_slice %117 {offsets = [0, 0], sizes = [32, 32], strides = [1, 1]} : vector<32x128xf32> to vector<32x32xf32>
    %119 = vector.extract_strided_slice %117 {offsets = [0, 32], sizes = [32, 32], strides = [1, 1]} : vector<32x128xf32> to vector<32x32xf32>
    %120 = vector.extract_strided_slice %117 {offsets = [0, 96], sizes = [32, 32], strides = [1, 1]} : vector<32x128xf32> to vector<32x32xf32>
    %121 = vector.extract_strided_slice %112 {offsets = [0, 64], sizes = [32, 32], strides = [1, 1]} : vector<32x128xf32> to vector<32x32xf32>
    %122 = math.tanh %121 : vector<32x32xf32>
    %123 = arith.mulf %119, %84 : vector<32x32xf32>
    %124 = arith.mulf %118, %122 : vector<32x32xf32>
    %125 = arith.addf %123, %124 : vector<32x32xf32>
    %126 = math.tanh %125 : vector<32x32xf32>
    %127 = arith.mulf %120, %126 : vector<32x32xf32>
    %128 = arith.truncf %127 : vector<32x32xf32> to vector<32x32xbf16>
    %cst_38 = arith.constant dense<0.000000e+00> : vector<32x128xf32>
    %129 = tpu.matmul %128, %10, %cst_38 {dimension_numbers = #tpu.dot_dimension_numbers<[1], [0], [0], [1], [0, 0, 1, 1], [], []>} : vector<32x32xbf16>, vector<32x128xbf16>, vector<32x128xf32> -> vector<32x128xf32>
    %130 = arith.addf %129, %107 : vector<32x128xf32>
    %131 = arith.negf %130 : vector<32x128xf32>
    %132 = math.exp %131 : vector<32x128xf32>
    %cst_39 = arith.constant 1.000000e+00 : f32
    %133 = vector.broadcast %cst_39 : f32 to vector<32x128xf32>
    %134 = arith.addf %133, %132 : vector<32x128xf32>
    %135 = arith.divf %133, %134 : vector<32x128xf32>
    %136 = vector.extract_strided_slice %135 {offsets = [0, 0], sizes = [32, 32], strides = [1, 1]} : vector<32x128xf32> to vector<32x32xf32>
    %137 = vector.extract_strided_slice %135 {offsets = [0, 32], sizes = [32, 32], strides = [1, 1]} : vector<32x128xf32> to vector<32x32xf32>
    %138 = vector.extract_strided_slice %135 {offsets = [0, 96], sizes = [32, 32], strides = [1, 1]} : vector<32x128xf32> to vector<32x32xf32>
    %139 = vector.extract_strided_slice %130 {offsets = [0, 64], sizes = [32, 32], strides = [1, 1]} : vector<32x128xf32> to vector<32x32xf32>
    %140 = math.tanh %139 : vector<32x32xf32>
    %141 = arith.mulf %137, %102 : vector<32x32xf32>
    %142 = arith.mulf %136, %140 : vector<32x32xf32>
    %143 = arith.addf %141, %142 : vector<32x32xf32>
    %144 = math.tanh %143 : vector<32x32xf32>
    %145 = arith.mulf %138, %144 : vector<32x32xf32>
    %146 = arith.truncf %145 : vector<32x32xf32> to vector<32x32xbf16>
    %cst_40 = arith.constant dense<0.000000e+00> : vector<32x128xf32>
    %147 = tpu.matmul %146, %11, %cst_40 {dimension_numbers = #tpu.dot_dimension_numbers<[1], [0], [0], [1], [0, 0, 1, 1], [], []>} : vector<32x32xbf16>, vector<32x128xbf16>, vector<32x128xf32> -> vector<32x128xf32>
    %148 = arith.addf %147, %14 : vector<32x128xf32>
    %149 = vector.extract_strided_slice %8 {offsets = [3, 0, 0], sizes = [1, 32, 128], strides = [1, 1, 1]} : vector<8x32x128xf32> to vector<1x32x128xf32>
    %150 = vector.shape_cast %149 : vector<1x32x128xf32> to vector<32x128xf32>
    %151 = arith.truncf %127 : vector<32x32xf32> to vector<32x32xbf16>
    %cst_41 = arith.constant dense<0.000000e+00> : vector<32x128xf32>
    %152 = tpu.matmul %151, %9, %cst_41 {dimension_numbers = #tpu.dot_dimension_numbers<[1], [0], [0], [1], [0, 0, 1, 1], [], []>} : vector<32x32xbf16>, vector<32x128xbf16>, vector<32x128xf32> -> vector<32x128xf32>
    %153 = arith.addf %150, %152 : vector<32x128xf32>
    %154 = arith.negf %153 : vector<32x128xf32>
    %155 = math.exp %154 : vector<32x128xf32>
    %cst_42 = arith.constant 1.000000e+00 : f32
    %156 = vector.broadcast %cst_42 : f32 to vector<32x128xf32>
    %157 = arith.addf %156, %155 : vector<32x128xf32>
    %158 = arith.divf %156, %157 : vector<32x128xf32>
    %159 = vector.extract_strided_slice %158 {offsets = [0, 0], sizes = [32, 32], strides = [1, 1]} : vector<32x128xf32> to vector<32x32xf32>
    %160 = vector.extract_strided_slice %158 {offsets = [0, 32], sizes = [32, 32], strides = [1, 1]} : vector<32x128xf32> to vector<32x32xf32>
    %161 = vector.extract_strided_slice %158 {offsets = [0, 96], sizes = [32, 32], strides = [1, 1]} : vector<32x128xf32> to vector<32x32xf32>
    %162 = vector.extract_strided_slice %153 {offsets = [0, 64], sizes = [32, 32], strides = [1, 1]} : vector<32x128xf32> to vector<32x32xf32>
    %163 = math.tanh %162 : vector<32x32xf32>
    %164 = arith.mulf %160, %125 : vector<32x32xf32>
    %165 = arith.mulf %159, %163 : vector<32x32xf32>
    %166 = arith.addf %164, %165 : vector<32x32xf32>
    %167 = math.tanh %166 : vector<32x32xf32>
    %168 = arith.mulf %161, %167 : vector<32x32xf32>
    %169 = arith.truncf %168 : vector<32x32xf32> to vector<32x32xbf16>
    %cst_43 = arith.constant dense<0.000000e+00> : vector<32x128xf32>
    %170 = tpu.matmul %169, %10, %cst_43 {dimension_numbers = #tpu.dot_dimension_numbers<[1], [0], [0], [1], [0, 0, 1, 1], [], []>} : vector<32x32xbf16>, vector<32x128xbf16>, vector<32x128xf32> -> vector<32x128xf32>
    %171 = arith.addf %170, %148 : vector<32x128xf32>
    %172 = arith.negf %171 : vector<32x128xf32>
    %173 = math.exp %172 : vector<32x128xf32>
    %cst_44 = arith.constant 1.000000e+00 : f32
    %174 = vector.broadcast %cst_44 : f32 to vector<32x128xf32>
    %175 = arith.addf %174, %173 : vector<32x128xf32>
    %176 = arith.divf %174, %175 : vector<32x128xf32>
    %177 = vector.extract_strided_slice %176 {offsets = [0, 0], sizes = [32, 32], strides = [1, 1]} : vector<32x128xf32> to vector<32x32xf32>
    %178 = vector.extract_strided_slice %176 {offsets = [0, 32], sizes = [32, 32], strides = [1, 1]} : vector<32x128xf32> to vector<32x32xf32>
    %179 = vector.extract_strided_slice %176 {offsets = [0, 96], sizes = [32, 32], strides = [1, 1]} : vector<32x128xf32> to vector<32x32xf32>
    %180 = vector.extract_strided_slice %171 {offsets = [0, 64], sizes = [32, 32], strides = [1, 1]} : vector<32x128xf32> to vector<32x32xf32>
    %181 = math.tanh %180 : vector<32x32xf32>
    %182 = arith.mulf %178, %143 : vector<32x32xf32>
    %183 = arith.mulf %177, %181 : vector<32x32xf32>
    %184 = arith.addf %182, %183 : vector<32x32xf32>
    %185 = math.tanh %184 : vector<32x32xf32>
    %186 = arith.mulf %179, %185 : vector<32x32xf32>
    %187 = arith.truncf %186 : vector<32x32xf32> to vector<32x32xbf16>
    %cst_45 = arith.constant dense<0.000000e+00> : vector<32x128xf32>
    %188 = tpu.matmul %187, %11, %cst_45 {dimension_numbers = #tpu.dot_dimension_numbers<[1], [0], [0], [1], [0, 0, 1, 1], [], []>} : vector<32x32xbf16>, vector<32x128xbf16>, vector<32x128xf32> -> vector<32x128xf32>
    %189 = arith.addf %188, %14 : vector<32x128xf32>
    %190 = vector.extract_strided_slice %8 {offsets = [4, 0, 0], sizes = [1, 32, 128], strides = [1, 1, 1]} : vector<8x32x128xf32> to vector<1x32x128xf32>
    %191 = vector.shape_cast %190 : vector<1x32x128xf32> to vector<32x128xf32>
    %192 = arith.truncf %168 : vector<32x32xf32> to vector<32x32xbf16>
    %cst_46 = arith.constant dense<0.000000e+00> : vector<32x128xf32>
    %193 = tpu.matmul %192, %9, %cst_46 {dimension_numbers = #tpu.dot_dimension_numbers<[1], [0], [0], [1], [0, 0, 1, 1], [], []>} : vector<32x32xbf16>, vector<32x128xbf16>, vector<32x128xf32> -> vector<32x128xf32>
    %194 = arith.addf %191, %193 : vector<32x128xf32>
    %195 = arith.negf %194 : vector<32x128xf32>
    %196 = math.exp %195 : vector<32x128xf32>
    %cst_47 = arith.constant 1.000000e+00 : f32
    %197 = vector.broadcast %cst_47 : f32 to vector<32x128xf32>
    %198 = arith.addf %197, %196 : vector<32x128xf32>
    %199 = arith.divf %197, %198 : vector<32x128xf32>
    %200 = vector.extract_strided_slice %199 {offsets = [0, 0], sizes = [32, 32], strides = [1, 1]} : vector<32x128xf32> to vector<32x32xf32>
    %201 = vector.extract_strided_slice %199 {offsets = [0, 32], sizes = [32, 32], strides = [1, 1]} : vector<32x128xf32> to vector<32x32xf32>
    %202 = vector.extract_strided_slice %199 {offsets = [0, 96], sizes = [32, 32], strides = [1, 1]} : vector<32x128xf32> to vector<32x32xf32>
    %203 = vector.extract_strided_slice %194 {offsets = [0, 64], sizes = [32, 32], strides = [1, 1]} : vector<32x128xf32> to vector<32x32xf32>
    %204 = math.tanh %203 : vector<32x32xf32>
    %205 = arith.mulf %201, %166 : vector<32x32xf32>
    %206 = arith.mulf %200, %204 : vector<32x32xf32>
    %207 = arith.addf %205, %206 : vector<32x32xf32>
    %208 = math.tanh %207 : vector<32x32xf32>
    %209 = arith.mulf %202, %208 : vector<32x32xf32>
    %210 = arith.truncf %209 : vector<32x32xf32> to vector<32x32xbf16>
    %cst_48 = arith.constant dense<0.000000e+00> : vector<32x128xf32>
    %211 = tpu.matmul %210, %10, %cst_48 {dimension_numbers = #tpu.dot_dimension_numbers<[1], [0], [0], [1], [0, 0, 1, 1], [], []>} : vector<32x32xbf16>, vector<32x128xbf16>, vector<32x128xf32> -> vector<32x128xf32>
    %212 = arith.addf %211, %189 : vector<32x128xf32>
    %213 = arith.negf %212 : vector<32x128xf32>
    %214 = math.exp %213 : vector<32x128xf32>
    %cst_49 = arith.constant 1.000000e+00 : f32
    %215 = vector.broadcast %cst_49 : f32 to vector<32x128xf32>
    %216 = arith.addf %215, %214 : vector<32x128xf32>
    %217 = arith.divf %215, %216 : vector<32x128xf32>
    %218 = vector.extract_strided_slice %217 {offsets = [0, 0], sizes = [32, 32], strides = [1, 1]} : vector<32x128xf32> to vector<32x32xf32>
    %219 = vector.extract_strided_slice %217 {offsets = [0, 32], sizes = [32, 32], strides = [1, 1]} : vector<32x128xf32> to vector<32x32xf32>
    %220 = vector.extract_strided_slice %217 {offsets = [0, 96], sizes = [32, 32], strides = [1, 1]} : vector<32x128xf32> to vector<32x32xf32>
    %221 = vector.extract_strided_slice %212 {offsets = [0, 64], sizes = [32, 32], strides = [1, 1]} : vector<32x128xf32> to vector<32x32xf32>
    %222 = math.tanh %221 : vector<32x32xf32>
    %223 = arith.mulf %219, %184 : vector<32x32xf32>
    %224 = arith.mulf %218, %222 : vector<32x32xf32>
    %225 = arith.addf %223, %224 : vector<32x32xf32>
    %226 = math.tanh %225 : vector<32x32xf32>
    %227 = arith.mulf %220, %226 : vector<32x32xf32>
    %228 = arith.truncf %227 : vector<32x32xf32> to vector<32x32xbf16>
    %cst_50 = arith.constant dense<0.000000e+00> : vector<32x128xf32>
    %229 = tpu.matmul %228, %11, %cst_50 {dimension_numbers = #tpu.dot_dimension_numbers<[1], [0], [0], [1], [0, 0, 1, 1], [], []>} : vector<32x32xbf16>, vector<32x128xbf16>, vector<32x128xf32> -> vector<32x128xf32>
    %230 = arith.addf %229, %14 : vector<32x128xf32>
    %231 = vector.extract_strided_slice %8 {offsets = [5, 0, 0], sizes = [1, 32, 128], strides = [1, 1, 1]} : vector<8x32x128xf32> to vector<1x32x128xf32>
    %232 = vector.shape_cast %231 : vector<1x32x128xf32> to vector<32x128xf32>
    %233 = arith.truncf %209 : vector<32x32xf32> to vector<32x32xbf16>
    %cst_51 = arith.constant dense<0.000000e+00> : vector<32x128xf32>
    %234 = tpu.matmul %233, %9, %cst_51 {dimension_numbers = #tpu.dot_dimension_numbers<[1], [0], [0], [1], [0, 0, 1, 1], [], []>} : vector<32x32xbf16>, vector<32x128xbf16>, vector<32x128xf32> -> vector<32x128xf32>
    %235 = arith.addf %232, %234 : vector<32x128xf32>
    %236 = arith.negf %235 : vector<32x128xf32>
    %237 = math.exp %236 : vector<32x128xf32>
    %cst_52 = arith.constant 1.000000e+00 : f32
    %238 = vector.broadcast %cst_52 : f32 to vector<32x128xf32>
    %239 = arith.addf %238, %237 : vector<32x128xf32>
    %240 = arith.divf %238, %239 : vector<32x128xf32>
    %241 = vector.extract_strided_slice %240 {offsets = [0, 0], sizes = [32, 32], strides = [1, 1]} : vector<32x128xf32> to vector<32x32xf32>
    %242 = vector.extract_strided_slice %240 {offsets = [0, 32], sizes = [32, 32], strides = [1, 1]} : vector<32x128xf32> to vector<32x32xf32>
    %243 = vector.extract_strided_slice %240 {offsets = [0, 96], sizes = [32, 32], strides = [1, 1]} : vector<32x128xf32> to vector<32x32xf32>
    %244 = vector.extract_strided_slice %235 {offsets = [0, 64], sizes = [32, 32], strides = [1, 1]} : vector<32x128xf32> to vector<32x32xf32>
    %245 = math.tanh %244 : vector<32x32xf32>
    %246 = arith.mulf %242, %207 : vector<32x32xf32>
    %247 = arith.mulf %241, %245 : vector<32x32xf32>
    %248 = arith.addf %246, %247 : vector<32x32xf32>
    %249 = math.tanh %248 : vector<32x32xf32>
    %250 = arith.mulf %243, %249 : vector<32x32xf32>
    %251 = arith.truncf %250 : vector<32x32xf32> to vector<32x32xbf16>
    %cst_53 = arith.constant dense<0.000000e+00> : vector<32x128xf32>
    %252 = tpu.matmul %251, %10, %cst_53 {dimension_numbers = #tpu.dot_dimension_numbers<[1], [0], [0], [1], [0, 0, 1, 1], [], []>} : vector<32x32xbf16>, vector<32x128xbf16>, vector<32x128xf32> -> vector<32x128xf32>
    %253 = arith.addf %252, %230 : vector<32x128xf32>
    %254 = arith.negf %253 : vector<32x128xf32>
    %255 = math.exp %254 : vector<32x128xf32>
    %cst_54 = arith.constant 1.000000e+00 : f32
    %256 = vector.broadcast %cst_54 : f32 to vector<32x128xf32>
    %257 = arith.addf %256, %255 : vector<32x128xf32>
    %258 = arith.divf %256, %257 : vector<32x128xf32>
    %259 = vector.extract_strided_slice %258 {offsets = [0, 0], sizes = [32, 32], strides = [1, 1]} : vector<32x128xf32> to vector<32x32xf32>
    %260 = vector.extract_strided_slice %258 {offsets = [0, 32], sizes = [32, 32], strides = [1, 1]} : vector<32x128xf32> to vector<32x32xf32>
    %261 = vector.extract_strided_slice %258 {offsets = [0, 96], sizes = [32, 32], strides = [1, 1]} : vector<32x128xf32> to vector<32x32xf32>
    %262 = vector.extract_strided_slice %253 {offsets = [0, 64], sizes = [32, 32], strides = [1, 1]} : vector<32x128xf32> to vector<32x32xf32>
    %263 = math.tanh %262 : vector<32x32xf32>
    %264 = arith.mulf %260, %225 : vector<32x32xf32>
    %265 = arith.mulf %259, %263 : vector<32x32xf32>
    %266 = arith.addf %264, %265 : vector<32x32xf32>
    %267 = math.tanh %266 : vector<32x32xf32>
    %268 = arith.mulf %261, %267 : vector<32x32xf32>
    %269 = arith.truncf %268 : vector<32x32xf32> to vector<32x32xbf16>
    %cst_55 = arith.constant dense<0.000000e+00> : vector<32x128xf32>
    %270 = tpu.matmul %269, %11, %cst_55 {dimension_numbers = #tpu.dot_dimension_numbers<[1], [0], [0], [1], [0, 0, 1, 1], [], []>} : vector<32x32xbf16>, vector<32x128xbf16>, vector<32x128xf32> -> vector<32x128xf32>
    %271 = arith.addf %270, %14 : vector<32x128xf32>
    %272 = vector.extract_strided_slice %8 {offsets = [6, 0, 0], sizes = [1, 32, 128], strides = [1, 1, 1]} : vector<8x32x128xf32> to vector<1x32x128xf32>
    %273 = vector.shape_cast %272 : vector<1x32x128xf32> to vector<32x128xf32>
    %274 = arith.truncf %250 : vector<32x32xf32> to vector<32x32xbf16>
    %cst_56 = arith.constant dense<0.000000e+00> : vector<32x128xf32>
    %275 = tpu.matmul %274, %9, %cst_56 {dimension_numbers = #tpu.dot_dimension_numbers<[1], [0], [0], [1], [0, 0, 1, 1], [], []>} : vector<32x32xbf16>, vector<32x128xbf16>, vector<32x128xf32> -> vector<32x128xf32>
    %276 = arith.addf %273, %275 : vector<32x128xf32>
    %277 = arith.negf %276 : vector<32x128xf32>
    %278 = math.exp %277 : vector<32x128xf32>
    %cst_57 = arith.constant 1.000000e+00 : f32
    %279 = vector.broadcast %cst_57 : f32 to vector<32x128xf32>
    %280 = arith.addf %279, %278 : vector<32x128xf32>
    %281 = arith.divf %279, %280 : vector<32x128xf32>
    %282 = vector.extract_strided_slice %281 {offsets = [0, 0], sizes = [32, 32], strides = [1, 1]} : vector<32x128xf32> to vector<32x32xf32>
    %283 = vector.extract_strided_slice %281 {offsets = [0, 32], sizes = [32, 32], strides = [1, 1]} : vector<32x128xf32> to vector<32x32xf32>
    %284 = vector.extract_strided_slice %281 {offsets = [0, 96], sizes = [32, 32], strides = [1, 1]} : vector<32x128xf32> to vector<32x32xf32>
    %285 = vector.extract_strided_slice %276 {offsets = [0, 64], sizes = [32, 32], strides = [1, 1]} : vector<32x128xf32> to vector<32x32xf32>
    %286 = math.tanh %285 : vector<32x32xf32>
    %287 = arith.mulf %283, %248 : vector<32x32xf32>
    %288 = arith.mulf %282, %286 : vector<32x32xf32>
    %289 = arith.addf %287, %288 : vector<32x32xf32>
    %290 = math.tanh %289 : vector<32x32xf32>
    %291 = arith.mulf %284, %290 : vector<32x32xf32>
    %292 = arith.truncf %291 : vector<32x32xf32> to vector<32x32xbf16>
    %cst_58 = arith.constant dense<0.000000e+00> : vector<32x128xf32>
    %293 = tpu.matmul %292, %10, %cst_58 {dimension_numbers = #tpu.dot_dimension_numbers<[1], [0], [0], [1], [0, 0, 1, 1], [], []>} : vector<32x32xbf16>, vector<32x128xbf16>, vector<32x128xf32> -> vector<32x128xf32>
    %294 = arith.addf %293, %271 : vector<32x128xf32>
    %295 = arith.negf %294 : vector<32x128xf32>
    %296 = math.exp %295 : vector<32x128xf32>
    %cst_59 = arith.constant 1.000000e+00 : f32
    %297 = vector.broadcast %cst_59 : f32 to vector<32x128xf32>
    %298 = arith.addf %297, %296 : vector<32x128xf32>
    %299 = arith.divf %297, %298 : vector<32x128xf32>
    %300 = vector.extract_strided_slice %299 {offsets = [0, 0], sizes = [32, 32], strides = [1, 1]} : vector<32x128xf32> to vector<32x32xf32>
    %301 = vector.extract_strided_slice %299 {offsets = [0, 32], sizes = [32, 32], strides = [1, 1]} : vector<32x128xf32> to vector<32x32xf32>
    %302 = vector.extract_strided_slice %299 {offsets = [0, 96], sizes = [32, 32], strides = [1, 1]} : vector<32x128xf32> to vector<32x32xf32>
    %303 = vector.extract_strided_slice %294 {offsets = [0, 64], sizes = [32, 32], strides = [1, 1]} : vector<32x128xf32> to vector<32x32xf32>
    %304 = math.tanh %303 : vector<32x32xf32>
    %305 = arith.mulf %301, %266 : vector<32x32xf32>
    %306 = arith.mulf %300, %304 : vector<32x32xf32>
    %307 = arith.addf %305, %306 : vector<32x32xf32>
    %308 = math.tanh %307 : vector<32x32xf32>
    %309 = arith.mulf %302, %308 : vector<32x32xf32>
    %310 = arith.truncf %309 : vector<32x32xf32> to vector<32x32xbf16>
    %cst_60 = arith.constant dense<0.000000e+00> : vector<32x128xf32>
    %311 = tpu.matmul %310, %11, %cst_60 {dimension_numbers = #tpu.dot_dimension_numbers<[1], [0], [0], [1], [0, 0, 1, 1], [], []>} : vector<32x32xbf16>, vector<32x128xbf16>, vector<32x128xf32> -> vector<32x128xf32>
    %312 = arith.addf %311, %14 : vector<32x128xf32>
    %313 = vector.extract_strided_slice %8 {offsets = [7, 0, 0], sizes = [1, 32, 128], strides = [1, 1, 1]} : vector<8x32x128xf32> to vector<1x32x128xf32>
    %314 = vector.shape_cast %313 : vector<1x32x128xf32> to vector<32x128xf32>
    %315 = arith.truncf %291 : vector<32x32xf32> to vector<32x32xbf16>
    %cst_61 = arith.constant dense<0.000000e+00> : vector<32x128xf32>
    %316 = tpu.matmul %315, %9, %cst_61 {dimension_numbers = #tpu.dot_dimension_numbers<[1], [0], [0], [1], [0, 0, 1, 1], [], []>} : vector<32x32xbf16>, vector<32x128xbf16>, vector<32x128xf32> -> vector<32x128xf32>
    %317 = arith.addf %314, %316 : vector<32x128xf32>
    %318 = arith.negf %317 : vector<32x128xf32>
    %319 = math.exp %318 : vector<32x128xf32>
    %cst_62 = arith.constant 1.000000e+00 : f32
    %320 = vector.broadcast %cst_62 : f32 to vector<32x128xf32>
    %321 = arith.addf %320, %319 : vector<32x128xf32>
    %322 = arith.divf %320, %321 : vector<32x128xf32>
    %323 = vector.extract_strided_slice %322 {offsets = [0, 0], sizes = [32, 32], strides = [1, 1]} : vector<32x128xf32> to vector<32x32xf32>
    %324 = vector.extract_strided_slice %322 {offsets = [0, 32], sizes = [32, 32], strides = [1, 1]} : vector<32x128xf32> to vector<32x32xf32>
    %325 = vector.extract_strided_slice %322 {offsets = [0, 96], sizes = [32, 32], strides = [1, 1]} : vector<32x128xf32> to vector<32x32xf32>
    %326 = vector.extract_strided_slice %317 {offsets = [0, 64], sizes = [32, 32], strides = [1, 1]} : vector<32x128xf32> to vector<32x32xf32>
    %327 = math.tanh %326 : vector<32x32xf32>
    %328 = arith.mulf %324, %289 : vector<32x32xf32>
    %329 = arith.mulf %323, %327 : vector<32x32xf32>
    %330 = arith.addf %328, %329 : vector<32x32xf32>
    %331 = math.tanh %330 : vector<32x32xf32>
    %332 = arith.mulf %325, %331 : vector<32x32xf32>
    %333 = arith.truncf %332 : vector<32x32xf32> to vector<32x32xbf16>
    %cst_63 = arith.constant dense<0.000000e+00> : vector<32x128xf32>
    %334 = tpu.matmul %333, %10, %cst_63 {dimension_numbers = #tpu.dot_dimension_numbers<[1], [0], [0], [1], [0, 0, 1, 1], [], []>} : vector<32x32xbf16>, vector<32x128xbf16>, vector<32x128xf32> -> vector<32x128xf32>
    %335 = arith.addf %334, %312 : vector<32x128xf32>
    %336 = arith.negf %335 : vector<32x128xf32>
    %337 = math.exp %336 : vector<32x128xf32>
    %cst_64 = arith.constant 1.000000e+00 : f32
    %338 = vector.broadcast %cst_64 : f32 to vector<32x128xf32>
    %339 = arith.addf %338, %337 : vector<32x128xf32>
    %340 = arith.divf %338, %339 : vector<32x128xf32>
    %341 = vector.extract_strided_slice %340 {offsets = [0, 0], sizes = [32, 32], strides = [1, 1]} : vector<32x128xf32> to vector<32x32xf32>
    %342 = vector.extract_strided_slice %340 {offsets = [0, 32], sizes = [32, 32], strides = [1, 1]} : vector<32x128xf32> to vector<32x32xf32>
    %343 = vector.extract_strided_slice %340 {offsets = [0, 96], sizes = [32, 32], strides = [1, 1]} : vector<32x128xf32> to vector<32x32xf32>
    %344 = vector.extract_strided_slice %335 {offsets = [0, 64], sizes = [32, 32], strides = [1, 1]} : vector<32x128xf32> to vector<32x32xf32>
    %345 = math.tanh %344 : vector<32x32xf32>
    %346 = arith.mulf %342, %307 : vector<32x32xf32>
    %347 = arith.mulf %341, %345 : vector<32x32xf32>
    %348 = arith.addf %346, %347 : vector<32x32xf32>
    %349 = math.tanh %348 : vector<32x32xf32>
    %350 = arith.mulf %343, %349 : vector<32x32xf32>
    %c0_65 = arith.constant 0 : index
    %c0_66 = arith.constant 0 : index
    %c0_67 = arith.constant 0 : index
    %351 = vector.load %arg13[%c0_65, %c0_66, %c0_67] : memref<2x32x32xf32, #tpu.memory_space<vmem>>, vector<1x32x32xf32>
    %352 = vector.shape_cast %351 : vector<1x32x32xf32> to vector<32x32xf32>
    %353 = vector.shape_cast %332 : vector<32x32xf32> to vector<1x32x32xf32>
    tpu.vector_store %arg13[%c0_65, %c0_66, %c0_67], %353 {strides = array<i32>} : memref<2x32x32xf32, #tpu.memory_space<vmem>>, vector<1x32x32xf32>,
    %c0_68 = arith.constant 0 : index
    %c0_69 = arith.constant 0 : index
    %c0_70 = arith.constant 0 : index
    %354 = vector.load %arg14[%c0_68, %c0_69, %c0_70] : memref<2x32x32xf32, #tpu.memory_space<vmem>>, vector<1x32x32xf32>
    %355 = vector.shape_cast %354 : vector<1x32x32xf32> to vector<32x32xf32>
    %356 = vector.shape_cast %330 : vector<32x32xf32> to vector<1x32x32xf32>
    tpu.vector_store %arg14[%c0_68, %c0_69, %c0_70], %356 {strides = array<i32>} : memref<2x32x32xf32, #tpu.memory_space<vmem>>, vector<1x32x32xf32>,
    %c1_71 = arith.constant 1 : index
    %c0_72 = arith.constant 0 : index
    %c0_73 = arith.constant 0 : index
    %357 = vector.load %arg13[%c1_71, %c0_72, %c0_73] : memref<2x32x32xf32, #tpu.memory_space<vmem>>, vector<1x32x32xf32>
    %358 = vector.shape_cast %357 : vector<1x32x32xf32> to vector<32x32xf32>
    %359 = vector.shape_cast %350 : vector<32x32xf32> to vector<1x32x32xf32>
    tpu.vector_store %arg13[%c1_71, %c0_72, %c0_73], %359 {strides = array<i32>} : memref<2x32x32xf32, #tpu.memory_space<vmem>>, vector<1x32x32xf32>,
    %c1_74 = arith.constant 1 : index
    %c0_75 = arith.constant 0 : index
    %c0_76 = arith.constant 0 : index
    %360 = vector.load %arg14[%c1_74, %c0_75, %c0_76] : memref<2x32x32xf32, #tpu.memory_space<vmem>>, vector<1x32x32xf32>
    %361 = vector.shape_cast %360 : vector<1x32x32xf32> to vector<32x32xf32>
    %362 = vector.shape_cast %348 : vector<32x32xf32> to vector<1x32x32xf32>
    tpu.vector_store %arg14[%c1_74, %c0_75, %c0_76], %362 {strides = array<i32>} : memref<2x32x32xf32, #tpu.memory_space<vmem>>, vector<1x32x32xf32>,
    %c0_77 = arith.constant 0 : index
    %c0_78 = arith.constant 0 : index
    %363 = vector.load %arg8[%c0_77, %c0_78] : memref<1x32xf32, #tpu.memory_space<vmem>>, vector<1x32xf32>
    %364 = vector.broadcast %363 : vector<1x32xf32> to vector<32x32xf32>
    %365 = arith.mulf %350, %364 : vector<32x32xf32>
    %cst_79 = arith.constant dense<0.000000e+00> : vector<32xf32>
    %366 = vector.multi_reduction <add>, %365, %cst_79 [1] : vector<32x32xf32> to vector<32xf32>
    %367 = vector.shape_cast %366 : vector<32xf32> to vector<1x32xf32>
    %c0_80 = arith.constant 0 : index
    %c0_81 = arith.constant 0 : index
    %368 = vector.load %arg9[%c0_80, %c0_81] : memref<1x1xf32, #tpu.memory_space<vmem>>, vector<1x1xf32>
    %369 = vector.broadcast %368 : vector<1x1xf32> to vector<1x32xf32>
    %370 = arith.addf %367, %369 : vector<1x32xf32>
    %371 = arith.negf %370 : vector<1x32xf32>
    %372 = math.exp %371 : vector<1x32xf32>
    %cst_82 = arith.constant 1.000000e+00 : f32
    %373 = vector.broadcast %cst_82 : f32 to vector<1x32xf32>
    %374 = arith.addf %373, %372 : vector<1x32xf32>
    %375 = arith.divf %373, %374 : vector<1x32xf32>
    %c0_83 = arith.constant 0 : index
    %c0_84 = arith.constant 0 : index
    %376 = vector.load %arg12[%c0_83, %c0_84] : memref<1x32xf32, #tpu.memory_space<vmem>>, vector<1x32xf32>
    tpu.vector_store %arg12[%c0_83, %c0_84], %375 {strides = array<i32>} : memref<1x32xf32, #tpu.memory_space<vmem>>, vector<1x32xf32>,
    return
  }
  func.func @transform_0(%arg0: i32) -> (i32, i32, i32) {
    %c0_i32 = arith.constant 0 : i32
    %c0_i32_0 = arith.constant 0 : i32
    %c0_i32_1 = arith.constant 0 : i32
    return %c0_i32, %arg0, %c0_i32_0 : i32, i32, i32
  }
  func.func @transform_1(%arg0: i32) -> (i32, i32) {
    %c0_i32 = arith.constant 0 : i32
    %c0_i32_0 = arith.constant 0 : i32
    %c0_i32_1 = arith.constant 0 : i32
    return %c0_i32, %c0_i32_0 : i32, i32
  }
  func.func @transform_2(%arg0: i32) -> (i32, i32) {
    %c0_i32 = arith.constant 0 : i32
    %c0_i32_0 = arith.constant 0 : i32
    %c0_i32_1 = arith.constant 0 : i32
    return %c0_i32, %c0_i32_0 : i32, i32
  }
  func.func @transform_3(%arg0: i32) -> (i32, i32) {
    %c0_i32 = arith.constant 0 : i32
    %c0_i32_0 = arith.constant 0 : i32
    %c0_i32_1 = arith.constant 0 : i32
    return %c0_i32, %c0_i32_0 : i32, i32
  }
  func.func @transform_4(%arg0: i32) -> (i32, i32) {
    %c0_i32 = arith.constant 0 : i32
    %c0_i32_0 = arith.constant 0 : i32
    %c0_i32_1 = arith.constant 0 : i32
    return %c0_i32, %c0_i32_0 : i32, i32
  }
  func.func @transform_5(%arg0: i32) -> (i32, i32) {
    %c0_i32 = arith.constant 0 : i32
    %c0_i32_0 = arith.constant 0 : i32
    %c0_i32_1 = arith.constant 0 : i32
    return %c0_i32, %c0_i32_0 : i32, i32
  }
  func.func @transform_6(%arg0: i32) -> (i32, i32) {
    %c0_i32 = arith.constant 0 : i32
    %c0_i32_0 = arith.constant 0 : i32
    %c0_i32_1 = arith.constant 0 : i32
    return %c0_i32, %c0_i32_0 : i32, i32
  }
  func.func @transform_7(%arg0: i32) -> (i32, i32) {
    %c0_i32 = arith.constant 0 : i32
    %c0_i32_0 = arith.constant 0 : i32
    %c0_i32_1 = arith.constant 0 : i32
    return %c0_i32, %c0_i32_0 : i32, i32
  }
  func.func @transform_8(%arg0: i32) -> (i32, i32) {
    %c0_i32 = arith.constant 0 : i32
    %c0_i32_0 = arith.constant 0 : i32
    %c0_i32_1 = arith.constant 0 : i32
    return %c0_i32, %c0_i32_0 : i32, i32
  }
  func.func @transform_9(%arg0: i32) -> (i32, i32, i32) {
    %c0_i32 = arith.constant 0 : i32
    %c0_i32_0 = arith.constant 0 : i32
    %c0_i32_1 = arith.constant 0 : i32
    return %c0_i32, %arg0, %c0_i32_0 : i32, i32, i32
  }
  func.func @transform_10(%arg0: i32) -> (i32, i32, i32) {
    %c0_i32 = arith.constant 0 : i32
    %c0_i32_0 = arith.constant 0 : i32
    %c0_i32_1 = arith.constant 0 : i32
    return %c0_i32, %arg0, %c0_i32_0 : i32, i32, i32
  }
  func.func @transform_11(%arg0: i32) -> (i32, i32) {
    %c0_i32 = arith.constant 0 : i32
    %c0_i32_0 = arith.constant 0 : i32
    return %c0_i32, %arg0 : i32, i32
  }
  func.func @transform_12(%arg0: i32) -> (i32, i32, i32) {
    %c0_i32 = arith.constant 0 : i32
    %c0_i32_0 = arith.constant 0 : i32
    %c0_i32_1 = arith.constant 0 : i32
    return %c0_i32, %arg0, %c0_i32_0 : i32, i32, i32
  }
  func.func @transform_13(%arg0: i32) -> (i32, i32, i32) {
    %c0_i32 = arith.constant 0 : i32
    %c0_i32_0 = arith.constant 0 : i32
    %c0_i32_1 = arith.constant 0 : i32
    return %c0_i32, %arg0, %c0_i32_0 : i32, i32, i32
  }
}

</mosaic_0001>

<llo_original>
// kernel: tpu_custom_call.1
$region0: #{tpu_custom_call.1}
  #allocation0 [shape = 'u32[]', space=smem, size = 0x4, offset = 0x4, fixed_abs, tag = 'smem constant byte address 0x4 - core index']
  #allocation1 [shape = 'u32[144,128]{1,0:T(1,128)}', space=vmem, size = 0x12000, scoped, tag = 'internal scratch']
  #allocation2 [shape = 'f32[1,1]{1,0:T(1,128)S(1)}', space=vmem, size = 0x200, scoped, tag = 'scoped memory for tpu_custom_call.1']
  %s0 = inlined_call_operand.hbm [shape: bf16[8,32,32], index: 0, kind: input, shape index: {}]
  %s1 = inlined_call_operand.hbm [shape: bf16[32,128], index: 1, kind: input, shape index: {}]
  %s2 = inlined_call_operand.hbm [shape: bf16[32,128], index: 2, kind: input, shape index: {}]
  %s3 = inlined_call_operand.vmem [shape: f32[1,128], index: 3, kind: input, shape index: {}]
  %s4 = inlined_call_operand.vmem [shape: bf16[32,128], index: 4, kind: input, shape index: {}]
  %s5 = inlined_call_operand.hbm [shape: bf16[32,128], index: 5, kind: input, shape index: {}]
  %s6 = inlined_call_operand.vmem [shape: f32[1,128], index: 6, kind: input, shape index: {}]
  %s7 = inlined_call_operand.vmem [shape: f32[1,32], index: 7, kind: input, shape index: {}]
  %s8 = inlined_call_operand.<no memory space> [shape: f32[1,1], index: 8, kind: input, shape index: {}]
  %s9 = inlined_call_operand.hbm [shape: f32[2,32,32], index: 9, kind: input, shape index: {}]
  %s10 = inlined_call_operand.hbm [shape: f32[2,32,32], index: 10, kind: input, shape index: {}]
  %s11 = inlined_call_operand.hbm [shape: f32[1,32], index: 11, kind: output, shape index: {0}]
  %s12 = inlined_call_operand.hbm [shape: f32[2,32,32], index: 12, kind: output, shape index: {1}]
  %s13 = inlined_call_operand.hbm [shape: f32[2,32,32], index: 13, kind: output, shape index: {2}]
  %14 = xla_tuple %s11, %s12, %s13
  %s15 = sld [smem:[#allocation0]]
  $region94: #{tpu_custom_call.1} parent=0
    _
  %s17 = ssub.s32 1, %s15
  %s18 = scalar_select 0, %s17, %s15
  %v19 = vstv %s8
  %20 = vst [vmem:[#allocation2] sm:$0x1] %v19
  $region1: #{tpu_custom_call.1} parent=0
    #allocation3 [shape = 'u8[65536]{0}', space=vmem, size = 0x10000, scoped, tag = 'input window, operand 0, single buffered']
    #allocation4 [shape = 's32[1]{0}', space=sflag, size = 0x4, scoped, tag = 'scoped memory for tpu_custom_call.1']
    #allocation5 [shape = 's32[1]{0}', space=sflag, size = 0x4, scoped, tag = 'scoped memory for tpu_custom_call.1']
    #allocation6 [shape = 'u8[8192]{0}', space=vmem, size = 0x2000, scoped, tag = 'input window, operand 1, single buffered']
    #allocation7 [shape = 's32[1]{0}', space=sflag, size = 0x4, scoped, tag = 'scoped memory for tpu_custom_call.1']
    #allocation8 [shape = 'u8[8192]{0}', space=vmem, size = 0x2000, scoped, tag = 'input window, operand 2, single buffered']
    #allocation9 [shape = 'u8[8192]{0}', space=vmem, size = 0x2000, scoped, tag = 'input window, operand 5, single buffered']
    #allocation10 [shape = 's32[1]{0}', space=sflag, size = 0x4, scoped, tag = 'scoped memory for tpu_custom_call.1']
    #allocation11 [shape = 'u8[32768]{0}', space=vmem, size = 0x8000, scoped, tag = 'input window, operand 9, single buffered']
    #allocation12 [shape = 'u8[32768]{0}', space=vmem, size = 0x8000, scoped, tag = 'input window, operand 10, single buffered']
    #allocation13 [shape = 's32[1]{0}', space=sflag, size = 0x4, scoped, tag = 'scoped memory for tpu_custom_call.1']
    #allocation14 [shape = 'u8[512]{0}', space=vmem, size = 0x400, scoped, tag = 'output window, operand 0, single buffered']
    #allocation15 [shape = 'u8[32768]{0}', space=vmem, size = 0x8000, scoped, tag = 'output window, operand 1, single buffered']
    #allocation16 [shape = 's32[1]{0}', space=sflag, size = 0x4, scoped, tag = 'scoped memory for tpu_custom_call.1']
    #allocation17 [shape = 'u8[32768]{0}', space=vmem, size = 0x8000, scoped, tag = 'output window, operand 2, single buffered']
    %21 = vsyncpa [#allocation4], 0
    %22 = vsyncpa [#allocation7], 0
    %23 = vsyncpa [#allocation10], 0
    %24 = vsyncpa [#allocation13], 0
    %25 = vsyncpa [#allocation5], 0
    %26 = vsyncpa [#allocation16], 0
    // Predicated region
    $region2: #{tpu_custom_call.1} parent=1 // pred_check
      _
    $region3: #{tpu_custom_call.1} parent=1 // pred_check_branch
      %28 = sbr.rel (0) target = $region5
    $region4: #{tpu_custom_call.1} parent=1 // pred_region
      %s30 = ssub.s32 2048, 2048
      %31 = vsyncadd [#allocation4], %s30
      %s32 = sshll.u32 [#allocation3], 4
      %s33 = int_to_ptr.vmem [resolvable:$true] %s32
      %38 = dma.hbm_to_vmem [thread:$0]  %s0, 2048, %s33, [#allocation4], 64, 64, 4
    $region5: #{tpu_custom_call.1} parent=1 // pred_fallthru
      _
    // Predicated region
    $region6: #{tpu_custom_call.1} parent=1 // pred_check
      _
    $region7: #{tpu_custom_call.1} parent=1 // pred_check_branch
      %40 = sbr.rel (0) target = $region9
    $region8: #{tpu_custom_call.1} parent=1 // pred_region
      %s42 = ssub.s32 256, 256
      %43 = vsyncadd [#allocation7], %s42
      %s44 = sshll.u32 [#allocation6], 4
      %s45 = int_to_ptr.vmem [resolvable:$true] %s44
      %50 = dma.hbm_to_vmem [thread:$0]  %s1, 256, %s45, [#allocation7], 64, 64, 4
    $region9: #{tpu_custom_call.1} parent=1 // pred_fallthru
      _
    // Predicated region
    $region10: #{tpu_custom_call.1} parent=1 // pred_check
      _
    $region11: #{tpu_custom_call.1} parent=1 // pred_check_branch
      %52 = sbr.rel (0) target = $region13
    $region12: #{tpu_custom_call.1} parent=1 // pred_region
      %s54 = ssub.s32 256, 256
      %55 = vsyncadd [#allocation7], %s54
      %s56 = sshll.u32 [#allocation8], 4
      %s57 = int_to_ptr.vmem [resolvable:$true] %s56
      %62 = dma.hbm_to_vmem [thread:$0]  %s2, 256, %s57, [#allocation7], 64, 64, 4
    $region13: #{tpu_custom_call.1} parent=1 // pred_fallthru
      _
    // Predicated region
    $region14: #{tpu_custom_call.1} parent=1 // pred_check
      _
    $region15: #{tpu_custom_call.1} parent=1 // pred_check_branch
      %64 = sbr.rel (0) target = $region17
    $region16: #{tpu_custom_call.1} parent=1 // pred_region
      _
    $region17: #{tpu_custom_call.1} parent=1 // pred_fallthru
      _
    // Predicated region
    $region18: #{tpu_custom_call.1} parent=1 // pred_check
      _
    $region19: #{tpu_custom_call.1} parent=1 // pred_check_branch
      %66 = sbr.rel (0) target = $region21
    $region20: #{tpu_custom_call.1} parent=1 // pred_region
      _
    $region21: #{tpu_custom_call.1} parent=1 // pred_fallthru
      _
    // Predicated region
    $region22: #{tpu_custom_call.1} parent=1 // pred_check
      _
    $region23: #{tpu_custom_call.1} parent=1 // pred_check_branch
      %68 = sbr.rel (0) target = $region25
    $region24: #{tpu_custom_call.1} parent=1 // pred_region
      %s70 = ssub.s32 256, 256
      %71 = vsyncadd [#allocation10], %s70
      %s72 = sshll.u32 [#allocation9], 4
      %s73 = int_to_ptr.vmem [resolvable:$true] %s72
      %78 = dma.hbm_to_vmem [thread:$0]  %s5, 256, %s73, [#allocation10], 64, 64, 4
    $region25: #{tpu_custom_call.1} parent=1 // pred_fallthru
      _
    // Predicated region
    $region26: #{tpu_custom_call.1} parent=1 // pred_check
      _
    $region27: #{tpu_custom_call.1} parent=1 // pred_check_branch
      %80 = sbr.rel (0) target = $region29
    $region28: #{tpu_custom_call.1} parent=1 // pred_region
      _
    $region29: #{tpu_custom_call.1} parent=1 // pred_fallthru
      _
    // Predicated region
    $region30: #{tpu_custom_call.1} parent=1 // pred_check
      _
    $region31: #{tpu_custom_call.1} parent=1 // pred_check_branch
      %82 = sbr.rel (0) target = $region33
    $region32: #{tpu_custom_call.1} parent=1 // pred_region
      _
    $region33: #{tpu_custom_call.1} parent=1 // pred_fallthru
      _
    // Predicated region
    $region34: #{tpu_custom_call.1} parent=1 // pred_check
      _
    $region35: #{tpu_custom_call.1} parent=1 // pred_check_branch
      %84 = sbr.rel (0) target = $region37
    $region36: #{tpu_custom_call.1} parent=1 // pred_region
      _
    $region37: #{tpu_custom_call.1} parent=1 // pred_fallthru
      _
    // Predicated region
    $region38: #{tpu_custom_call.1} parent=1 // pred_check
      _
    $region39: #{tpu_custom_call.1} parent=1 // pred_check_branch
      %86 = sbr.rel (0) target = $region41
    $region40: #{tpu_custom_call.1} parent=1 // pred_region
      %s88 = ssub.s32 1024, 1024
      %89 = vsyncadd [#allocation10], %s88
      %s90 = sshll.u32 [#allocation11], 4
      %s91 = int_to_ptr.vmem [resolvable:$true] %s90
      %96 = dma.hbm_to_vmem [thread:$0]  %s9, 1024, %s91, [#allocation10], 128, 128, 8
    $region41: #{tpu_custom_call.1} parent=1 // pred_fallthru
      _
    // Predicated region
    $region42: #{tpu_custom_call.1} parent=1 // pred_check
      _
    $region43: #{tpu_custom_call.1} parent=1 // pred_check_branch
      %98 = sbr.rel (0) target = $region45
    $region44: #{tpu_custom_call.1} parent=1 // pred_region
      %s100 = ssub.s32 1024, 1024
      %101 = vsyncadd [#allocation13], %s100
      %s102 = sshll.u32 [#allocation12], 4
      %s103 = int_to_ptr.vmem [resolvable:$true] %s102
      %108 = dma.hbm_to_vmem [thread:$0]  %s10, 1024, %s103, [#allocation13], 128, 128, 8
    $region45: #{tpu_custom_call.1} parent=1 // pred_fallthru
      _
    // Predicated region
    $region46: #{tpu_custom_call.1} parent=1 // pred_check
      _
    $region47: #{tpu_custom_call.1} parent=1 // pred_check_branch
      %110 = sbr.rel (0) target = $region49
    $region48: #{tpu_custom_call.1} parent=1 // pred_region
      %111 = dma.done [#allocation4], 2048
    $region49: #{tpu_custom_call.1} parent=1 // pred_fallthru
      _
    // Predicated region
    $region50: #{tpu_custom_call.1} parent=1 // pred_check
      _
    $region51: #{tpu_custom_call.1} parent=1 // pred_check_branch
      %113 = sbr.rel (0) target = $region53
    $region52: #{tpu_custom_call.1} parent=1 // pred_region
      %114 = dma.done [#allocation7], 256
    $region53: #{tpu_custom_call.1} parent=1 // pred_fallthru
      _
    // Predicated region
    $region54: #{tpu_custom_call.1} parent=1 // pred_check
      _
    $region55: #{tpu_custom_call.1} parent=1 // pred_check_branch
      %116 = sbr.rel (0) target = $region57
    $region56: #{tpu_custom_call.1} parent=1 // pred_region
      %117 = dma.done [#allocation7], 256
    $region57: #{tpu_custom_call.1} parent=1 // pred_fallthru
      _
    // Predicated region
    $region58: #{tpu_custom_call.1} parent=1 // pred_check
      _
    $region59: #{tpu_custom_call.1} parent=1 // pred_check_branch
      %119 = sbr.rel (0) target = $region61
    $region60: #{tpu_custom_call.1} parent=1 // pred_region
      %120 = dma.done [#allocation10], 256
    $region61: #{tpu_custom_call.1} parent=1 // pred_fallthru
      _
    // Predicated region
    $region62: #{tpu_custom_call.1} parent=1 // pred_check
      _
    $region63: #{tpu_custom_call.1} parent=1 // pred_check_branch
      %122 = sbr.rel (0) target = $region65
    $region64: #{tpu_custom_call.1} parent=1 // pred_region
      %123 = dma.done [#allocation10], 1024
    $region65: #{tpu_custom_call.1} parent=1 // pred_fallthru
      _
    // Predicated region
    $region66: #{tpu_custom_call.1} parent=1 // pred_check
      _
    $region67: #{tpu_custom_call.1} parent=1 // pred_check_branch
      %125 = sbr.rel (0) target = $region69
    $region68: #{tpu_custom_call.1} parent=1 // pred_region
      %126 = dma.done [#allocation13], 1024
    $region69: #{tpu_custom_call.1} parent=1 // pred_fallthru
      _
    %v128 = vld [vmem:[#allocation3] sm:$0xf]
    %v129 = vld [vmem:[#allocation3 + $0x4] sm:$0xf]
    %v130 = vld [vmem:[#allocation3 + $0x8] sm:$0xf]
    %v131 = vld [vmem:[#allocation3 + $0xc] sm:$0xf]
    %v132 = vld [vmem:[#allocation3 + $0x10] sm:$0xf]
    %v133 = vld [vmem:[#allocation3 + $0x14] sm:$0xf]
    %v134 = vld [vmem:[#allocation3 + $0x18] sm:$0xf]
    %v135 = vld [vmem:[#allocation3 + $0x1c] sm:$0xf]
    %v136 = vld [vmem:[#allocation3 + $0x20] sm:$0xf]
    %v137 = vld [vmem:[#allocation3 + $0x24] sm:$0xf]
    %v138 = vld [vmem:[#allocation3 + $0x28] sm:$0xf]
    %v139 = vld [vmem:[#allocation3 + $0x2c] sm:$0xf]
    %v140 = vld [vmem:[#allocation3 + $0x30] sm:$0xf]
    %v141 = vld [vmem:[#allocation3 + $0x34] sm:$0xf]
    %v142 = vld [vmem:[#allocation3 + $0x38] sm:$0xf]
    %v143 = vld [vmem:[#allocation3 + $0x3c] sm:$0xf]
    %v144 = vld [vmem:[#allocation3 + $0x40] sm:$0xf]
    %v145 = vld [vmem:[#allocation3 + $0x44] sm:$0xf]
    %v146 = vld [vmem:[#allocation3 + $0x48] sm:$0xf]
    %v147 = vld [vmem:[#allocation3 + $0x4c] sm:$0xf]
    %v148 = vld [vmem:[#allocation3 + $0x50] sm:$0xf]
    %v149 = vld [vmem:[#allocation3 + $0x54] sm:$0xf]
    %v150 = vld [vmem:[#allocation3 + $0x58] sm:$0xf]
    %v151 = vld [vmem:[#allocation3 + $0x5c] sm:$0xf]
    %v152 = vld [vmem:[#allocation3 + $0x60] sm:$0xf]
    %v153 = vld [vmem:[#allocation3 + $0x64] sm:$0xf]
    %v154 = vld [vmem:[#allocation3 + $0x68] sm:$0xf]
    %v155 = vld [vmem:[#allocation3 + $0x6c] sm:$0xf]
    %v156 = vld [vmem:[#allocation3 + $0x70] sm:$0xf]
    %v157 = vld [vmem:[#allocation3 + $0x74] sm:$0xf]
    %v158 = vld [vmem:[#allocation3 + $0x78] sm:$0xf]
    %v159 = vld [vmem:[#allocation3 + $0x7c] sm:$0xf]
    %v160 = vld [vmem:[#allocation6] sm:$0xf]
    %v161 = vld [vmem:[#allocation6 + $0x4] sm:$0xf]
    %v162 = vld [vmem:[#allocation6 + $0x8] sm:$0xf]
    %v163 = vld [vmem:[#allocation6 + $0xc] sm:$0xf]
    %v196 = vunpack.c.l.b16 %v128
    %v197 = vunpack.c.l.b16 %v129
    %v198 = vunpack.c.l.b16 %v130
    %v199 = vunpack.c.l.b16 %v131
    %v200 = vunpack.c.l.b16 %v132
    %v201 = vunpack.c.l.b16 %v133
    %v202 = vunpack.c.l.b16 %v134
    %v203 = vunpack.c.l.b16 %v135
    %v204 = vunpack.c.l.b16 %v136
    %v205 = vunpack.c.l.b16 %v137
    %v206 = vunpack.c.l.b16 %v138
    %v207 = vunpack.c.l.b16 %v139
    %v208 = vunpack.c.l.b16 %v140
    %v209 = vunpack.c.l.b16 %v141
    %v210 = vunpack.c.l.b16 %v142
    %v211 = vunpack.c.l.b16 %v143
    %v212 = vunpack.c.l.b16 %v144
    %v213 = vunpack.c.l.b16 %v145
    %v214 = vunpack.c.l.b16 %v146
    %v215 = vunpack.c.l.b16 %v147
    %v216 = vunpack.c.l.b16 %v148
    %v217 = vunpack.c.l.b16 %v149
    %v218 = vunpack.c.l.b16 %v150
    %v219 = vunpack.c.l.b16 %v151
    %v220 = vunpack.c.l.b16 %v152
    %v221 = vunpack.c.l.b16 %v153
    %v222 = vunpack.c.l.b16 %v154
    %v223 = vunpack.c.l.b16 %v155
    %v224 = vunpack.c.l.b16 %v156
    %v225 = vunpack.c.l.b16 %v157
    %v226 = vunpack.c.l.b16 %v158
    %v227 = vunpack.c.l.b16 %v159
    %v228 = vpack.c.b16 %v197, %v196
    %v229 = vpack.c.b16 %v199, %v198
    %v230 = vpack.c.b16 %v201, %v200
    %v231 = vpack.c.b16 %v203, %v202
    %v232 = vpack.c.b16 %v205, %v204
    %v233 = vpack.c.b16 %v207, %v206
    %v234 = vpack.c.b16 %v209, %v208
    %v235 = vpack.c.b16 %v211, %v210
    %v236 = vpack.c.b16 %v213, %v212
    %v237 = vpack.c.b16 %v215, %v214
    %v238 = vpack.c.b16 %v217, %v216
    %v239 = vpack.c.b16 %v219, %v218
    %v240 = vpack.c.b16 %v221, %v220
    %v241 = vpack.c.b16 %v223, %v222
    %v242 = vpack.c.b16 %v225, %v224
    %v243 = vpack.c.b16 %v227, %v226
    %v248 = vunpack.c.l.b16 %v160
    %v249 = vunpack.c.l.b16 %v161
    %v250 = vunpack.c.l.b16 %v162
    %v251 = vunpack.c.l.b16 %v163
    %v252 = vpack.c.b16 %v249, %v248
    %v253 = vpack.c.b16 %v251, %v250
    %vm256 = vcmask 261120
    %v258 = vsel %vm256, %v228, 0
    %v261 = vsel %vm256, %v229, 0
    %v264 = vsel %vm256, %v230, 0
    %v267 = vsel %vm256, %v231, 0
    %v270 = vsel %vm256, %v232, 0
    %v273 = vsel %vm256, %v233, 0
    %v276 = vsel %vm256, %v234, 0
    %v279 = vsel %vm256, %v235, 0
    %v282 = vsel %vm256, %v236, 0
    %v285 = vsel %vm256, %v237, 0
    %v288 = vsel %vm256, %v238, 0
    %v291 = vsel %vm256, %v239, 0
    %v294 = vsel %vm256, %v240, 0
    %v297 = vsel %vm256, %v241, 0
    %v300 = vsel %vm256, %v242, 0
    %v303 = vsel %vm256, %v243, 0
    %305 = vmatprep.subr.bf16.mxu0 0
    %306 = vmatpush1.bf16.msra.mxu0 %v252
    %307 = vmatprep.subr.bf16.mxu0 0
    %308 = vmatpush1.bf16.msra.mxu0 %v253
    %309 = vmatprep.subr.bf16.mxu0 0
    %310 = vmatpush1.bf16.msra.mxu0 0
    %311 = vmatprep.subr.bf16.mxu0 0
    %312 = vmatpush1.bf16.msra.mxu0 0
    %313 = vmatprep.subr.bf16.mxu0 0
    %314 = vmatpush1.bf16.msra.mxu0 0
    %315 = vmatprep.subr.bf16.mxu0 0
    %316 = vmatpush1.bf16.msra.mxu0 0
    %317 = vmatprep.subr.bf16.mxu0 0
    %318 = vmatpush1.bf16.msra.mxu0 0
    %319 = vmatprep.subr.bf16.mxu0 0
    %320 = vmatpush1.bf16.msra.mxu0 0
    %321 = vmatprep.subr.bf16.mxu0 0
    %322 = vmatpush1.bf16.msra.mxu0 0
    %323 = vmatprep.subr.bf16.mxu0 0
    %324 = vmatpush1.bf16.msra.mxu0 0
    %325 = vmatprep.subr.bf16.mxu0 0
    %326 = vmatpush1.bf16.msra.mxu0 0
    %327 = vmatprep.subr.bf16.mxu0 0
    %328 = vmatpush1.bf16.msra.mxu0 0
    %329 = vmatprep.subr.bf16.mxu0 0
    %330 = vmatpush1.bf16.msra.mxu0 0
    %331 = vmatprep.subr.bf16.mxu0 0
    %332 = vmatpush1.bf16.msra.mxu0 0
    %333 = vmatprep.subr.bf16.mxu0 0
    %334 = vmatpush1.bf16.msra.mxu0 0
    %335 = vmatprep.subr.bf16.mxu0 0
    %336 = vmatpush1.bf16.msra.mxu0 0
    %337 = vmatprep.mubr.bf16.mxu0 0
    %338 = vmatmul.mubr.bf16.gmra.mrb[0].mxu0 %v258
    %v339 = vpop.f32.mrb[0].mxu0
    %v340 = vadd.f32 0.0, %v339
    %v341 = vpop.f32.mrb[0].mxu0
    %v342 = vpop.f32.mrb[0].mxu0
    %v343 = vadd.f32 0.0, %v342
    %v344 = vpop.f32.mrb[0].mxu0
    %345 = vmatprep.mubr.bf16.mxu0 0
    %346 = vmatmul.mubr.bf16.gmra.mrb[0].mxu0 %v261
    %v347 = vpop.f32.mrb[0].mxu0
    %v348 = vadd.f32 0.0, %v347
    %v349 = vpop.f32.mrb[0].mxu0
    %v350 = vpop.f32.mrb[0].mxu0
    %v351 = vadd.f32 0.0, %v350
    %v352 = vpop.f32.mrb[0].mxu0
    %353 = vmatprep.mubr.bf16.mxu0 0
    %354 = vmatmul.mubr.bf16.gmra.mrb[0].mxu0 %v264
    %v355 = vpop.f32.mrb[0].mxu0
    %v356 = vadd.f32 0.0, %v355
    %v357 = vpop.f32.mrb[0].mxu0
    %v358 = vpop.f32.mrb[0].mxu0
    %v359 = vadd.f32 0.0, %v358
    %v360 = vpop.f32.mrb[0].mxu0
    %361 = vmatprep.mubr.bf16.mxu0 0
    %362 = vmatmul.mubr.bf16.gmra.mrb[0].mxu0 %v267
    %v363 = vpop.f32.mrb[0].mxu0
    %v364 = vadd.f32 0.0, %v363
    %v365 = vpop.f32.mrb[0].mxu0
    %v366 = vpop.f32.mrb[0].mxu0
    %v367 = vadd.f32 0.0, %v366
    %v368 = vpop.f32.mrb[0].mxu0
    %369 = vmatprep.mubr.bf16.mxu0 0
    %370 = vmatmul.mubr.bf16.gmra.mrb[0].mxu0 %v270
    %v371 = vpop.f32.mrb[0].mxu0
    %v372 = vadd.f32 0.0, %v371
    %v373 = vpop.f32.mrb[0].mxu0
    %v374 = vpop.f32.mrb[0].mxu0
    %v375 = vadd.f32 0.0, %v374
    %v376 = vpop.f32.mrb[0].mxu0
    %377 = vmatprep.mubr.bf16.mxu0 0
    %378 = vmatmul.mubr.bf16.gmra.mrb[0].mxu0 %v273
    %v379 = vpop.f32.mrb[0].mxu0
    %v380 = vadd.f32 0.0, %v379
    %v381 = vpop.f32.mrb[0].mxu0
    %v382 = vpop.f32.mrb[0].mxu0
    %v383 = vadd.f32 0.0, %v382
    %v384 = vpop.f32.mrb[0].mxu0
    %385 = vmatprep.mubr.bf16.mxu0 0
    %386 = vmatmul.mubr.bf16.gmra.mrb[0].mxu0 %v276
    %v387 = vpop.f32.mrb[0].mxu0
    %v388 = vadd.f32 0.0, %v387
    %v389 = vpop.f32.mrb[0].mxu0
    %v390 = vpop.f32.mrb[0].mxu0
    %v391 = vadd.f32 0.0, %v390
    %v392 = vpop.f32.mrb[0].mxu0
    %393 = vmatprep.mubr.bf16.mxu0 0
    %394 = vmatmul.mubr.bf16.gmra.mrb[0].mxu0 %v279
    %v395 = vpop.f32.mrb[0].mxu0
    %v396 = vadd.f32 0.0, %v395
    %v397 = vpop.f32.mrb[0].mxu0
    %v398 = vpop.f32.mrb[0].mxu0
    %v399 = vadd.f32 0.0, %v398
    %v400 = vpop.f32.mrb[0].mxu0
    %401 = vmatprep.mubr.bf16.mxu0 0
    %402 = vmatmul.mubr.bf16.gmra.mrb[0].mxu0 %v282
    %v403 = vpop.f32.mrb[0].mxu0
    %v404 = vadd.f32 0.0, %v403
    %v405 = vpop.f32.mrb[0].mxu0
    %v406 = vpop.f32.mrb[0].mxu0
    %v407 = vadd.f32 0.0, %v406
    %v408 = vpop.f32.mrb[0].mxu0
    %409 = vmatprep.mubr.bf16.mxu0 0
    %410 = vmatmul.mubr.bf16.gmra.mrb[0].mxu0 %v285
    %v411 = vpop.f32.mrb[0].mxu0
    %v412 = vadd.f32 0.0, %v411
    %v413 = vpop.f32.mrb[0].mxu0
    %v414 = vpop.f32.mrb[0].mxu0
    %v415 = vadd.f32 0.0, %v414
    %v416 = vpop.f32.mrb[0].mxu0
    %417 = vmatprep.mubr.bf16.mxu0 0
    %418 = vmatmul.mubr.bf16.gmra.mrb[0].mxu0 %v288
    %v419 = vpop.f32.mrb[0].mxu0
    %v420 = vadd.f32 0.0, %v419
    %v421 = vpop.f32.mrb[0].mxu0
    %v422 = vpop.f32.mrb[0].mxu0
    %v423 = vadd.f32 0.0, %v422
    %v424 = vpop.f32.mrb[0].mxu0
    %425 = vmatprep.mubr.bf16.mxu0 0
    %426 = vmatmul.mubr.bf16.gmra.mrb[0].mxu0 %v291
    %v427 = vpop.f32.mrb[0].mxu0
    %v428 = vadd.f32 0.0, %v427
    %v429 = vpop.f32.mrb[0].mxu0
    %v430 = vpop.f32.mrb[0].mxu0
    %v431 = vadd.f32 0.0, %v430
    %v432 = vpop.f32.mrb[0].mxu0
    %433 = vmatprep.mubr.bf16.mxu0 0
    %434 = vmatmul.mubr.bf16.gmra.mrb[0].mxu0 %v294
    %v435 = vpop.f32.mrb[0].mxu0
    %v436 = vadd.f32 0.0, %v435
    %v437 = vpop.f32.mrb[0].mxu0
    %v438 = vpop.f32.mrb[0].mxu0
    %v439 = vadd.f32 0.0, %v438
    %v440 = vpop.f32.mrb[0].mxu0
    %441 = vmatprep.mubr.bf16.mxu0 0
    %442 = vmatmul.mubr.bf16.gmra.mrb[0].mxu0 %v297
    %v443 = vpop.f32.mrb[0].mxu0
    %v444 = vadd.f32 0.0, %v443
    %v445 = vpop.f32.mrb[0].mxu0
    %v446 = vpop.f32.mrb[0].mxu0
    %v447 = vadd.f32 0.0, %v446
    %v448 = vpop.f32.mrb[0].mxu0
    %449 = vmatprep.mubr.bf16.mxu0 0
    %450 = vmatmul.mubr.bf16.gmra.mrb[0].mxu0 %v300
    %v451 = vpop.f32.mrb[0].mxu0
    %v452 = vadd.f32 0.0, %v451
    %v453 = vpop.f32.mrb[0].mxu0
    %v454 = vpop.f32.mrb[0].mxu0
    %v455 = vadd.f32 0.0, %v454
    %v456 = vpop.f32.mrb[0].mxu0
    %457 = vmatprep.mubr.bf16.mxu0 0
    %458 = vmatmul.mubr.bf16.gmra.mrb[0].mxu0 %v303
    %v459 = vpop.f32.mrb[0].mxu0
    %v460 = vadd.f32 0.0, %v459
    %v461 = vpop.f32.mrb[0].mxu0
    %v462 = vpop.f32.mrb[0].mxu0
    %v463 = vadd.f32 0.0, %v462
    %v464 = vpop.f32.mrb[0].mxu0
    %465 = vdwg.mxu0
    %v466 = vld [vmem:[%s3] sm:$0x1]
    %v468 = vlaneseq
    %v469 = vshrl.u32 %v468, 7
    %v470 = vsub.s32 0, %v469
    %v471 = vrot.slane %v466, %v470
    %v473 = vadd.f32 %v340, %v471
    %v474 = vadd.f32 %v343, %v471
    %v475 = vadd.f32 %v348, %v471
    %v476 = vadd.f32 %v351, %v471
    %v477 = vadd.f32 %v356, %v471
    %v478 = vadd.f32 %v359, %v471
    %v479 = vadd.f32 %v364, %v471
    %v480 = vadd.f32 %v367, %v471
    %v481 = vadd.f32 %v372, %v471
    %v482 = vadd.f32 %v375, %v471
    %v483 = vadd.f32 %v380, %v471
    %v484 = vadd.f32 %v383, %v471
    %v485 = vadd.f32 %v388, %v471
    %v486 = vadd.f32 %v391, %v471
    %v487 = vadd.f32 %v396, %v471
    %v488 = vadd.f32 %v399, %v471
    %v489 = vadd.f32 %v404, %v471
    %v490 = vadd.f32 %v407, %v471
    %v491 = vadd.f32 %v412, %v471
    %v492 = vadd.f32 %v415, %v471
    %v493 = vadd.f32 %v420, %v471
    %v494 = vadd.f32 %v423, %v471
    %v495 = vadd.f32 %v428, %v471
    %v496 = vadd.f32 %v431, %v471
    %v497 = vadd.f32 %v436, %v471
    %v498 = vadd.f32 %v439, %v471
    %v499 = vadd.f32 %v444, %v471
    %v500 = vadd.f32 %v447, %v471
    %v501 = vadd.f32 %v452, %v471
    %v502 = vadd.f32 %v455, %v471
    %v503 = vadd.f32 %v460, %v471
    %v504 = vadd.f32 %v463, %v471
    %v505 = vld [vmem:[#allocation8] sm:$0xf]
    %v506 = vld [vmem:[#allocation8 + $0x4] sm:$0xf]
    %v507 = vld [vmem:[#allocation8 + $0x8] sm:$0xf]
    %v508 = vld [vmem:[#allocation8 + $0xc] sm:$0xf]
    %v509 = vld [vmem:[%s4] sm:$0xf]
    %v510 = vld [vmem:[%s4 + $0x4] sm:$0xf]
    %v511 = vld [vmem:[%s4 + $0x8] sm:$0xf]
    %v512 = vld [vmem:[%s4 + $0xc] sm:$0xf]
    %v513 = vld [vmem:[#allocation9] sm:$0xf]
    %v514 = vld [vmem:[#allocation9 + $0x4] sm:$0xf]
    %v515 = vld [vmem:[#allocation9 + $0x8] sm:$0xf]
    %v516 = vld [vmem:[#allocation9 + $0xc] sm:$0xf]
    %v517 = vld [vmem:[%s6] sm:$0x1]
    %v519 = vlaneseq
    %v520 = vshrl.u32 %v519, 7
    %v521 = vsub.s32 0, %v520
    %v522 = vrot.slane %v517, %v521
    %v524 = vld [vmem:[#allocation11] sm:$0xff]
    %v525 = vld [vmem:[#allocation11 + $0x8] sm:$0xff]
    %v526 = vld [vmem:[#allocation11 + $0x10] sm:$0xff]
    %v527 = vld [vmem:[#allocation11 + $0x18] sm:$0xff]
    %v528 = vld [vmem:[#allocation12] sm:$0xff]
    %v529 = vld [vmem:[#allocation12 + $0x8] sm:$0xff]
    %v530 = vld [vmem:[#allocation12 + $0x10] sm:$0xff]
    %v531 = vld [vmem:[#allocation12 + $0x18] sm:$0xff]
    %s532 = scalar_lea.vmem [#allocation11], 32
    %v533 = vld [vmem:[%s532] sm:$0xff]
    %v534 = vld [vmem:[%s532 + $0x8] sm:$0xff]
    %v535 = vld [vmem:[%s532 + $0x10] sm:$0xff]
    %v536 = vld [vmem:[%s532 + $0x18] sm:$0xff]
    %s537 = scalar_lea.vmem [#allocation12], 32
    %v538 = vld [vmem:[%s537] sm:$0xff]
    %v539 = vld [vmem:[%s537 + $0x8] sm:$0xff]
    %v540 = vld [vmem:[%s537 + $0x10] sm:$0xff]
    %v541 = vld [vmem:[%s537 + $0x18] sm:$0xff]
    %v542 = vpack.c.bf16 %v534, %v533
    %v543 = vpack.c.bf16 %v536, %v535
    %v548 = vunpack.c.l.b16 %v513
    %v549 = vunpack.c.l.b16 %v514
    %v550 = vunpack.c.l.b16 %v515
    %v551 = vunpack.c.l.b16 %v516
    %v552 = vpack.c.b16 %v549, %v548
    %v553 = vpack.c.b16 %v551, %v550
    %v557 = vsel %vm256, %v542, 0
    %v560 = vsel %vm256, %v543, 0
    %562 = vmatprep.subr.bf16.mxu0 0
    %563 = vmatpush1.bf16.msra.mxu0 %v552
    %564 = vmatprep.subr.bf16.mxu0 0
    %565 = vmatpush1.bf16.msra.mxu0 %v553
    %566 = vmatprep.subr.bf16.mxu0 0
    %567 = vmatpush1.bf16.msra.mxu0 0
    %568 = vmatprep.subr.bf16.mxu0 0
    %569 = vmatpush1.bf16.msra.mxu0 0
    %570 = vmatprep.subr.bf16.mxu0 0
    %571 = vmatpush1.bf16.msra.mxu0 0
    %572 = vmatprep.subr.bf16.mxu0 0
    %573 = vmatpush1.bf16.msra.mxu0 0
    %574 = vmatprep.subr.bf16.mxu0 0
    %575 = vmatpush1.bf16.msra.mxu0 0
    %576 = vmatprep.subr.bf16.mxu0 0
    %577 = vmatpush1.bf16.msra.mxu0 0
    %578 = vmatprep.subr.bf16.mxu0 0
    %579 = vmatpush1.bf16.msra.mxu0 0
    %580 = vmatprep.subr.bf16.mxu0 0
    %581 = vmatpush1.bf16.msra.mxu0 0
    %582 = vmatprep.subr.bf16.mxu0 0
    %583 = vmatpush1.bf16.msra.mxu0 0
    %584 = vmatprep.subr.bf16.mxu0 0
    %585 = vmatpush1.bf16.msra.mxu0 0
    %586 = vmatprep.subr.bf16.mxu0 0
    %587 = vmatpush1.bf16.msra.mxu0 0
    %588 = vmatprep.subr.bf16.mxu0 0
    %589 = vmatpush1.bf16.msra.mxu0 0
    %590 = vmatprep.subr.bf16.mxu0 0
    %591 = vmatpush1.bf16.msra.mxu0 0
    %592 = vmatprep.subr.bf16.mxu0 0
    %593 = vmatpush1.bf16.msra.mxu0 0
    %594 = vmatprep.mubr.bf16.mxu0 0
    %595 = vmatmul.mubr.bf16.gmra.mrb[0].mxu0 %v557
    %v596 = vpop.f32.mrb[0].mxu0
    %v597 = vadd.f32 %v522, %v596
    %v598 = vpop.f32.mrb[0].mxu0
    %v599 = vpop.f32.mrb[0].mxu0
    %v600 = vadd.f32 %v522, %v599
    %v601 = vpop.f32.mrb[0].mxu0
    %602 = vmatprep.mubr.bf16.mxu0 0
    %603 = vmatmul.mubr.bf16.gmra.mrb[0].mxu0 %v560
    %v604 = vpop.f32.mrb[0].mxu0
    %v605 = vadd.f32 %v522, %v604
    %v606 = vpop.f32.mrb[0].mxu0
    %v607 = vpop.f32.mrb[0].mxu0
    %v608 = vadd.f32 %v522, %v607
    %v609 = vpop.f32.mrb[0].mxu0
    %610 = vdwg.mxu0
    %v611 = vpack.c.bf16 %v525, %v524
    %v612 = vpack.c.bf16 %v527, %v526
    %v617 = vunpack.c.l.b16 %v505
    %v618 = vunpack.c.l.b16 %v506
    %v619 = vunpack.c.l.b16 %v507
    %v620 = vunpack.c.l.b16 %v508
    %v621 = vpack.c.b16 %v618, %v617
    %v622 = vpack.c.b16 %v620, %v619
    %v626 = vsel %vm256, %v611, 0
    %v629 = vsel %vm256, %v612, 0
    %631 = vmatprep.subr.bf16.mxu0 0
    %632 = vmatpush1.bf16.msra.mxu0 %v621
    %633 = vmatprep.subr.bf16.mxu0 0
    %634 = vmatpush1.bf16.msra.mxu0 %v622
    %635 = vmatprep.subr.bf16.mxu0 0
    %636 = vmatpush1.bf16.msra.mxu0 0
    %637 = vmatprep.subr.bf16.mxu0 0
    %638 = vmatpush1.bf16.msra.mxu0 0
    %639 = vmatprep.subr.bf16.mxu0 0
    %640 = vmatpush1.bf16.msra.mxu0 0
    %641 = vmatprep.subr.bf16.mxu0 0
    %642 = vmatpush1.bf16.msra.mxu0 0
    %643 = vmatprep.subr.bf16.mxu0 0
    %644 = vmatpush1.bf16.msra.mxu0 0
    %645 = vmatprep.subr.bf16.mxu0 0
    %646 = vmatpush1.bf16.msra.mxu0 0
    %647 = vmatprep.subr.bf16.mxu0 0
    %648 = vmatpush1.bf16.msra.mxu0 0
    %649 = vmatprep.subr.bf16.mxu0 0
    %650 = vmatpush1.bf16.msra.mxu0 0
    %651 = vmatprep.subr.bf16.mxu0 0
    %652 = vmatpush1.bf16.msra.mxu0 0
    %653 = vmatprep.subr.bf16.mxu0 0
    %654 = vmatpush1.bf16.msra.mxu0 0
    %655 = vmatprep.subr.bf16.mxu0 0
    %656 = vmatpush1.bf16.msra.mxu0 0
    %657 = vmatprep.subr.bf16.mxu0 0
    %658 = vmatpush1.bf16.msra.mxu0 0
    %659 = vmatprep.subr.bf16.mxu0 0
    %660 = vmatpush1.bf16.msra.mxu0 0
    %661 = vmatprep.subr.bf16.mxu0 0
    %662 = vmatpush1.bf16.msra.mxu0 0
    %663 = vmatprep.mubr.bf16.mxu0 0
    %664 = vmatmul.mubr.bf16.gmra.mrb[0].mxu0 %v626
    %v665 = vpop.f32.mrb[0].mxu0
    %v666 = vadd.f32 0.0, %v665
    %v667 = vpop.f32.mrb[0].mxu0
    %v668 = vpop.f32.mrb[0].mxu0
    %v669 = vadd.f32 0.0, %v668
    %v670 = vpop.f32.mrb[0].mxu0
    %671 = vmatprep.mubr.bf16.mxu0 0
    %672 = vmatmul.mubr.bf16.gmra.mrb[0].mxu0 %v629
    %v673 = vpop.f32.mrb[0].mxu0
    %v674 = vadd.f32 0.0, %v673
    %v675 = vpop.f32.mrb[0].mxu0
    %v676 = vpop.f32.mrb[0].mxu0
    %v677 = vadd.f32 0.0, %v676
    %v678 = vpop.f32.mrb[0].mxu0
    %679 = vdwg.mxu0
    %v680 = vadd.f32 %v473, %v666
    %v681 = vadd.f32 %v474, %v669
    %v682 = vadd.f32 %v475, %v674
    %v683 = vadd.f32 %v476, %v677
    %v684 = vxor.u32 %v680, 2147483648
    %v685 = vxor.u32 %v681, 2147483648
    %v686 = vxor.u32 %v682, 2147483648
    %v687 = vxor.u32 %v683, 2147483648
    %v688 = vmul.f32 %v684, 1.442695
    %v689 = vpow.pop %v688
    %v690 = vmul.f32 %v685, 1.442695
    %v691 = vpow.pop %v690
    %v692 = vmul.f32 %v686, 1.442695
    %v693 = vpow.pop %v692
    %v694 = vmul.f32 %v687, 1.442695
    %v695 = vpow.pop %v694
    %v696 = vadd.f32 %v689, 1.0
    %v697 = vadd.f32 %v691, 1.0
    %v698 = vadd.f32 %v693, 1.0
    %v699 = vadd.f32 %v695, 1.0
    %v700 = vrcp.pop %v696
    %v701 = vmul.f32 1.0, %v700
    %v702 = vrcp.pop %v697
    %v703 = vmul.f32 1.0, %v702
    %v704 = vrcp.pop %v698
    %v705 = vmul.f32 1.0, %v704
    %v706 = vrcp.pop %v699
    %v707 = vmul.f32 1.0, %v706
    %v708 = vtanh.pop %v680
    %v709 = vtanh.pop %v681
    %v710 = vtanh.pop %v682
    %v711 = vtanh.pop %v683
    %716 = vrot.lane.b32.xlu0 %v528, 32
    %v717 = vpop.permute.xlu0 %716
    %718 = vrot.lane.b32.xlu0 %v529, 32
    %v719 = vpop.permute.xlu0 %718
    %720 = vrot.lane.b32.xlu0 %v530, 32
    %v721 = vpop.permute.xlu0 %720
    %722 = vrot.lane.b32.xlu0 %v531, 32
    %v723 = vpop.permute.xlu0 %722
    %v728 = vmul.f32 %v701, %v717
    %v729 = vmul.f32 %v703, %v719
    %v730 = vmul.f32 %v705, %v721
    %v731 = vmul.f32 %v707, %v723
    %736 = vrot.lane.b32.xlu0 %v708, 64
    %v737 = vpop.permute.xlu0 %736
    %738 = vrot.lane.b32.xlu0 %v709, 64
    %v739 = vpop.permute.xlu0 %738
    %740 = vrot.lane.b32.xlu0 %v710, 64
    %v741 = vpop.permute.xlu0 %740
    %742 = vrot.lane.b32.xlu0 %v711, 64
    %v743 = vpop.permute.xlu0 %742
    %v748 = vmul.f32 %v701, %v737
    %v749 = vmul.f32 %v703, %v739
    %v750 = vmul.f32 %v705, %v741
    %v751 = vmul.f32 %v707, %v743
    %756 = vrot.lane.b32.xlu0 %v748, 32
    %v757 = vpop.permute.xlu0 %756
    %758 = vrot.lane.b32.xlu0 %v749, 32
    %v759 = vpop.permute.xlu0 %758
    %760 = vrot.lane.b32.xlu0 %v750, 32
    %v761 = vpop.permute.xlu0 %760
    %762 = vrot.lane.b32.xlu0 %v751, 32
    %v763 = vpop.permute.xlu0 %762
    %v768 = vadd.f32 %v728, %v757
    %v769 = vadd.f32 %v729, %v759
    %v770 = vadd.f32 %v730, %v761
    %v771 = vadd.f32 %v731, %v763
    %v772 = vtanh.pop %v768
    %v773 = vtanh.pop %v769
    %v774 = vtanh.pop %v770
    %v775 = vtanh.pop %v771
    %780 = vrot.lane.b32.xlu0 %v772, 64
    %v781 = vpop.permute.xlu0 %780
    %782 = vrot.lane.b32.xlu0 %v773, 64
    %v783 = vpop.permute.xlu0 %782
    %784 = vrot.lane.b32.xlu0 %v774, 64
    %v785 = vpop.permute.xlu0 %784
    %786 = vrot.lane.b32.xlu0 %v775, 64
    %v787 = vpop.permute.xlu0 %786
    %v792 = vmul.f32 %v701, %v781
    %v793 = vmul.f32 %v703, %v783
    %v794 = vmul.f32 %v705, %v785
    %v795 = vmul.f32 %v707, %v787
    %v796 = vpack.c.bf16 %v793, %v792
    %v797 = vpack.c.bf16 %v795, %v794
    %800 = vrot.lane.b32.xlu0 %v796, 32
    %v801 = vpop.permute.xlu0 %800
    %802 = vrot.lane.b32.xlu0 %v797, 32
    %v803 = vpop.permute.xlu0 %802
    %v808 = vunpack.c.l.b16 %v509
    %v809 = vunpack.c.l.b16 %v510
    %v810 = vunpack.c.l.b16 %v511
    %v811 = vunpack.c.l.b16 %v512
    %v812 = vpack.c.b16 %v809, %v808
    %v813 = vpack.c.b16 %v811, %v810
    %v817 = vsel %vm256, %v801, 0
    %v820 = vsel %vm256, %v803, 0
    %822 = vmatprep.subr.bf16.mxu0 0
    %823 = vmatpush1.bf16.msra.mxu0 %v812
    %824 = vmatprep.subr.bf16.mxu0 0
    %825 = vmatpush1.bf16.msra.mxu0 %v813
    %826 = vmatprep.subr.bf16.mxu0 0
    %827 = vmatpush1.bf16.msra.mxu0 0
    %828 = vmatprep.subr.bf16.mxu0 0
    %829 = vmatpush1.bf16.msra.mxu0 0
    %830 = vmatprep.subr.bf16.mxu0 0
    %831 = vmatpush1.bf16.msra.mxu0 0
    %832 = vmatprep.subr.bf16.mxu0 0
    %833 = vmatpush1.bf16.msra.mxu0 0
    %834 = vmatprep.subr.bf16.mxu0 0
    %835 = vmatpush1.bf16.msra.mxu0 0
    %836 = vmatprep.subr.bf16.mxu0 0
    %837 = vmatpush1.bf16.msra.mxu0 0
    %838 = vmatprep.subr.bf16.mxu0 0
    %839 = vmatpush1.bf16.msra.mxu0 0
    %840 = vmatprep.subr.bf16.mxu0 0
    %841 = vmatpush1.bf16.msra.mxu0 0
    %842 = vmatprep.subr.bf16.mxu0 0
    %843 = vmatpush1.bf16.msra.mxu0 0
    %844 = vmatprep.subr.bf16.mxu0 0
    %845 = vmatpush1.bf16.msra.mxu0 0
    %846 = vmatprep.subr.bf16.mxu0 0
    %847 = vmatpush1.bf16.msra.mxu0 0
    %848 = vmatprep.subr.bf16.mxu0 0
    %849 = vmatpush1.bf16.msra.mxu0 0
    %850 = vmatprep.subr.bf16.mxu0 0
    %851 = vmatpush1.bf16.msra.mxu0 0
    %852 = vmatprep.subr.bf16.mxu0 0
    %853 = vmatpush1.bf16.msra.mxu0 0
    %854 = vmatprep.mubr.bf16.mxu0 0
    %855 = vmatmul.mubr.bf16.gmra.mrb[0].mxu0 %v817
    %v856 = vpop.f32.mrb[0].mxu0
    %v857 = vadd.f32 %v597, %v856
    %v858 = vpop.f32.mrb[0].mxu0
    %v859 = vpop.f32.mrb[0].mxu0
    %v860 = vadd.f32 %v600, %v859
    %v861 = vpop.f32.mrb[0].mxu0
    %862 = vmatprep.mubr.bf16.mxu0 0
    %863 = vmatmul.mubr.bf16.gmra.mrb[0].mxu0 %v820
    %v864 = vpop.f32.mrb[0].mxu0
    %v865 = vadd.f32 %v605, %v864
    %v866 = vpop.f32.mrb[0].mxu0
    %v867 = vpop.f32.mrb[0].mxu0
    %v868 = vadd.f32 %v608, %v867
    %v869 = vpop.f32.mrb[0].mxu0
    %870 = vdwg.mxu0
    %v871 = vxor.u32 %v857, 2147483648
    %v872 = vxor.u32 %v860, 2147483648
    %v873 = vxor.u32 %v865, 2147483648
    %v874 = vxor.u32 %v868, 2147483648
    %v875 = vmul.f32 %v871, 1.442695
    %v876 = vpow.pop %v875
    %v877 = vmul.f32 %v872, 1.442695
    %v878 = vpow.pop %v877
    %v879 = vmul.f32 %v873, 1.442695
    %v880 = vpow.pop %v879
    %v881 = vmul.f32 %v874, 1.442695
    %v882 = vpow.pop %v881
    %v883 = vadd.f32 %v876, 1.0
    %v884 = vadd.f32 %v878, 1.0
    %v885 = vadd.f32 %v880, 1.0
    %v886 = vadd.f32 %v882, 1.0
    %v887 = vrcp.pop %v883
    %v888 = vmul.f32 1.0, %v887
    %v889 = vrcp.pop %v884
    %v890 = vmul.f32 1.0, %v889
    %v891 = vrcp.pop %v885
    %v892 = vmul.f32 1.0, %v891
    %v893 = vrcp.pop %v886
    %v894 = vmul.f32 1.0, %v893
    %v895 = vtanh.pop %v857
    %v896 = vtanh.pop %v860
    %v897 = vtanh.pop %v865
    %v898 = vtanh.pop %v868
    %903 = vrot.lane.b32.xlu0 %v538, 32
    %v904 = vpop.permute.xlu0 %903
    %905 = vrot.lane.b32.xlu0 %v539, 32
    %v906 = vpop.permute.xlu0 %905
    %907 = vrot.lane.b32.xlu0 %v540, 32
    %v908 = vpop.permute.xlu0 %907
    %909 = vrot.lane.b32.xlu0 %v541, 32
    %v910 = vpop.permute.xlu0 %909
    %v915 = vmul.f32 %v888, %v904
    %v916 = vmul.f32 %v890, %v906
    %v917 = vmul.f32 %v892, %v908
    %v918 = vmul.f32 %v894, %v910
    %923 = vrot.lane.b32.xlu0 %v895, 64
    %v924 = vpop.permute.xlu0 %923
    %925 = vrot.lane.b32.xlu0 %v896, 64
    %v926 = vpop.permute.xlu0 %925
    %927 = vrot.lane.b32.xlu0 %v897, 64
    %v928 = vpop.permute.xlu0 %927
    %929 = vrot.lane.b32.xlu0 %v898, 64
    %v930 = vpop.permute.xlu0 %929
    %v935 = vmul.f32 %v888, %v924
    %v936 = vmul.f32 %v890, %v926
    %v937 = vmul.f32 %v892, %v928
    %v938 = vmul.f32 %v894, %v930
    %943 = vrot.lane.b32.xlu0 %v935, 32
    %v944 = vpop.permute.xlu0 %943
    %945 = vrot.lane.b32.xlu0 %v936, 32
    %v946 = vpop.permute.xlu0 %945
    %947 = vrot.lane.b32.xlu0 %v937, 32
    %v948 = vpop.permute.xlu0 %947
    %949 = vrot.lane.b32.xlu0 %v938, 32
    %v950 = vpop.permute.xlu0 %949
    %v955 = vadd.f32 %v915, %v944
    %v956 = vadd.f32 %v916, %v946
    %v957 = vadd.f32 %v917, %v948
    %v958 = vadd.f32 %v918, %v950
    %v959 = vtanh.pop %v955
    %v960 = vtanh.pop %v956
    %v961 = vtanh.pop %v957
    %v962 = vtanh.pop %v958
    %967 = vrot.lane.b32.xlu0 %v959, 64
    %v968 = vpop.permute.xlu0 %967
    %969 = vrot.lane.b32.xlu0 %v960, 64
    %v970 = vpop.permute.xlu0 %969
    %971 = vrot.lane.b32.xlu0 %v961, 64
    %v972 = vpop.permute.xlu0 %971
    %973 = vrot.lane.b32.xlu0 %v962, 64
    %v974 = vpop.permute.xlu0 %973
    %v979 = vmul.f32 %v888, %v968
    %v980 = vmul.f32 %v890, %v970
    %v981 = vmul.f32 %v892, %v972
    %v982 = vmul.f32 %v894, %v974
    %v983 = vpack.c.bf16 %v980, %v979
    %v984 = vpack.c.bf16 %v982, %v981
    %987 = vrot.lane.b32.xlu0 %v983, 32
    %v988 = vpop.permute.xlu0 %987
    %989 = vrot.lane.b32.xlu0 %v984, 32
    %v990 = vpop.permute.xlu0 %989
    %v992 = vsel %vm256, %v988, 0
    %v995 = vsel %vm256, %v990, 0
    %997 = vmatprep.subr.bf16.mxu0 0
    %998 = vmatpush1.bf16.msra.mxu0 %v552
    %999 = vmatprep.subr.bf16.mxu0 0
    %1000 = vmatpush1.bf16.msra.mxu0 %v553
    %1001 = vmatprep.subr.bf16.mxu0 0
    %1002 = vmatpush1.bf16.msra.mxu0 0
    %1003 = vmatprep.subr.bf16.mxu0 0
    %1004 = vmatpush1.bf16.msra.mxu0 0
    %1005 = vmatprep.subr.bf16.mxu0 0
    %1006 = vmatpush1.bf16.msra.mxu0 0
    %1007 = vmatprep.subr.bf16.mxu0 0
    %1008 = vmatpush1.bf16.msra.mxu0 0
    %1009 = vmatprep.subr.bf16.mxu0 0
    %1010 = vmatpush1.bf16.msra.mxu0 0
    %1011 = vmatprep.subr.bf16.mxu0 0
    %1012 = vmatpush1.bf16.msra.mxu0 0
    %1013 = vmatprep.subr.bf16.mxu0 0
    %1014 = vmatpush1.bf16.msra.mxu0 0
    %1015 = vmatprep.subr.bf16.mxu0 0
    %1016 = vmatpush1.bf16.msra.mxu0 0
    %1017 = vmatprep.subr.bf16.mxu0 0
    %1018 = vmatpush1.bf16.msra.mxu0 0
    %1019 = vmatprep.subr.bf16.mxu0 0
    %1020 = vmatpush1.bf16.msra.mxu0 0
    %1021 = vmatprep.subr.bf16.mxu0 0
    %1022 = vmatpush1.bf16.msra.mxu0 0
    %1023 = vmatprep.subr.bf16.mxu0 0
    %1024 = vmatpush1.bf16.msra.mxu0 0
    %1025 = vmatprep.subr.bf16.mxu0 0
    %1026 = vmatpush1.bf16.msra.mxu0 0
    %1027 = vmatprep.subr.bf16.mxu0 0
    %1028 = vmatpush1.bf16.msra.mxu0 0
    %1029 = vmatprep.mubr.bf16.mxu0 0
    %1030 = vmatmul.mubr.bf16.gmra.mrb[0].mxu0 %v992
    %v1031 = vpop.f32.mrb[0].mxu0
    %v1032 = vadd.f32 %v522, %v1031
    %v1033 = vpop.f32.mrb[0].mxu0
    %v1034 = vpop.f32.mrb[0].mxu0
    %v1035 = vadd.f32 %v522, %v1034
    %v1036 = vpop.f32.mrb[0].mxu0
    %1037 = vmatprep.mubr.bf16.mxu0 0
    %1038 = vmatmul.mubr.bf16.gmra.mrb[0].mxu0 %v995
    %v1039 = vpop.f32.mrb[0].mxu0
    %v1040 = vadd.f32 %v522, %v1039
    %v1041 = vpop.f32.mrb[0].mxu0
    %v1042 = vpop.f32.mrb[0].mxu0
    %v1043 = vadd.f32 %v522, %v1042
    %v1044 = vpop.f32.mrb[0].mxu0
    %1045 = vdwg.mxu0
    %1046 = vmatprep.subr.bf16.mxu0 0
    %1047 = vmatpush1.bf16.msra.mxu0 %v621
    %1048 = vmatprep.subr.bf16.mxu0 0
    %1049 = vmatpush1.bf16.msra.mxu0 %v622
    %1050 = vmatprep.subr.bf16.mxu0 0
    %1051 = vmatpush1.bf16.msra.mxu0 0
    %1052 = vmatprep.subr.bf16.mxu0 0
    %1053 = vmatpush1.bf16.msra.mxu0 0
    %1054 = vmatprep.subr.bf16.mxu0 0
    %1055 = vmatpush1.bf16.msra.mxu0 0
    %1056 = vmatprep.subr.bf16.mxu0 0
    %1057 = vmatpush1.bf16.msra.mxu0 0
    %1058 = vmatprep.subr.bf16.mxu0 0
    %1059 = vmatpush1.bf16.msra.mxu0 0
    %1060 = vmatprep.subr.bf16.mxu0 0
    %1061 = vmatpush1.bf16.msra.mxu0 0
    %1062 = vmatprep.subr.bf16.mxu0 0
    %1063 = vmatpush1.bf16.msra.mxu0 0
    %1064 = vmatprep.subr.bf16.mxu0 0
    %1065 = vmatpush1.bf16.msra.mxu0 0
    %1066 = vmatprep.subr.bf16.mxu0 0
    %1067 = vmatpush1.bf16.msra.mxu0 0
    %1068 = vmatprep.subr.bf16.mxu0 0
    %1069 = vmatpush1.bf16.msra.mxu0 0
    %1070 = vmatprep.subr.bf16.mxu0 0
    %1071 = vmatpush1.bf16.msra.mxu0 0
    %1072 = vmatprep.subr.bf16.mxu0 0
    %1073 = vmatpush1.bf16.msra.mxu0 0
    %1074 = vmatprep.subr.bf16.mxu0 0
    %1075 = vmatpush1.bf16.msra.mxu0 0
    %1076 = vmatprep.subr.bf16.mxu0 0
    %1077 = vmatpush1.bf16.msra.mxu0 0
    %1078 = vmatprep.mubr.bf16.mxu0 0
    %1079 = vmatmul.mubr.bf16.gmra.mrb[0].mxu0 %v817
    %v1080 = vpop.f32.mrb[0].mxu0
    %v1081 = vadd.f32 0.0, %v1080
    %v1082 = vpop.f32.mrb[0].mxu0
    %v1083 = vpop.f32.mrb[0].mxu0
    %v1084 = vadd.f32 0.0, %v1083
    %v1085 = vpop.f32.mrb[0].mxu0
    %1086 = vmatprep.mubr.bf16.mxu0 0
    %1087 = vmatmul.mubr.bf16.gmra.mrb[0].mxu0 %v820
    %v1088 = vpop.f32.mrb[0].mxu0
    %v1089 = vadd.f32 0.0, %v1088
    %v1090 = vpop.f32.mrb[0].mxu0
    %v1091 = vpop.f32.mrb[0].mxu0
    %v1092 = vadd.f32 0.0, %v1091
    %v1093 = vpop.f32.mrb[0].mxu0
    %1094 = vdwg.mxu0
    %v1095 = vadd.f32 %v477, %v1081
    %v1096 = vadd.f32 %v478, %v1084
    %v1097 = vadd.f32 %v479, %v1089
    %v1098 = vadd.f32 %v480, %v1092
    %v1099 = vxor.u32 %v1095, 2147483648
    %v1100 = vxor.u32 %v1096, 2147483648
    %v1101 = vxor.u32 %v1097, 2147483648
    %v1102 = vxor.u32 %v1098, 2147483648
    %v1103 = vmul.f32 %v1099, 1.442695
    %v1104 = vpow.pop %v1103
    %v1105 = vmul.f32 %v1100, 1.442695
    %v1106 = vpow.pop %v1105
    %v1107 = vmul.f32 %v1101, 1.442695
    %v1108 = vpow.pop %v1107
    %v1109 = vmul.f32 %v1102, 1.442695
    %v1110 = vpow.pop %v1109
    %v1111 = vadd.f32 %v1104, 1.0
    %v1112 = vadd.f32 %v1106, 1.0
    %v1113 = vadd.f32 %v1108, 1.0
    %v1114 = vadd.f32 %v1110, 1.0
    %v1115 = vrcp.pop %v1111
    %v1116 = vmul.f32 1.0, %v1115
    %v1117 = vrcp.pop %v1112
    %v1118 = vmul.f32 1.0, %v1117
    %v1119 = vrcp.pop %v1113
    %v1120 = vmul.f32 1.0, %v1119
    %v1121 = vrcp.pop %v1114
    %v1122 = vmul.f32 1.0, %v1121
    %v1123 = vtanh.pop %v1095
    %v1124 = vtanh.pop %v1096
    %v1125 = vtanh.pop %v1097
    %v1126 = vtanh.pop %v1098
    %v1127 = vmul.f32 %v1116, %v768
    %v1128 = vmul.f32 %v1118, %v769
    %v1129 = vmul.f32 %v1120, %v770
    %v1130 = vmul.f32 %v1122, %v771
    %1135 = vrot.lane.b32.xlu0 %v1123, 64
    %v1136 = vpop.permute.xlu0 %1135
    %1137 = vrot.lane.b32.xlu0 %v1124, 64
    %v1138 = vpop.permute.xlu0 %1137
    %1139 = vrot.lane.b32.xlu0 %v1125, 64
    %v1140 = vpop.permute.xlu0 %1139
    %1141 = vrot.lane.b32.xlu0 %v1126, 64
    %v1142 = vpop.permute.xlu0 %1141
    %v1147 = vmul.f32 %v1116, %v1136
    %v1148 = vmul.f32 %v1118, %v1138
    %v1149 = vmul.f32 %v1120, %v1140
    %v1150 = vmul.f32 %v1122, %v1142
    %1155 = vrot.lane.b32.xlu0 %v1147, 32
    %v1156 = vpop.permute.xlu0 %1155
    %1157 = vrot.lane.b32.xlu0 %v1148, 32
    %v1158 = vpop.permute.xlu0 %1157
    %1159 = vrot.lane.b32.xlu0 %v1149, 32
    %v1160 = vpop.permute.xlu0 %1159
    %1161 = vrot.lane.b32.xlu0 %v1150, 32
    %v1162 = vpop.permute.xlu0 %1161
    %v1167 = vadd.f32 %v1127, %v1156
    %v1168 = vadd.f32 %v1128, %v1158
    %v1169 = vadd.f32 %v1129, %v1160
    %v1170 = vadd.f32 %v1130, %v1162
    %v1171 = vtanh.pop %v1167
    %v1172 = vtanh.pop %v1168
    %v1173 = vtanh.pop %v1169
    %v1174 = vtanh.pop %v1170
    %1179 = vrot.lane.b32.xlu0 %v1171, 64
    %v1180 = vpop.permute.xlu0 %1179
    %1181 = vrot.lane.b32.xlu0 %v1172, 64
    %v1182 = vpop.permute.xlu0 %1181
    %1183 = vrot.lane.b32.xlu0 %v1173, 64
    %v1184 = vpop.permute.xlu0 %1183
    %1185 = vrot.lane.b32.xlu0 %v1174, 64
    %v1186 = vpop.permute.xlu0 %1185
    %v1191 = vmul.f32 %v1116, %v1180
    %v1192 = vmul.f32 %v1118, %v1182
    %v1193 = vmul.f32 %v1120, %v1184
    %v1194 = vmul.f32 %v1122, %v1186
    %v1195 = vpack.c.bf16 %v1192, %v1191
    %v1196 = vpack.c.bf16 %v1194, %v1193
    %1199 = vrot.lane.b32.xlu0 %v1195, 32
    %v1200 = vpop.permute.xlu0 %1199
    %1201 = vrot.lane.b32.xlu0 %v1196, 32
    %v1202 = vpop.permute.xlu0 %1201
    %v1204 = vsel %vm256, %v1200, 0
    %v1207 = vsel %vm256, %v1202, 0
    %1209 = vmatprep.subr.bf16.mxu0 0
    %1210 = vmatpush1.bf16.msra.mxu0 %v812
    %1211 = vmatprep.subr.bf16.mxu0 0
    %1212 = vmatpush1.bf16.msra.mxu0 %v813
    %1213 = vmatprep.subr.bf16.mxu0 0
    %1214 = vmatpush1.bf16.msra.mxu0 0
    %1215 = vmatprep.subr.bf16.mxu0 0
    %1216 = vmatpush1.bf16.msra.mxu0 0
    %1217 = vmatprep.subr.bf16.mxu0 0
    %1218 = vmatpush1.bf16.msra.mxu0 0
    %1219 = vmatprep.subr.bf16.mxu0 0
    %1220 = vmatpush1.bf16.msra.mxu0 0
    %1221 = vmatprep.subr.bf16.mxu0 0
    %1222 = vmatpush1.bf16.msra.mxu0 0
    %1223 = vmatprep.subr.bf16.mxu0 0
    %1224 = vmatpush1.bf16.msra.mxu0 0
    %1225 = vmatprep.subr.bf16.mxu0 0
    %1226 = vmatpush1.bf16.msra.mxu0 0
    %1227 = vmatprep.subr.bf16.mxu0 0
    %1228 = vmatpush1.bf16.msra.mxu0 0
    %1229 = vmatprep.subr.bf16.mxu0 0
    %1230 = vmatpush1.bf16.msra.mxu0 0
    %1231 = vmatprep.subr.bf16.mxu0 0
    %1232 = vmatpush1.bf16.msra.mxu0 0
    %1233 = vmatprep.subr.bf16.mxu0 0
    %1234 = vmatpush1.bf16.msra.mxu0 0
    %1235 = vmatprep.subr.bf16.mxu0 0
    %1236 = vmatpush1.bf16.msra.mxu0 0
    %1237 = vmatprep.subr.bf16.mxu0 0
    %1238 = vmatpush1.bf16.msra.mxu0 0
    %1239 = vmatprep.subr.bf16.mxu0 0
    %1240 = vmatpush1.bf16.msra.mxu0 0
    %1241 = vmatprep.mubr.bf16.mxu0 0
    %1242 = vmatmul.mubr.bf16.gmra.mrb[0].mxu0 %v1204
    %v1243 = vpop.f32.mrb[0].mxu0
    %v1244 = vadd.f32 %v1032, %v1243
    %v1245 = vpop.f32.mrb[0].mxu0
    %v1246 = vpop.f32.mrb[0].mxu0
    %v1247 = vadd.f32 %v1035, %v1246
    %v1248 = vpop.f32.mrb[0].mxu0
    %1249 = vmatprep.mubr.bf16.mxu0 0
    %1250 = vmatmul.mubr.bf16.gmra.mrb[0].mxu0 %v1207
    %v1251 = vpop.f32.mrb[0].mxu0
    %v1252 = vadd.f32 %v1040, %v1251
    %v1253 = vpop.f32.mrb[0].mxu0
    %v1254 = vpop.f32.mrb[0].mxu0
    %v1255 = vadd.f32 %v1043, %v1254
    %v1256 = vpop.f32.mrb[0].mxu0
    %1257 = vdwg.mxu0
    %v1258 = vxor.u32 %v1244, 2147483648
    %v1259 = vxor.u32 %v1247, 2147483648
    %v1260 = vxor.u32 %v1252, 2147483648
    %v1261 = vxor.u32 %v1255, 2147483648
    %v1262 = vmul.f32 %v1258, 1.442695
    %v1263 = vpow.pop %v1262
    %v1264 = vmul.f32 %v1259, 1.442695
    %v1265 = vpow.pop %v1264
    %v1266 = vmul.f32 %v1260, 1.442695
    %v1267 = vpow.pop %v1266
    %v1268 = vmul.f32 %v1261, 1.442695
    %v1269 = vpow.pop %v1268
    %v1270 = vadd.f32 %v1263, 1.0
    %v1271 = vadd.f32 %v1265, 1.0
    %v1272 = vadd.f32 %v1267, 1.0
    %v1273 = vadd.f32 %v1269, 1.0
    %v1274 = vrcp.pop %v1270
    %v1275 = vmul.f32 1.0, %v1274
    %v1276 = vrcp.pop %v1271
    %v1277 = vmul.f32 1.0, %v1276
    %v1278 = vrcp.pop %v1272
    %v1279 = vmul.f32 1.0, %v1278
    %v1280 = vrcp.pop %v1273
    %v1281 = vmul.f32 1.0, %v1280
    %v1282 = vtanh.pop %v1244
    %v1283 = vtanh.pop %v1247
    %v1284 = vtanh.pop %v1252
    %v1285 = vtanh.pop %v1255
    %v1286 = vmul.f32 %v1275, %v955
    %v1287 = vmul.f32 %v1277, %v956
    %v1288 = vmul.f32 %v1279, %v957
    %v1289 = vmul.f32 %v1281, %v958
    %1294 = vrot.lane.b32.xlu0 %v1282, 64
    %v1295 = vpop.permute.xlu0 %1294
    %1296 = vrot.lane.b32.xlu0 %v1283, 64
    %v1297 = vpop.permute.xlu0 %1296
    %1298 = vrot.lane.b32.xlu0 %v1284, 64
    %v1299 = vpop.permute.xlu0 %1298
    %1300 = vrot.lane.b32.xlu0 %v1285, 64
    %v1301 = vpop.permute.xlu0 %1300
    %v1306 = vmul.f32 %v1275, %v1295
    %v1307 = vmul.f32 %v1277, %v1297
    %v1308 = vmul.f32 %v1279, %v1299
    %v1309 = vmul.f32 %v1281, %v1301
    %1314 = vrot.lane.b32.xlu0 %v1306, 32
    %v1315 = vpop.permute.xlu0 %1314
    %1316 = vrot.lane.b32.xlu0 %v1307, 32
    %v1317 = vpop.permute.xlu0 %1316
    %1318 = vrot.lane.b32.xlu0 %v1308, 32
    %v1319 = vpop.permute.xlu0 %1318
    %1320 = vrot.lane.b32.xlu0 %v1309, 32
    %v1321 = vpop.permute.xlu0 %1320
    %v1326 = vadd.f32 %v1286, %v1315
    %v1327 = vadd.f32 %v1287, %v1317
    %v1328 = vadd.f32 %v1288, %v1319
    %v1329 = vadd.f32 %v1289, %v1321
    %v1330 = vtanh.pop %v1326
    %v1331 = vtanh.pop %v1327
    %v1332 = vtanh.pop %v1328
    %v1333 = vtanh.pop %v1329
    %1338 = vrot.lane.b32.xlu0 %v1330, 64
    %v1339 = vpop.permute.xlu0 %1338
    %1340 = vrot.lane.b32.xlu0 %v1331, 64
    %v1341 = vpop.permute.xlu0 %1340
    %1342 = vrot.lane.b32.xlu0 %v1332, 64
    %v1343 = vpop.permute.xlu0 %1342
    %1344 = vrot.lane.b32.xlu0 %v1333, 64
    %v1345 = vpop.permute.xlu0 %1344
    %v1350 = vmul.f32 %v1275, %v1339
    %v1351 = vmul.f32 %v1277, %v1341
    %v1352 = vmul.f32 %v1279, %v1343
    %v1353 = vmul.f32 %v1281, %v1345
    %v1354 = vpack.c.bf16 %v1351, %v1350
    %v1355 = vpack.c.bf16 %v1353, %v1352
    %1358 = vrot.lane.b32.xlu0 %v1354, 32
    %v1359 = vpop.permute.xlu0 %1358
    %1360 = vrot.lane.b32.xlu0 %v1355, 32
    %v1361 = vpop.permute.xlu0 %1360
    %v1363 = vsel %vm256, %v1359, 0
    %v1366 = vsel %vm256, %v1361, 0
    %1368 = vmatprep.subr.bf16.mxu0 0
    %1369 = vmatpush1.bf16.msra.mxu0 %v552
    %1370 = vmatprep.subr.bf16.mxu0 0
    %1371 = vmatpush1.bf16.msra.mxu0 %v553
    %1372 = vmatprep.subr.bf16.mxu0 0
    %1373 = vmatpush1.bf16.msra.mxu0 0
    %1374 = vmatprep.subr.bf16.mxu0 0
    %1375 = vmatpush1.bf16.msra.mxu0 0
    %1376 = vmatprep.subr.bf16.mxu0 0
    %1377 = vmatpush1.bf16.msra.mxu0 0
    %1378 = vmatprep.subr.bf16.mxu0 0
    %1379 = vmatpush1.bf16.msra.mxu0 0
    %1380 = vmatprep.subr.bf16.mxu0 0
    %1381 = vmatpush1.bf16.msra.mxu0 0
    %1382 = vmatprep.subr.bf16.mxu0 0
    %1383 = vmatpush1.bf16.msra.mxu0 0
    %1384 = vmatprep.subr.bf16.mxu0 0
    %1385 = vmatpush1.bf16.msra.mxu0 0
    %1386 = vmatprep.subr.bf16.mxu0 0
    %1387 = vmatpush1.bf16.msra.mxu0 0
    %1388 = vmatprep.subr.bf16.mxu0 0
    %1389 = vmatpush1.bf16.msra.mxu0 0
    %1390 = vmatprep.subr.bf16.mxu0 0
    %1391 = vmatpush1.bf16.msra.mxu0 0
    %1392 = vmatprep.subr.bf16.mxu0 0
    %1393 = vmatpush1.bf16.msra.mxu0 0
    %1394 = vmatprep.subr.bf16.mxu0 0
    %1395 = vmatpush1.bf16.msra.mxu0 0
    %1396 = vmatprep.subr.bf16.mxu0 0
    %1397 = vmatpush1.bf16.msra.mxu0 0
    %1398 = vmatprep.subr.bf16.mxu0 0
    %1399 = vmatpush1.bf16.msra.mxu0 0
    %1400 = vmatprep.mubr.bf16.mxu0 0
    %1401 = vmatmul.mubr.bf16.gmra.mrb[0].mxu0 %v1363
    %v1402 = vpop.f32.mrb[0].mxu0
    %v1403 = vadd.f32 %v522, %v1402
    %v1404 = vpop.f32.mrb[0].mxu0
    %v1405 = vpop.f32.mrb[0].mxu0
    %v1406 = vadd.f32 %v522, %v1405
    %v1407 = vpop.f32.mrb[0].mxu0
    %1408 = vmatprep.mubr.bf16.mxu0 0
    %1409 = vmatmul.mubr.bf16.gmra.mrb[0].mxu0 %v1366
    %v1410 = vpop.f32.mrb[0].mxu0
    %v1411 = vadd.f32 %v522, %v1410
    %v1412 = vpop.f32.mrb[0].mxu0
    %v1413 = vpop.f32.mrb[0].mxu0
    %v1414 = vadd.f32 %v522, %v1413
    %v1415 = vpop.f32.mrb[0].mxu0
    %1416 = vdwg.mxu0
    %1417 = vmatprep.subr.bf16.mxu0 0
    %1418 = vmatpush1.bf16.msra.mxu0 %v621
    %1419 = vmatprep.subr.bf16.mxu0 0
    %1420 = vmatpush1.bf16.msra.mxu0 %v622
    %1421 = vmatprep.subr.bf16.mxu0 0
    %1422 = vmatpush1.bf16.msra.mxu0 0
    %1423 = vmatprep.subr.bf16.mxu0 0
    %1424 = vmatpush1.bf16.msra.mxu0 0
    %1425 = vmatprep.subr.bf16.mxu0 0
    %1426 = vmatpush1.bf16.msra.mxu0 0
    %1427 = vmatprep.subr.bf16.mxu0 0
    %1428 = vmatpush1.bf16.msra.mxu0 0
    %1429 = vmatprep.subr.bf16.mxu0 0
    %1430 = vmatpush1.bf16.msra.mxu0 0
    %1431 = vmatprep.subr.bf16.mxu0 0
    %1432 = vmatpush1.bf16.msra.mxu0 0
    %1433 = vmatprep.subr.bf16.mxu0 0
    %1434 = vmatpush1.bf16.msra.mxu0 0
    %1435 = vmatprep.subr.bf16.mxu0 0
    %1436 = vmatpush1.bf16.msra.mxu0 0
    %1437 = vmatprep.subr.bf16.mxu0 0
    %1438 = vmatpush1.bf16.msra.mxu0 0
    %1439 = vmatprep.subr.bf16.mxu0 0
    %1440 = vmatpush1.bf16.msra.mxu0 0
    %1441 = vmatprep.subr.bf16.mxu0 0
    %1442 = vmatpush1.bf16.msra.mxu0 0
    %1443 = vmatprep.subr.bf16.mxu0 0
    %1444 = vmatpush1.bf16.msra.mxu0 0
    %1445 = vmatprep.subr.bf16.mxu0 0
    %1446 = vmatpush1.bf16.msra.mxu0 0
    %1447 = vmatprep.subr.bf16.mxu0 0
    %1448 = vmatpush1.bf16.msra.mxu0 0
    %1449 = vmatprep.mubr.bf16.mxu0 0
    %1450 = vmatmul.mubr.bf16.gmra.mrb[0].mxu0 %v1204
    %v1451 = vpop.f32.mrb[0].mxu0
    %v1452 = vadd.f32 0.0, %v1451
    %v1453 = vpop.f32.mrb[0].mxu0
    %v1454 = vpop.f32.mrb[0].mxu0
    %v1455 = vadd.f32 0.0, %v1454
    %v1456 = vpop.f32.mrb[0].mxu0
    %1457 = vmatprep.mubr.bf16.mxu0 0
    %1458 = vmatmul.mubr.bf16.gmra.mrb[0].mxu0 %v1207
    %v1459 = vpop.f32.mrb[0].mxu0
    %v1460 = vadd.f32 0.0, %v1459
    %v1461 = vpop.f32.mrb[0].mxu0
    %v1462 = vpop.f32.mrb[0].mxu0
    %v1463 = vadd.f32 0.0, %v1462
    %v1464 = vpop.f32.mrb[0].mxu0
    %1465 = vdwg.mxu0
    %v1466 = vadd.f32 %v481, %v1452
    %v1467 = vadd.f32 %v482, %v1455
    %v1468 = vadd.f32 %v483, %v1460
    %v1469 = vadd.f32 %v484, %v1463
    %v1470 = vxor.u32 %v1466, 2147483648
    %v1471 = vxor.u32 %v1467, 2147483648
    %v1472 = vxor.u32 %v1468, 2147483648
    %v1473 = vxor.u32 %v1469, 2147483648
    %v1474 = vmul.f32 %v1470, 1.442695
    %v1475 = vpow.pop %v1474
    %v1476 = vmul.f32 %v1471, 1.442695
    %v1477 = vpow.pop %v1476
    %v1478 = vmul.f32 %v1472, 1.442695
    %v1479 = vpow.pop %v1478
    %v1480 = vmul.f32 %v1473, 1.442695
    %v1481 = vpow.pop %v1480
    %v1482 = vadd.f32 %v1475, 1.0
    %v1483 = vadd.f32 %v1477, 1.0
    %v1484 = vadd.f32 %v1479, 1.0
    %v1485 = vadd.f32 %v1481, 1.0
    %v1486 = vrcp.pop %v1482
    %v1487 = vmul.f32 1.0, %v1486
    %v1488 = vrcp.pop %v1483
    %v1489 = vmul.f32 1.0, %v1488
    %v1490 = vrcp.pop %v1484
    %v1491 = vmul.f32 1.0, %v1490
    %v1492 = vrcp.pop %v1485
    %v1493 = vmul.f32 1.0, %v1492
    %v1494 = vtanh.pop %v1466
    %v1495 = vtanh.pop %v1467
    %v1496 = vtanh.pop %v1468
    %v1497 = vtanh.pop %v1469
    %v1498 = vmul.f32 %v1487, %v1167
    %v1499 = vmul.f32 %v1489, %v1168
    %v1500 = vmul.f32 %v1491, %v1169
    %v1501 = vmul.f32 %v1493, %v1170
    %1506 = vrot.lane.b32.xlu0 %v1494, 64
    %v1507 = vpop.permute.xlu0 %1506
    %1508 = vrot.lane.b32.xlu0 %v1495, 64
    %v1509 = vpop.permute.xlu0 %1508
    %1510 = vrot.lane.b32.xlu0 %v1496, 64
    %v1511 = vpop.permute.xlu0 %1510
    %1512 = vrot.lane.b32.xlu0 %v1497, 64
    %v1513 = vpop.permute.xlu0 %1512
    %v1518 = vmul.f32 %v1487, %v1507
    %v1519 = vmul.f32 %v1489, %v1509
    %v1520 = vmul.f32 %v1491, %v1511
    %v1521 = vmul.f32 %v1493, %v1513
    %1526 = vrot.lane.b32.xlu0 %v1518, 32
    %v1527 = vpop.permute.xlu0 %1526
    %1528 = vrot.lane.b32.xlu0 %v1519, 32
    %v1529 = vpop.permute.xlu0 %1528
    %1530 = vrot.lane.b32.xlu0 %v1520, 32
    %v1531 = vpop.permute.xlu0 %1530
    %1532 = vrot.lane.b32.xlu0 %v1521, 32
    %v1533 = vpop.permute.xlu0 %1532
    %v1538 = vadd.f32 %v1498, %v1527
    %v1539 = vadd.f32 %v1499, %v1529
    %v1540 = vadd.f32 %v1500, %v1531
    %v1541 = vadd.f32 %v1501, %v1533
    %v1542 = vtanh.pop %v1538
    %v1543 = vtanh.pop %v1539
    %v1544 = vtanh.pop %v1540
    %v1545 = vtanh.pop %v1541
    %1550 = vrot.lane.b32.xlu0 %v1542, 64
    %v1551 = vpop.permute.xlu0 %1550
    %1552 = vrot.lane.b32.xlu0 %v1543, 64
    %v1553 = vpop.permute.xlu0 %1552
    %1554 = vrot.lane.b32.xlu0 %v1544, 64
    %v1555 = vpop.permute.xlu0 %1554
    %1556 = vrot.lane.b32.xlu0 %v1545, 64
    %v1557 = vpop.permute.xlu0 %1556
    %v1562 = vmul.f32 %v1487, %v1551
    %v1563 = vmul.f32 %v1489, %v1553
    %v1564 = vmul.f32 %v1491, %v1555
    %v1565 = vmul.f32 %v1493, %v1557
    %v1566 = vpack.c.bf16 %v1563, %v1562
    %v1567 = vpack.c.bf16 %v1565, %v1564
    %1570 = vrot.lane.b32.xlu0 %v1566, 32
    %v1571 = vpop.permute.xlu0 %1570
    %1572 = vrot.lane.b32.xlu0 %v1567, 32
    %v1573 = vpop.permute.xlu0 %1572
    %v1575 = vsel %vm256, %v1571, 0
    %v1578 = vsel %vm256, %v1573, 0
    %1580 = vmatprep.subr.bf16.mxu0 0
    %1581 = vmatpush1.bf16.msra.mxu0 %v812
    %1582 = vmatprep.subr.bf16.mxu0 0
    %1583 = vmatpush1.bf16.msra.mxu0 %v813
    %1584 = vmatprep.subr.bf16.mxu0 0
    %1585 = vmatpush1.bf16.msra.mxu0 0
    %1586 = vmatprep.subr.bf16.mxu0 0
    %1587 = vmatpush1.bf16.msra.mxu0 0
    %1588 = vmatprep.subr.bf16.mxu0 0
    %1589 = vmatpush1.bf16.msra.mxu0 0
    %1590 = vmatprep.subr.bf16.mxu0 0
    %1591 = vmatpush1.bf16.msra.mxu0 0
    %1592 = vmatprep.subr.bf16.mxu0 0
    %1593 = vmatpush1.bf16.msra.mxu0 0
    %1594 = vmatprep.subr.bf16.mxu0 0
    %1595 = vmatpush1.bf16.msra.mxu0 0
    %1596 = vmatprep.subr.bf16.mxu0 0
    %1597 = vmatpush1.bf16.msra.mxu0 0
    %1598 = vmatprep.subr.bf16.mxu0 0
    %1599 = vmatpush1.bf16.msra.mxu0 0
    %1600 = vmatprep.subr.bf16.mxu0 0
    %1601 = vmatpush1.bf16.msra.mxu0 0
    %1602 = vmatprep.subr.bf16.mxu0 0
    %1603 = vmatpush1.bf16.msra.mxu0 0
    %1604 = vmatprep.subr.bf16.mxu0 0
    %1605 = vmatpush1.bf16.msra.mxu0 0
    %1606 = vmatprep.subr.bf16.mxu0 0
    %1607 = vmatpush1.bf16.msra.mxu0 0
    %1608 = vmatprep.subr.bf16.mxu0 0
    %1609 = vmatpush1.bf16.msra.mxu0 0
    %1610 = vmatprep.subr.bf16.mxu0 0
    %1611 = vmatpush1.bf16.msra.mxu0 0
    %1612 = vmatprep.mubr.bf16.mxu0 0
    %1613 = vmatmul.mubr.bf16.gmra.mrb[0].mxu0 %v1575
    %v1614 = vpop.f32.mrb[0].mxu0
    %v1615 = vadd.f32 %v1403, %v1614
    %v1616 = vpop.f32.mrb[0].mxu0
    %v1617 = vpop.f32.mrb[0].mxu0
    %v1618 = vadd.f32 %v1406, %v1617
    %v1619 = vpop.f32.mrb[0].mxu0
    %1620 = vmatprep.mubr.bf16.mxu0 0
    %1621 = vmatmul.mubr.bf16.gmra.mrb[0].mxu0 %v1578
    %v1622 = vpop.f32.mrb[0].mxu0
    %v1623 = vadd.f32 %v1411, %v1622
    %v1624 = vpop.f32.mrb[0].mxu0
    %v1625 = vpop.f32.mrb[0].mxu0
    %v1626 = vadd.f32 %v1414, %v1625
    %v1627 = vpop.f32.mrb[0].mxu0
    %1628 = vdwg.mxu0
    %v1629 = vxor.u32 %v1615, 2147483648
    %v1630 = vxor.u32 %v1618, 2147483648
    %v1631 = vxor.u32 %v1623, 2147483648
    %v1632 = vxor.u32 %v1626, 2147483648
    %v1633 = vmul.f32 %v1629, 1.442695
    %v1634 = vpow.pop %v1633
    %v1635 = vmul.f32 %v1630, 1.442695
    %v1636 = vpow.pop %v1635
    %v1637 = vmul.f32 %v1631, 1.442695
    %v1638 = vpow.pop %v1637
    %v1639 = vmul.f32 %v1632, 1.442695
    %v1640 = vpow.pop %v1639
    %v1641 = vadd.f32 %v1634, 1.0
    %v1642 = vadd.f32 %v1636, 1.0
    %v1643 = vadd.f32 %v1638, 1.0
    %v1644 = vadd.f32 %v1640, 1.0
    %v1645 = vrcp.pop %v1641
    %v1646 = vmul.f32 1.0, %v1645
    %v1647 = vrcp.pop %v1642
    %v1648 = vmul.f32 1.0, %v1647
    %v1649 = vrcp.pop %v1643
    %v1650 = vmul.f32 1.0, %v1649
    %v1651 = vrcp.pop %v1644
    %v1652 = vmul.f32 1.0, %v1651
    %v1653 = vtanh.pop %v1615
    %v1654 = vtanh.pop %v1618
    %v1655 = vtanh.pop %v1623
    %v1656 = vtanh.pop %v1626
    %v1657 = vmul.f32 %v1646, %v1326
    %v1658 = vmul.f32 %v1648, %v1327
    %v1659 = vmul.f32 %v1650, %v1328
    %v1660 = vmul.f32 %v1652, %v1329
    %1665 = vrot.lane.b32.xlu0 %v1653, 64
    %v1666 = vpop.permute.xlu0 %1665
    %1667 = vrot.lane.b32.xlu0 %v1654, 64
    %v1668 = vpop.permute.xlu0 %1667
    %1669 = vrot.lane.b32.xlu0 %v1655, 64
    %v1670 = vpop.permute.xlu0 %1669
    %1671 = vrot.lane.b32.xlu0 %v1656, 64
    %v1672 = vpop.permute.xlu0 %1671
    %v1677 = vmul.f32 %v1646, %v1666
    %v1678 = vmul.f32 %v1648, %v1668
    %v1679 = vmul.f32 %v1650, %v1670
    %v1680 = vmul.f32 %v1652, %v1672
    %1685 = vrot.lane.b32.xlu0 %v1677, 32
    %v1686 = vpop.permute.xlu0 %1685
    %1687 = vrot.lane.b32.xlu0 %v1678, 32
    %v1688 = vpop.permute.xlu0 %1687
    %1689 = vrot.lane.b32.xlu0 %v1679, 32
    %v1690 = vpop.permute.xlu0 %1689
    %1691 = vrot.lane.b32.xlu0 %v1680, 32
    %v1692 = vpop.permute.xlu0 %1691
    %v1697 = vadd.f32 %v1657, %v1686
    %v1698 = vadd.f32 %v1658, %v1688
    %v1699 = vadd.f32 %v1659, %v1690
    %v1700 = vadd.f32 %v1660, %v1692
    %v1701 = vtanh.pop %v1697
    %v1702 = vtanh.pop %v1698
    %v1703 = vtanh.pop %v1699
    %v1704 = vtanh.pop %v1700
    %1709 = vrot.lane.b32.xlu0 %v1701, 64
    %v1710 = vpop.permute.xlu0 %1709
    %1711 = vrot.lane.b32.xlu0 %v1702, 64
    %v1712 = vpop.permute.xlu0 %1711
    %1713 = vrot.lane.b32.xlu0 %v1703, 64
    %v1714 = vpop.permute.xlu0 %1713
    %1715 = vrot.lane.b32.xlu0 %v1704, 64
    %v1716 = vpop.permute.xlu0 %1715
    %v1721 = vmul.f32 %v1646, %v1710
    %v1722 = vmul.f32 %v1648, %v1712
    %v1723 = vmul.f32 %v1650, %v1714
    %v1724 = vmul.f32 %v1652, %v1716
    %v1725 = vpack.c.bf16 %v1722, %v1721
    %v1726 = vpack.c.bf16 %v1724, %v1723
    %1729 = vrot.lane.b32.xlu0 %v1725, 32
    %v1730 = vpop.permute.xlu0 %1729
    %1731 = vrot.lane.b32.xlu0 %v1726, 32
    %v1732 = vpop.permute.xlu0 %1731
    %v1734 = vsel %vm256, %v1730, 0
    %v1737 = vsel %vm256, %v1732, 0
    %1739 = vmatprep.subr.bf16.mxu0 0
    %1740 = vmatpush1.bf16.msra.mxu0 %v552
    %1741 = vmatprep.subr.bf16.mxu0 0
    %1742 = vmatpush1.bf16.msra.mxu0 %v553
    %1743 = vmatprep.subr.bf16.mxu0 0
    %1744 = vmatpush1.bf16.msra.mxu0 0
    %1745 = vmatprep.subr.bf16.mxu0 0
    %1746 = vmatpush1.bf16.msra.mxu0 0
    %1747 = vmatprep.subr.bf16.mxu0 0
    %1748 = vmatpush1.bf16.msra.mxu0 0
    %1749 = vmatprep.subr.bf16.mxu0 0
    %1750 = vmatpush1.bf16.msra.mxu0 0
    %1751 = vmatprep.subr.bf16.mxu0 0
    %1752 = vmatpush1.bf16.msra.mxu0 0
    %1753 = vmatprep.subr.bf16.mxu0 0
    %1754 = vmatpush1.bf16.msra.mxu0 0
    %1755 = vmatprep.subr.bf16.mxu0 0
    %1756 = vmatpush1.bf16.msra.mxu0 0
    %1757 = vmatprep.subr.bf16.mxu0 0
    %1758 = vmatpush1.bf16.msra.mxu0 0
    %1759 = vmatprep.subr.bf16.mxu0 0
    %1760 = vmatpush1.bf16.msra.mxu0 0
    %1761 = vmatprep.subr.bf16.mxu0 0
    %1762 = vmatpush1.bf16.msra.mxu0 0
    %1763 = vmatprep.subr.bf16.mxu0 0
    %1764 = vmatpush1.bf16.msra.mxu0 0
    %1765 = vmatprep.subr.bf16.mxu0 0
    %1766 = vmatpush1.bf16.msra.mxu0 0
    %1767 = vmatprep.subr.bf16.mxu0 0
    %1768 = vmatpush1.bf16.msra.mxu0 0
    %1769 = vmatprep.subr.bf16.mxu0 0
    %1770 = vmatpush1.bf16.msra.mxu0 0
    %1771 = vmatprep.mubr.bf16.mxu0 0
    %1772 = vmatmul.mubr.bf16.gmra.mrb[0].mxu0 %v1734
    %v1773 = vpop.f32.mrb[0].mxu0
    %v1774 = vadd.f32 %v522, %v1773
    %v1775 = vpop.f32.mrb[0].mxu0
    %v1776 = vpop.f32.mrb[0].mxu0
    %v1777 = vadd.f32 %v522, %v1776
    %v1778 = vpop.f32.mrb[0].mxu0
    %1779 = vmatprep.mubr.bf16.mxu0 0
    %1780 = vmatmul.mubr.bf16.gmra.mrb[0].mxu0 %v1737
    %v1781 = vpop.f32.mrb[0].mxu0
    %v1782 = vadd.f32 %v522, %v1781
    %v1783 = vpop.f32.mrb[0].mxu0
    %v1784 = vpop.f32.mrb[0].mxu0
    %v1785 = vadd.f32 %v522, %v1784
    %v1786 = vpop.f32.mrb[0].mxu0
    %1787 = vdwg.mxu0
    %1788 = vmatprep.subr.bf16.mxu0 0
    %1789 = vmatpush1.bf16.msra.mxu0 %v621
    %1790 = vmatprep.subr.bf16.mxu0 0
    %1791 = vmatpush1.bf16.msra.mxu0 %v622
    %1792 = vmatprep.subr.bf16.mxu0 0
    %1793 = vmatpush1.bf16.msra.mxu0 0
    %1794 = vmatprep.subr.bf16.mxu0 0
    %1795 = vmatpush1.bf16.msra.mxu0 0
    %1796 = vmatprep.subr.bf16.mxu0 0
    %1797 = vmatpush1.bf16.msra.mxu0 0
    %1798 = vmatprep.subr.bf16.mxu0 0
    %1799 = vmatpush1.bf16.msra.mxu0 0
    %1800 = vmatprep.subr.bf16.mxu0 0
    %1801 = vmatpush1.bf16.msra.mxu0 0
    %1802 = vmatprep.subr.bf16.mxu0 0
    %1803 = vmatpush1.bf16.msra.mxu0 0
    %1804 = vmatprep.subr.bf16.mxu0 0
    %1805 = vmatpush1.bf16.msra.mxu0 0
    %1806 = vmatprep.subr.bf16.mxu0 0
    %1807 = vmatpush1.bf16.msra.mxu0 0
    %1808 = vmatprep.subr.bf16.mxu0 0
    %1809 = vmatpush1.bf16.msra.mxu0 0
    %1810 = vmatprep.subr.bf16.mxu0 0
    %1811 = vmatpush1.bf16.msra.mxu0 0
    %1812 = vmatprep.subr.bf16.mxu0 0
    %1813 = vmatpush1.bf16.msra.mxu0 0
    %1814 = vmatprep.subr.bf16.mxu0 0
    %1815 = vmatpush1.bf16.msra.mxu0 0
    %1816 = vmatprep.subr.bf16.mxu0 0
    %1817 = vmatpush1.bf16.msra.mxu0 0
    %1818 = vmatprep.subr.bf16.mxu0 0
    %1819 = vmatpush1.bf16.msra.mxu0 0
    %1820 = vmatprep.mubr.bf16.mxu0 0
    %1821 = vmatmul.mubr.bf16.gmra.mrb[0].mxu0 %v1575
    %v1822 = vpop.f32.mrb[0].mxu0
    %v1823 = vadd.f32 0.0, %v1822
    %v1824 = vpop.f32.mrb[0].mxu0
    %v1825 = vpop.f32.mrb[0].mxu0
    %v1826 = vadd.f32 0.0, %v1825
    %v1827 = vpop.f32.mrb[0].mxu0
    %1828 = vmatprep.mubr.bf16.mxu0 0
    %1829 = vmatmul.mubr.bf16.gmra.mrb[0].mxu0 %v1578
    %v1830 = vpop.f32.mrb[0].mxu0
    %v1831 = vadd.f32 0.0, %v1830
    %v1832 = vpop.f32.mrb[0].mxu0
    %v1833 = vpop.f32.mrb[0].mxu0
    %v1834 = vadd.f32 0.0, %v1833
    %v1835 = vpop.f32.mrb[0].mxu0
    %1836 = vdwg.mxu0
    %v1837 = vadd.f32 %v485, %v1823
    %v1838 = vadd.f32 %v486, %v1826
    %v1839 = vadd.f32 %v487, %v1831
    %v1840 = vadd.f32 %v488, %v1834
    %v1841 = vxor.u32 %v1837, 2147483648
    %v1842 = vxor.u32 %v1838, 2147483648
    %v1843 = vxor.u32 %v1839, 2147483648
    %v1844 = vxor.u32 %v1840, 2147483648
    %v1845 = vmul.f32 %v1841, 1.442695
    %v1846 = vpow.pop %v1845
    %v1847 = vmul.f32 %v1842, 1.442695
    %v1848 = vpow.pop %v1847
    %v1849 = vmul.f32 %v1843, 1.442695
    %v1850 = vpow.pop %v1849
    %v1851 = vmul.f32 %v1844, 1.442695
    %v1852 = vpow.pop %v1851
    %v1853 = vadd.f32 %v1846, 1.0
    %v1854 = vadd.f32 %v1848, 1.0
    %v1855 = vadd.f32 %v1850, 1.0
    %v1856 = vadd.f32 %v1852, 1.0
    %v1857 = vrcp.pop %v1853
    %v1858 = vmul.f32 1.0, %v1857
    %v1859 = vrcp.pop %v1854
    %v1860 = vmul.f32 1.0, %v1859
    %v1861 = vrcp.pop %v1855
    %v1862 = vmul.f32 1.0, %v1861
    %v1863 = vrcp.pop %v1856
    %v1864 = vmul.f32 1.0, %v1863
    %v1865 = vtanh.pop %v1837
    %v1866 = vtanh.pop %v1838
    %v1867 = vtanh.pop %v1839
    %v1868 = vtanh.pop %v1840
    %v1869 = vmul.f32 %v1858, %v1538
    %v1870 = vmul.f32 %v1860, %v1539
    %v1871 = vmul.f32 %v1862, %v1540
    %v1872 = vmul.f32 %v1864, %v1541
    %1877 = vrot.lane.b32.xlu0 %v1865, 64
    %v1878 = vpop.permute.xlu0 %1877
    %1879 = vrot.lane.b32.xlu0 %v1866, 64
    %v1880 = vpop.permute.xlu0 %1879
    %1881 = vrot.lane.b32.xlu0 %v1867, 64
    %v1882 = vpop.permute.xlu0 %1881
    %1883 = vrot.lane.b32.xlu0 %v1868, 64
    %v1884 = vpop.permute.xlu0 %1883
    %v1889 = vmul.f32 %v1858, %v1878
    %v1890 = vmul.f32 %v1860, %v1880
    %v1891 = vmul.f32 %v1862, %v1882
    %v1892 = vmul.f32 %v1864, %v1884
    %1897 = vrot.lane.b32.xlu0 %v1889, 32
    %v1898 = vpop.permute.xlu0 %1897
    %1899 = vrot.lane.b32.xlu0 %v1890, 32
    %v1900 = vpop.permute.xlu0 %1899
    %1901 = vrot.lane.b32.xlu0 %v1891, 32
    %v1902 = vpop.permute.xlu0 %1901
    %1903 = vrot.lane.b32.xlu0 %v1892, 32
    %v1904 = vpop.permute.xlu0 %1903
    %v1909 = vadd.f32 %v1869, %v1898
    %v1910 = vadd.f32 %v1870, %v1900
    %v1911 = vadd.f32 %v1871, %v1902
    %v1912 = vadd.f32 %v1872, %v1904
    %v1913 = vtanh.pop %v1909
    %v1914 = vtanh.pop %v1910
    %v1915 = vtanh.pop %v1911
    %v1916 = vtanh.pop %v1912
    %1921 = vrot.lane.b32.xlu0 %v1913, 64
    %v1922 = vpop.permute.xlu0 %1921
    %1923 = vrot.lane.b32.xlu0 %v1914, 64
    %v1924 = vpop.permute.xlu0 %1923
    %1925 = vrot.lane.b32.xlu0 %v1915, 64
    %v1926 = vpop.permute.xlu0 %1925
    %1927 = vrot.lane.b32.xlu0 %v1916, 64
    %v1928 = vpop.permute.xlu0 %1927
    %v1933 = vmul.f32 %v1858, %v1922
    %v1934 = vmul.f32 %v1860, %v1924
    %v1935 = vmul.f32 %v1862, %v1926
    %v1936 = vmul.f32 %v1864, %v1928
    %v1937 = vpack.c.bf16 %v1934, %v1933
    %v1938 = vpack.c.bf16 %v1936, %v1935
    %1941 = vrot.lane.b32.xlu0 %v1937, 32
    %v1942 = vpop.permute.xlu0 %1941
    %1943 = vrot.lane.b32.xlu0 %v1938, 32
    %v1944 = vpop.permute.xlu0 %1943
    %v1946 = vsel %vm256, %v1942, 0
    %v1949 = vsel %vm256, %v1944, 0
    %1951 = vmatprep.subr.bf16.mxu0 0
    %1952 = vmatpush1.bf16.msra.mxu0 %v812
    %1953 = vmatprep.subr.bf16.mxu0 0
    %1954 = vmatpush1.bf16.msra.mxu0 %v813
    %1955 = vmatprep.subr.bf16.mxu0 0
    %1956 = vmatpush1.bf16.msra.mxu0 0
    %1957 = vmatprep.subr.bf16.mxu0 0
    %1958 = vmatpush1.bf16.msra.mxu0 0
    %1959 = vmatprep.subr.bf16.mxu0 0
    %1960 = vmatpush1.bf16.msra.mxu0 0
    %1961 = vmatprep.subr.bf16.mxu0 0
    %1962 = vmatpush1.bf16.msra.mxu0 0
    %1963 = vmatprep.subr.bf16.mxu0 0
    %1964 = vmatpush1.bf16.msra.mxu0 0
    %1965 = vmatprep.subr.bf16.mxu0 0
    %1966 = vmatpush1.bf16.msra.mxu0 0
    %1967 = vmatprep.subr.bf16.mxu0 0
    %1968 = vmatpush1.bf16.msra.mxu0 0
    %1969 = vmatprep.subr.bf16.mxu0 0
    %1970 = vmatpush1.bf16.msra.mxu0 0
    %1971 = vmatprep.subr.bf16.mxu0 0
    %1972 = vmatpush1.bf16.msra.mxu0 0
    %1973 = vmatprep.subr.bf16.mxu0 0
    %1974 = vmatpush1.bf16.msra.mxu0 0
    %1975 = vmatprep.subr.bf16.mxu0 0
    %1976 = vmatpush1.bf16.msra.mxu0 0
    %1977 = vmatprep.subr.bf16.mxu0 0
    %1978 = vmatpush1.bf16.msra.mxu0 0
    %1979 = vmatprep.subr.bf16.mxu0 0
    %1980 = vmatpush1.bf16.msra.mxu0 0
    %1981 = vmatprep.subr.bf16.mxu0 0
    %1982 = vmatpush1.bf16.msra.mxu0 0
    %1983 = vmatprep.mubr.bf16.mxu0 0
    %1984 = vmatmul.mubr.bf16.gmra.mrb[0].mxu0 %v1946
    %v1985 = vpop.f32.mrb[0].mxu0
    %v1986 = vadd.f32 %v1774, %v1985
    %v1987 = vpop.f32.mrb[0].mxu0
    %v1988 = vpop.f32.mrb[0].mxu0
    %v1989 = vadd.f32 %v1777, %v1988
    %v1990 = vpop.f32.mrb[0].mxu0
    %1991 = vmatprep.mubr.bf16.mxu0 0
    %1992 = vmatmul.mubr.bf16.gmra.mrb[0].mxu0 %v1949
    %v1993 = vpop.f32.mrb[0].mxu0
    %v1994 = vadd.f32 %v1782, %v1993
    %v1995 = vpop.f32.mrb[0].mxu0
    %v1996 = vpop.f32.mrb[0].mxu0
    %v1997 = vadd.f32 %v1785, %v1996
    %v1998 = vpop.f32.mrb[0].mxu0
    %1999 = vdwg.mxu0
    %v2000 = vxor.u32 %v1986, 2147483648
    %v2001 = vxor.u32 %v1989, 2147483648
    %v2002 = vxor.u32 %v1994, 2147483648
    %v2003 = vxor.u32 %v1997, 2147483648
    %v2004 = vmul.f32 %v2000, 1.442695
    %v2005 = vpow.pop %v2004
    %v2006 = vmul.f32 %v2001, 1.442695
    %v2007 = vpow.pop %v2006
    %v2008 = vmul.f32 %v2002, 1.442695
    %v2009 = vpow.pop %v2008
    %v2010 = vmul.f32 %v2003, 1.442695
    %v2011 = vpow.pop %v2010
    %v2012 = vadd.f32 %v2005, 1.0
    %v2013 = vadd.f32 %v2007, 1.0
    %v2014 = vadd.f32 %v2009, 1.0
    %v2015 = vadd.f32 %v2011, 1.0
    %v2016 = vrcp.pop %v2012
    %v2017 = vmul.f32 1.0, %v2016
    %v2018 = vrcp.pop %v2013
    %v2019 = vmul.f32 1.0, %v2018
    %v2020 = vrcp.pop %v2014
    %v2021 = vmul.f32 1.0, %v2020
    %v2022 = vrcp.pop %v2015
    %v2023 = vmul.f32 1.0, %v2022
    %v2024 = vtanh.pop %v1986
    %v2025 = vtanh.pop %v1989
    %v2026 = vtanh.pop %v1994
    %v2027 = vtanh.pop %v1997
    %v2028 = vmul.f32 %v2017, %v1697
    %v2029 = vmul.f32 %v2019, %v1698
    %v2030 = vmul.f32 %v2021, %v1699
    %v2031 = vmul.f32 %v2023, %v1700
    %2036 = vrot.lane.b32.xlu0 %v2024, 64
    %v2037 = vpop.permute.xlu0 %2036
    %2038 = vrot.lane.b32.xlu0 %v2025, 64
    %v2039 = vpop.permute.xlu0 %2038
    %2040 = vrot.lane.b32.xlu0 %v2026, 64
    %v2041 = vpop.permute.xlu0 %2040
    %2042 = vrot.lane.b32.xlu0 %v2027, 64
    %v2043 = vpop.permute.xlu0 %2042
    %v2048 = vmul.f32 %v2017, %v2037
    %v2049 = vmul.f32 %v2019, %v2039
    %v2050 = vmul.f32 %v2021, %v2041
    %v2051 = vmul.f32 %v2023, %v2043
    %2056 = vrot.lane.b32.xlu0 %v2048, 32
    %v2057 = vpop.permute.xlu0 %2056
    %2058 = vrot.lane.b32.xlu0 %v2049, 32
    %v2059 = vpop.permute.xlu0 %2058
    %2060 = vrot.lane.b32.xlu0 %v2050, 32
    %v2061 = vpop.permute.xlu0 %2060
    %2062 = vrot.lane.b32.xlu0 %v2051, 32
    %v2063 = vpop.permute.xlu0 %2062
    %v2068 = vadd.f32 %v2028, %v2057
    %v2069 = vadd.f32 %v2029, %v2059
    %v2070 = vadd.f32 %v2030, %v2061
    %v2071 = vadd.f32 %v2031, %v2063
    %v2072 = vtanh.pop %v2068
    %v2073 = vtanh.pop %v2069
    %v2074 = vtanh.pop %v2070
    %v2075 = vtanh.pop %v2071
    %2080 = vrot.lane.b32.xlu0 %v2072, 64
    %v2081 = vpop.permute.xlu0 %2080
    %2082 = vrot.lane.b32.xlu0 %v2073, 64
    %v2083 = vpop.permute.xlu0 %2082
    %2084 = vrot.lane.b32.xlu0 %v2074, 64
    %v2085 = vpop.permute.xlu0 %2084
    %2086 = vrot.lane.b32.xlu0 %v2075, 64
    %v2087 = vpop.permute.xlu0 %2086
    %v2092 = vmul.f32 %v2017, %v2081
    %v2093 = vmul.f32 %v2019, %v2083
    %v2094 = vmul.f32 %v2021, %v2085
    %v2095 = vmul.f32 %v2023, %v2087
    %v2096 = vpack.c.bf16 %v2093, %v2092
    %v2097 = vpack.c.bf16 %v2095, %v2094
    %2100 = vrot.lane.b32.xlu0 %v2096, 32
    %v2101 = vpop.permute.xlu0 %2100
    %2102 = vrot.lane.b32.xlu0 %v2097, 32
    %v2103 = vpop.permute.xlu0 %2102
    %v2105 = vsel %vm256, %v2101, 0
    %v2108 = vsel %vm256, %v2103, 0
    %2110 = vmatprep.subr.bf16.mxu0 0
    %2111 = vmatpush1.bf16.msra.mxu0 %v552
    %2112 = vmatprep.subr.bf16.mxu0 0
    %2113 = vmatpush1.bf16.msra.mxu0 %v553
    %2114 = vmatprep.subr.bf16.mxu0 0
    %2115 = vmatpush1.bf16.msra.mxu0 0
    %2116 = vmatprep.subr.bf16.mxu0 0
    %2117 = vmatpush1.bf16.msra.mxu0 0
    %2118 = vmatprep.subr.bf16.mxu0 0
    %2119 = vmatpush1.bf16.msra.mxu0 0
    %2120 = vmatprep.subr.bf16.mxu0 0
    %2121 = vmatpush1.bf16.msra.mxu0 0
    %2122 = vmatprep.subr.bf16.mxu0 0
    %2123 = vmatpush1.bf16.msra.mxu0 0
    %2124 = vmatprep.subr.bf16.mxu0 0
    %2125 = vmatpush1.bf16.msra.mxu0 0
    %2126 = vmatprep.subr.bf16.mxu0 0
    %2127 = vmatpush1.bf16.msra.mxu0 0
    %2128 = vmatprep.subr.bf16.mxu0 0
    %2129 = vmatpush1.bf16.msra.mxu0 0
    %2130 = vmatprep.subr.bf16.mxu0 0
    %2131 = vmatpush1.bf16.msra.mxu0 0
    %2132 = vmatprep.subr.bf16.mxu0 0
    %2133 = vmatpush1.bf16.msra.mxu0 0
    %2134 = vmatprep.subr.bf16.mxu0 0
    %2135 = vmatpush1.bf16.msra.mxu0 0
    %2136 = vmatprep.subr.bf16.mxu0 0
    %2137 = vmatpush1.bf16.msra.mxu0 0
    %2138 = vmatprep.subr.bf16.mxu0 0
    %2139 = vmatpush1.bf16.msra.mxu0 0
    %2140 = vmatprep.subr.bf16.mxu0 0
    %2141 = vmatpush1.bf16.msra.mxu0 0
    %2142 = vmatprep.mubr.bf16.mxu0 0
    %2143 = vmatmul.mubr.bf16.gmra.mrb[0].mxu0 %v2105
    %v2144 = vpop.f32.mrb[0].mxu0
    %v2145 = vadd.f32 %v522, %v2144
    %v2146 = vpop.f32.mrb[0].mxu0
    %v2147 = vpop.f32.mrb[0].mxu0
    %v2148 = vadd.f32 %v522, %v2147
    %v2149 = vpop.f32.mrb[0].mxu0
    %2150 = vmatprep.mubr.bf16.mxu0 0
    %2151 = vmatmul.mubr.bf16.gmra.mrb[0].mxu0 %v2108
    %v2152 = vpop.f32.mrb[0].mxu0
    %v2153 = vadd.f32 %v522, %v2152
    %v2154 = vpop.f32.mrb[0].mxu0
    %v2155 = vpop.f32.mrb[0].mxu0
    %v2156 = vadd.f32 %v522, %v2155
    %v2157 = vpop.f32.mrb[0].mxu0
    %2158 = vdwg.mxu0
    %2159 = vmatprep.subr.bf16.mxu0 0
    %2160 = vmatpush1.bf16.msra.mxu0 %v621
    %2161 = vmatprep.subr.bf16.mxu0 0
    %2162 = vmatpush1.bf16.msra.mxu0 %v622
    %2163 = vmatprep.subr.bf16.mxu0 0
    %2164 = vmatpush1.bf16.msra.mxu0 0
    %2165 = vmatprep.subr.bf16.mxu0 0
    %2166 = vmatpush1.bf16.msra.mxu0 0
    %2167 = vmatprep.subr.bf16.mxu0 0
    %2168 = vmatpush1.bf16.msra.mxu0 0
    %2169 = vmatprep.subr.bf16.mxu0 0
    %2170 = vmatpush1.bf16.msra.mxu0 0
    %2171 = vmatprep.subr.bf16.mxu0 0
    %2172 = vmatpush1.bf16.msra.mxu0 0
    %2173 = vmatprep.subr.bf16.mxu0 0
    %2174 = vmatpush1.bf16.msra.mxu0 0
    %2175 = vmatprep.subr.bf16.mxu0 0
    %2176 = vmatpush1.bf16.msra.mxu0 0
    %2177 = vmatprep.subr.bf16.mxu0 0
    %2178 = vmatpush1.bf16.msra.mxu0 0
    %2179 = vmatprep.subr.bf16.mxu0 0
    %2180 = vmatpush1.bf16.msra.mxu0 0
    %2181 = vmatprep.subr.bf16.mxu0 0
    %2182 = vmatpush1.bf16.msra.mxu0 0
    %2183 = vmatprep.subr.bf16.mxu0 0
    %2184 = vmatpush1.bf16.msra.mxu0 0
    %2185 = vmatprep.subr.bf16.mxu0 0
    %2186 = vmatpush1.bf16.msra.mxu0 0
    %2187 = vmatprep.subr.bf16.mxu0 0
    %2188 = vmatpush1.bf16.msra.mxu0 0
    %2189 = vmatprep.subr.bf16.mxu0 0
    %2190 = vmatpush1.bf16.msra.mxu0 0
    %2191 = vmatprep.mubr.bf16.mxu0 0
    %2192 = vmatmul.mubr.bf16.gmra.mrb[0].mxu0 %v1946
    %v2193 = vpop.f32.mrb[0].mxu0
    %v2194 = vadd.f32 0.0, %v2193
    %v2195 = vpop.f32.mrb[0].mxu0
    %v2196 = vpop.f32.mrb[0].mxu0
    %v2197 = vadd.f32 0.0, %v2196
    %v2198 = vpop.f32.mrb[0].mxu0
    %2199 = vmatprep.mubr.bf16.mxu0 0
    %2200 = vmatmul.mubr.bf16.gmra.mrb[0].mxu0 %v1949
    %v2201 = vpop.f32.mrb[0].mxu0
    %v2202 = vadd.f32 0.0, %v2201
    %v2203 = vpop.f32.mrb[0].mxu0
    %v2204 = vpop.f32.mrb[0].mxu0
    %v2205 = vadd.f32 0.0, %v2204
    %v2206 = vpop.f32.mrb[0].mxu0
    %2207 = vdwg.mxu0
    %v2208 = vadd.f32 %v489, %v2194
    %v2209 = vadd.f32 %v490, %v2197
    %v2210 = vadd.f32 %v491, %v2202
    %v2211 = vadd.f32 %v492, %v2205
    %v2212 = vxor.u32 %v2208, 2147483648
    %v2213 = vxor.u32 %v2209, 2147483648
    %v2214 = vxor.u32 %v2210, 2147483648
    %v2215 = vxor.u32 %v2211, 2147483648
    %v2216 = vmul.f32 %v2212, 1.442695
    %v2217 = vpow.pop %v2216
    %v2218 = vmul.f32 %v2213, 1.442695
    %v2219 = vpow.pop %v2218
    %v2220 = vmul.f32 %v2214, 1.442695
    %v2221 = vpow.pop %v2220
    %v2222 = vmul.f32 %v2215, 1.442695
    %v2223 = vpow.pop %v2222
    %v2224 = vadd.f32 %v2217, 1.0
    %v2225 = vadd.f32 %v2219, 1.0
    %v2226 = vadd.f32 %v2221, 1.0
    %v2227 = vadd.f32 %v2223, 1.0
    %v2228 = vrcp.pop %v2224
    %v2229 = vmul.f32 1.0, %v2228
    %v2230 = vrcp.pop %v2225
    %v2231 = vmul.f32 1.0, %v2230
    %v2232 = vrcp.pop %v2226
    %v2233 = vmul.f32 1.0, %v2232
    %v2234 = vrcp.pop %v2227
    %v2235 = vmul.f32 1.0, %v2234
    %v2236 = vtanh.pop %v2208
    %v2237 = vtanh.pop %v2209
    %v2238 = vtanh.pop %v2210
    %v2239 = vtanh.pop %v2211
    %v2240 = vmul.f32 %v2229, %v1909
    %v2241 = vmul.f32 %v2231, %v1910
    %v2242 = vmul.f32 %v2233, %v1911
    %v2243 = vmul.f32 %v2235, %v1912
    %2248 = vrot.lane.b32.xlu0 %v2236, 64
    %v2249 = vpop.permute.xlu0 %2248
    %2250 = vrot.lane.b32.xlu0 %v2237, 64
    %v2251 = vpop.permute.xlu0 %2250
    %2252 = vrot.lane.b32.xlu0 %v2238, 64
    %v2253 = vpop.permute.xlu0 %2252
    %2254 = vrot.lane.b32.xlu0 %v2239, 64
    %v2255 = vpop.permute.xlu0 %2254
    %v2260 = vmul.f32 %v2229, %v2249
    %v2261 = vmul.f32 %v2231, %v2251
    %v2262 = vmul.f32 %v2233, %v2253
    %v2263 = vmul.f32 %v2235, %v2255
    %2268 = vrot.lane.b32.xlu0 %v2260, 32
    %v2269 = vpop.permute.xlu0 %2268
    %2270 = vrot.lane.b32.xlu0 %v2261, 32
    %v2271 = vpop.permute.xlu0 %2270
    %2272 = vrot.lane.b32.xlu0 %v2262, 32
    %v2273 = vpop.permute.xlu0 %2272
    %2274 = vrot.lane.b32.xlu0 %v2263, 32
    %v2275 = vpop.permute.xlu0 %2274
    %v2280 = vadd.f32 %v2240, %v2269
    %v2281 = vadd.f32 %v2241, %v2271
    %v2282 = vadd.f32 %v2242, %v2273
    %v2283 = vadd.f32 %v2243, %v2275
    %v2284 = vtanh.pop %v2280
    %v2285 = vtanh.pop %v2281
    %v2286 = vtanh.pop %v2282
    %v2287 = vtanh.pop %v2283
    %2292 = vrot.lane.b32.xlu0 %v2284, 64
    %v2293 = vpop.permute.xlu0 %2292
    %2294 = vrot.lane.b32.xlu0 %v2285, 64
    %v2295 = vpop.permute.xlu0 %2294
    %2296 = vrot.lane.b32.xlu0 %v2286, 64
    %v2297 = vpop.permute.xlu0 %2296
    %2298 = vrot.lane.b32.xlu0 %v2287, 64
    %v2299 = vpop.permute.xlu0 %2298
    %v2304 = vmul.f32 %v2229, %v2293
    %v2305 = vmul.f32 %v2231, %v2295
    %v2306 = vmul.f32 %v2233, %v2297
    %v2307 = vmul.f32 %v2235, %v2299
    %v2308 = vpack.c.bf16 %v2305, %v2304
    %v2309 = vpack.c.bf16 %v2307, %v2306
    %2312 = vrot.lane.b32.xlu0 %v2308, 32
    %v2313 = vpop.permute.xlu0 %2312
    %2314 = vrot.lane.b32.xlu0 %v2309, 32
    %v2315 = vpop.permute.xlu0 %2314
    %v2317 = vsel %vm256, %v2313, 0
    %v2320 = vsel %vm256, %v2315, 0
    %2322 = vmatprep.subr.bf16.mxu0 0
    %2323 = vmatpush1.bf16.msra.mxu0 %v812
    %2324 = vmatprep.subr.bf16.mxu0 0
    %2325 = vmatpush1.bf16.msra.mxu0 %v813
    %2326 = vmatprep.subr.bf16.mxu0 0
    %2327 = vmatpush1.bf16.msra.mxu0 0
    %2328 = vmatprep.subr.bf16.mxu0 0
    %2329 = vmatpush1.bf16.msra.mxu0 0
    %2330 = vmatprep.subr.bf16.mxu0 0
    %2331 = vmatpush1.bf16.msra.mxu0 0
    %2332 = vmatprep.subr.bf16.mxu0 0
    %2333 = vmatpush1.bf16.msra.mxu0 0
    %2334 = vmatprep.subr.bf16.mxu0 0
    %2335 = vmatpush1.bf16.msra.mxu0 0
    %2336 = vmatprep.subr.bf16.mxu0 0
    %2337 = vmatpush1.bf16.msra.mxu0 0
    %2338 = vmatprep.subr.bf16.mxu0 0
    %2339 = vmatpush1.bf16.msra.mxu0 0
    %2340 = vmatprep.subr.bf16.mxu0 0
    %2341 = vmatpush1.bf16.msra.mxu0 0
    %2342 = vmatprep.subr.bf16.mxu0 0
    %2343 = vmatpush1.bf16.msra.mxu0 0
    %2344 = vmatprep.subr.bf16.mxu0 0
    %2345 = vmatpush1.bf16.msra.mxu0 0
    %2346 = vmatprep.subr.bf16.mxu0 0
    %2347 = vmatpush1.bf16.msra.mxu0 0
    %2348 = vmatprep.subr.bf16.mxu0 0
    %2349 = vmatpush1.bf16.msra.mxu0 0
    %2350 = vmatprep.subr.bf16.mxu0 0
    %2351 = vmatpush1.bf16.msra.mxu0 0
    %2352 = vmatprep.subr.bf16.mxu0 0
    %2353 = vmatpush1.bf16.msra.mxu0 0
    %2354 = vmatprep.mubr.bf16.mxu0 0
    %2355 = vmatmul.mubr.bf16.gmra.mrb[0].mxu0 %v2317
    %v2356 = vpop.f32.mrb[0].mxu0
    %v2357 = vadd.f32 %v2145, %v2356
    %v2358 = vpop.f32.mrb[0].mxu0
    %v2359 = vpop.f32.mrb[0].mxu0
    %v2360 = vadd.f32 %v2148, %v2359
    %v2361 = vpop.f32.mrb[0].mxu0
    %2362 = vmatprep.mubr.bf16.mxu0 0
    %2363 = vmatmul.mubr.bf16.gmra.mrb[0].mxu0 %v2320
    %v2364 = vpop.f32.mrb[0].mxu0
    %v2365 = vadd.f32 %v2153, %v2364
    %v2366 = vpop.f32.mrb[0].mxu0
    %v2367 = vpop.f32.mrb[0].mxu0
    %v2368 = vadd.f32 %v2156, %v2367
    %v2369 = vpop.f32.mrb[0].mxu0
    %2370 = vdwg.mxu0
    %v2371 = vxor.u32 %v2357, 2147483648
    %v2372 = vxor.u32 %v2360, 2147483648
    %v2373 = vxor.u32 %v2365, 2147483648
    %v2374 = vxor.u32 %v2368, 2147483648
    %v2375 = vmul.f32 %v2371, 1.442695
    %v2376 = vpow.pop %v2375
    %v2377 = vmul.f32 %v2372, 1.442695
    %v2378 = vpow.pop %v2377
    %v2379 = vmul.f32 %v2373, 1.442695
    %v2380 = vpow.pop %v2379
    %v2381 = vmul.f32 %v2374, 1.442695
    %v2382 = vpow.pop %v2381
    %v2383 = vadd.f32 %v2376, 1.0
    %v2384 = vadd.f32 %v2378, 1.0
    %v2385 = vadd.f32 %v2380, 1.0
    %v2386 = vadd.f32 %v2382, 1.0
    %v2387 = vrcp.pop %v2383
    %v2388 = vmul.f32 1.0, %v2387
    %v2389 = vrcp.pop %v2384
    %v2390 = vmul.f32 1.0, %v2389
    %v2391 = vrcp.pop %v2385
    %v2392 = vmul.f32 1.0, %v2391
    %v2393 = vrcp.pop %v2386
    %v2394 = vmul.f32 1.0, %v2393
    %v2395 = vtanh.pop %v2357
    %v2396 = vtanh.pop %v2360
    %v2397 = vtanh.pop %v2365
    %v2398 = vtanh.pop %v2368
    %v2399 = vmul.f32 %v2388, %v2068
    %v2400 = vmul.f32 %v2390, %v2069
    %v2401 = vmul.f32 %v2392, %v2070
    %v2402 = vmul.f32 %v2394, %v2071
    %2407 = vrot.lane.b32.xlu0 %v2395, 64
    %v2408 = vpop.permute.xlu0 %2407
    %2409 = vrot.lane.b32.xlu0 %v2396, 64
    %v2410 = vpop.permute.xlu0 %2409
    %2411 = vrot.lane.b32.xlu0 %v2397, 64
    %v2412 = vpop.permute.xlu0 %2411
    %2413 = vrot.lane.b32.xlu0 %v2398, 64
    %v2414 = vpop.permute.xlu0 %2413
    %v2419 = vmul.f32 %v2388, %v2408
    %v2420 = vmul.f32 %v2390, %v2410
    %v2421 = vmul.f32 %v2392, %v2412
    %v2422 = vmul.f32 %v2394, %v2414
    %2427 = vrot.lane.b32.xlu0 %v2419, 32
    %v2428 = vpop.permute.xlu0 %2427
    %2429 = vrot.lane.b32.xlu0 %v2420, 32
    %v2430 = vpop.permute.xlu0 %2429
    %2431 = vrot.lane.b32.xlu0 %v2421, 32
    %v2432 = vpop.permute.xlu0 %2431
    %2433 = vrot.lane.b32.xlu0 %v2422, 32
    %v2434 = vpop.permute.xlu0 %2433
    %v2439 = vadd.f32 %v2399, %v2428
    %v2440 = vadd.f32 %v2400, %v2430
    %v2441 = vadd.f32 %v2401, %v2432
    %v2442 = vadd.f32 %v2402, %v2434
    %v2443 = vtanh.pop %v2439
    %v2444 = vtanh.pop %v2440
    %v2445 = vtanh.pop %v2441
    %v2446 = vtanh.pop %v2442
    %2451 = vrot.lane.b32.xlu0 %v2443, 64
    %v2452 = vpop.permute.xlu0 %2451
    %2453 = vrot.lane.b32.xlu0 %v2444, 64
    %v2454 = vpop.permute.xlu0 %2453
    %2455 = vrot.lane.b32.xlu0 %v2445, 64
    %v2456 = vpop.permute.xlu0 %2455
    %2457 = vrot.lane.b32.xlu0 %v2446, 64
    %v2458 = vpop.permute.xlu0 %2457
    %v2463 = vmul.f32 %v2388, %v2452
    %v2464 = vmul.f32 %v2390, %v2454
    %v2465 = vmul.f32 %v2392, %v2456
    %v2466 = vmul.f32 %v2394, %v2458
    %v2467 = vpack.c.bf16 %v2464, %v2463
    %v2468 = vpack.c.bf16 %v2466, %v2465
    %2471 = vrot.lane.b32.xlu0 %v2467, 32
    %v2472 = vpop.permute.xlu0 %2471
    %2473 = vrot.lane.b32.xlu0 %v2468, 32
    %v2474 = vpop.permute.xlu0 %2473
    %v2476 = vsel %vm256, %v2472, 0
    %v2479 = vsel %vm256, %v2474, 0
    %2481 = vmatprep.subr.bf16.mxu0 0
    %2482 = vmatpush1.bf16.msra.mxu0 %v552
    %2483 = vmatprep.subr.bf16.mxu0 0
    %2484 = vmatpush1.bf16.msra.mxu0 %v553
    %2485 = vmatprep.subr.bf16.mxu0 0
    %2486 = vmatpush1.bf16.msra.mxu0 0
    %2487 = vmatprep.subr.bf16.mxu0 0
    %2488 = vmatpush1.bf16.msra.mxu0 0
    %2489 = vmatprep.subr.bf16.mxu0 0
    %2490 = vmatpush1.bf16.msra.mxu0 0
    %2491 = vmatprep.subr.bf16.mxu0 0
    %2492 = vmatpush1.bf16.msra.mxu0 0
    %2493 = vmatprep.subr.bf16.mxu0 0
    %2494 = vmatpush1.bf16.msra.mxu0 0
    %2495 = vmatprep.subr.bf16.mxu0 0
    %2496 = vmatpush1.bf16.msra.mxu0 0
    %2497 = vmatprep.subr.bf16.mxu0 0
    %2498 = vmatpush1.bf16.msra.mxu0 0
    %2499 = vmatprep.subr.bf16.mxu0 0
    %2500 = vmatpush1.bf16.msra.mxu0 0
    %2501 = vmatprep.subr.bf16.mxu0 0
    %2502 = vmatpush1.bf16.msra.mxu0 0
    %2503 = vmatprep.subr.bf16.mxu0 0
    %2504 = vmatpush1.bf16.msra.mxu0 0
    %2505 = vmatprep.subr.bf16.mxu0 0
    %2506 = vmatpush1.bf16.msra.mxu0 0
    %2507 = vmatprep.subr.bf16.mxu0 0
    %2508 = vmatpush1.bf16.msra.mxu0 0
    %2509 = vmatprep.subr.bf16.mxu0 0
    %2510 = vmatpush1.bf16.msra.mxu0 0
    %2511 = vmatprep.subr.bf16.mxu0 0
    %2512 = vmatpush1.bf16.msra.mxu0 0
    %2513 = vmatprep.mubr.bf16.mxu0 0
    %2514 = vmatmul.mubr.bf16.gmra.mrb[0].mxu0 %v2476
    %v2515 = vpop.f32.mrb[0].mxu0
    %v2516 = vadd.f32 %v522, %v2515
    %v2517 = vpop.f32.mrb[0].mxu0
    %v2518 = vpop.f32.mrb[0].mxu0
    %v2519 = vadd.f32 %v522, %v2518
    %v2520 = vpop.f32.mrb[0].mxu0
    %2521 = vmatprep.mubr.bf16.mxu0 0
    %2522 = vmatmul.mubr.bf16.gmra.mrb[0].mxu0 %v2479
    %v2523 = vpop.f32.mrb[0].mxu0
    %v2524 = vadd.f32 %v522, %v2523
    %v2525 = vpop.f32.mrb[0].mxu0
    %v2526 = vpop.f32.mrb[0].mxu0
    %v2527 = vadd.f32 %v522, %v2526
    %v2528 = vpop.f32.mrb[0].mxu0
    %2529 = vdwg.mxu0
    %2530 = vmatprep.subr.bf16.mxu0 0
    %2531 = vmatpush1.bf16.msra.mxu0 %v621
    %2532 = vmatprep.subr.bf16.mxu0 0
    %2533 = vmatpush1.bf16.msra.mxu0 %v622
    %2534 = vmatprep.subr.bf16.mxu0 0
    %2535 = vmatpush1.bf16.msra.mxu0 0
    %2536 = vmatprep.subr.bf16.mxu0 0
    %2537 = vmatpush1.bf16.msra.mxu0 0
    %2538 = vmatprep.subr.bf16.mxu0 0
    %2539 = vmatpush1.bf16.msra.mxu0 0
    %2540 = vmatprep.subr.bf16.mxu0 0
    %2541 = vmatpush1.bf16.msra.mxu0 0
    %2542 = vmatprep.subr.bf16.mxu0 0
    %2543 = vmatpush1.bf16.msra.mxu0 0
    %2544 = vmatprep.subr.bf16.mxu0 0
    %2545 = vmatpush1.bf16.msra.mxu0 0
    %2546 = vmatprep.subr.bf16.mxu0 0
    %2547 = vmatpush1.bf16.msra.mxu0 0
    %2548 = vmatprep.subr.bf16.mxu0 0
    %2549 = vmatpush1.bf16.msra.mxu0 0
    %2550 = vmatprep.subr.bf16.mxu0 0
    %2551 = vmatpush1.bf16.msra.mxu0 0
    %2552 = vmatprep.subr.bf16.mxu0 0
    %2553 = vmatpush1.bf16.msra.mxu0 0
    %2554 = vmatprep.subr.bf16.mxu0 0
    %2555 = vmatpush1.bf16.msra.mxu0 0
    %2556 = vmatprep.subr.bf16.mxu0 0
    %2557 = vmatpush1.bf16.msra.mxu0 0
    %2558 = vmatprep.subr.bf16.mxu0 0
    %2559 = vmatpush1.bf16.msra.mxu0 0
    %2560 = vmatprep.subr.bf16.mxu0 0
    %2561 = vmatpush1.bf16.msra.mxu0 0
    %2562 = vmatprep.mubr.bf16.mxu0 0
    %2563 = vmatmul.mubr.bf16.gmra.mrb[0].mxu0 %v2317
    %v2564 = vpop.f32.mrb[0].mxu0
    %v2565 = vadd.f32 0.0, %v2564
    %v2566 = vpop.f32.mrb[0].mxu0
    %v2567 = vpop.f32.mrb[0].mxu0
    %v2568 = vadd.f32 0.0, %v2567
    %v2569 = vpop.f32.mrb[0].mxu0
    %2570 = vmatprep.mubr.bf16.mxu0 0
    %2571 = vmatmul.mubr.bf16.gmra.mrb[0].mxu0 %v2320
    %v2572 = vpop.f32.mrb[0].mxu0
    %v2573 = vadd.f32 0.0, %v2572
    %v2574 = vpop.f32.mrb[0].mxu0
    %v2575 = vpop.f32.mrb[0].mxu0
    %v2576 = vadd.f32 0.0, %v2575
    %v2577 = vpop.f32.mrb[0].mxu0
    %2578 = vdwg.mxu0
    %v2579 = vadd.f32 %v493, %v2565
    %v2580 = vadd.f32 %v494, %v2568
    %v2581 = vadd.f32 %v495, %v2573
    %v2582 = vadd.f32 %v496, %v2576
    %v2583 = vxor.u32 %v2579, 2147483648
    %v2584 = vxor.u32 %v2580, 2147483648
    %v2585 = vxor.u32 %v2581, 2147483648
    %v2586 = vxor.u32 %v2582, 2147483648
    %v2587 = vmul.f32 %v2583, 1.442695
    %v2588 = vpow.pop %v2587
    %v2589 = vmul.f32 %v2584, 1.442695
    %v2590 = vpow.pop %v2589
    %v2591 = vmul.f32 %v2585, 1.442695
    %v2592 = vpow.pop %v2591
    %v2593 = vmul.f32 %v2586, 1.442695
    %v2594 = vpow.pop %v2593
    %v2595 = vadd.f32 %v2588, 1.0
    %v2596 = vadd.f32 %v2590, 1.0
    %v2597 = vadd.f32 %v2592, 1.0
    %v2598 = vadd.f32 %v2594, 1.0
    %v2599 = vrcp.pop %v2595
    %v2600 = vmul.f32 1.0, %v2599
    %v2601 = vrcp.pop %v2596
    %v2602 = vmul.f32 1.0, %v2601
    %v2603 = vrcp.pop %v2597
    %v2604 = vmul.f32 1.0, %v2603
    %v2605 = vrcp.pop %v2598
    %v2606 = vmul.f32 1.0, %v2605
    %v2607 = vtanh.pop %v2579
    %v2608 = vtanh.pop %v2580
    %v2609 = vtanh.pop %v2581
    %v2610 = vtanh.pop %v2582
    %v2611 = vmul.f32 %v2600, %v2280
    %v2612 = vmul.f32 %v2602, %v2281
    %v2613 = vmul.f32 %v2604, %v2282
    %v2614 = vmul.f32 %v2606, %v2283
    %2619 = vrot.lane.b32.xlu0 %v2607, 64
    %v2620 = vpop.permute.xlu0 %2619
    %2621 = vrot.lane.b32.xlu0 %v2608, 64
    %v2622 = vpop.permute.xlu0 %2621
    %2623 = vrot.lane.b32.xlu0 %v2609, 64
    %v2624 = vpop.permute.xlu0 %2623
    %2625 = vrot.lane.b32.xlu0 %v2610, 64
    %v2626 = vpop.permute.xlu0 %2625
    %v2631 = vmul.f32 %v2600, %v2620
    %v2632 = vmul.f32 %v2602, %v2622
    %v2633 = vmul.f32 %v2604, %v2624
    %v2634 = vmul.f32 %v2606, %v2626
    %2639 = vrot.lane.b32.xlu0 %v2631, 32
    %v2640 = vpop.permute.xlu0 %2639
    %2641 = vrot.lane.b32.xlu0 %v2632, 32
    %v2642 = vpop.permute.xlu0 %2641
    %2643 = vrot.lane.b32.xlu0 %v2633, 32
    %v2644 = vpop.permute.xlu0 %2643
    %2645 = vrot.lane.b32.xlu0 %v2634, 32
    %v2646 = vpop.permute.xlu0 %2645
    %v2651 = vadd.f32 %v2611, %v2640
    %v2652 = vadd.f32 %v2612, %v2642
    %v2653 = vadd.f32 %v2613, %v2644
    %v2654 = vadd.f32 %v2614, %v2646
    %v2655 = vtanh.pop %v2651
    %v2656 = vtanh.pop %v2652
    %v2657 = vtanh.pop %v2653
    %v2658 = vtanh.pop %v2654
    %2663 = vrot.lane.b32.xlu0 %v2655, 64
    %v2664 = vpop.permute.xlu0 %2663
    %2665 = vrot.lane.b32.xlu0 %v2656, 64
    %v2666 = vpop.permute.xlu0 %2665
    %2667 = vrot.lane.b32.xlu0 %v2657, 64
    %v2668 = vpop.permute.xlu0 %2667
    %2669 = vrot.lane.b32.xlu0 %v2658, 64
    %v2670 = vpop.permute.xlu0 %2669
    %v2675 = vmul.f32 %v2600, %v2664
    %v2676 = vmul.f32 %v2602, %v2666
    %v2677 = vmul.f32 %v2604, %v2668
    %v2678 = vmul.f32 %v2606, %v2670
    %v2679 = vpack.c.bf16 %v2676, %v2675
    %v2680 = vpack.c.bf16 %v2678, %v2677
    %2683 = vrot.lane.b32.xlu0 %v2679, 32
    %v2684 = vpop.permute.xlu0 %2683
    %2685 = vrot.lane.b32.xlu0 %v2680, 32
    %v2686 = vpop.permute.xlu0 %2685
    %v2688 = vsel %vm256, %v2684, 0
    %v2691 = vsel %vm256, %v2686, 0
    %2693 = vmatprep.subr.bf16.mxu0 0
    %2694 = vmatpush1.bf16.msra.mxu0 %v812
    %2695 = vmatprep.subr.bf16.mxu0 0
    %2696 = vmatpush1.bf16.msra.mxu0 %v813
    %2697 = vmatprep.subr.bf16.mxu0 0
    %2698 = vmatpush1.bf16.msra.mxu0 0
    %2699 = vmatprep.subr.bf16.mxu0 0
    %2700 = vmatpush1.bf16.msra.mxu0 0
    %2701 = vmatprep.subr.bf16.mxu0 0
    %2702 = vmatpush1.bf16.msra.mxu0 0
    %2703 = vmatprep.subr.bf16.mxu0 0
    %2704 = vmatpush1.bf16.msra.mxu0 0
    %2705 = vmatprep.subr.bf16.mxu0 0
    %2706 = vmatpush1.bf16.msra.mxu0 0
    %2707 = vmatprep.subr.bf16.mxu0 0
    %2708 = vmatpush1.bf16.msra.mxu0 0
    %2709 = vmatprep.subr.bf16.mxu0 0
    %2710 = vmatpush1.bf16.msra.mxu0 0
    %2711 = vmatprep.subr.bf16.mxu0 0
    %2712 = vmatpush1.bf16.msra.mxu0 0
    %2713 = vmatprep.subr.bf16.mxu0 0
    %2714 = vmatpush1.bf16.msra.mxu0 0
    %2715 = vmatprep.subr.bf16.mxu0 0
    %2716 = vmatpush1.bf16.msra.mxu0 0
    %2717 = vmatprep.subr.bf16.mxu0 0
    %2718 = vmatpush1.bf16.msra.mxu0 0
    %2719 = vmatprep.subr.bf16.mxu0 0
    %2720 = vmatpush1.bf16.msra.mxu0 0
    %2721 = vmatprep.subr.bf16.mxu0 0
    %2722 = vmatpush1.bf16.msra.mxu0 0
    %2723 = vmatprep.subr.bf16.mxu0 0
    %2724 = vmatpush1.bf16.msra.mxu0 0
    %2725 = vmatprep.mubr.bf16.mxu0 0
    %2726 = vmatmul.mubr.bf16.gmra.mrb[0].mxu0 %v2688
    %v2727 = vpop.f32.mrb[0].mxu0
    %v2728 = vadd.f32 %v2516, %v2727
    %v2729 = vpop.f32.mrb[0].mxu0
    %v2730 = vpop.f32.mrb[0].mxu0
    %v2731 = vadd.f32 %v2519, %v2730
    %v2732 = vpop.f32.mrb[0].mxu0
    %2733 = vmatprep.mubr.bf16.mxu0 0
    %2734 = vmatmul.mubr.bf16.gmra.mrb[0].mxu0 %v2691
    %v2735 = vpop.f32.mrb[0].mxu0
    %v2736 = vadd.f32 %v2524, %v2735
    %v2737 = vpop.f32.mrb[0].mxu0
    %v2738 = vpop.f32.mrb[0].mxu0
    %v2739 = vadd.f32 %v2527, %v2738
    %v2740 = vpop.f32.mrb[0].mxu0
    %2741 = vdwg.mxu0
    %v2742 = vxor.u32 %v2728, 2147483648
    %v2743 = vxor.u32 %v2731, 2147483648
    %v2744 = vxor.u32 %v2736, 2147483648
    %v2745 = vxor.u32 %v2739, 2147483648
    %v2746 = vmul.f32 %v2742, 1.442695
    %v2747 = vpow.pop %v2746
    %v2748 = vmul.f32 %v2743, 1.442695
    %v2749 = vpow.pop %v2748
    %v2750 = vmul.f32 %v2744, 1.442695
    %v2751 = vpow.pop %v2750
    %v2752 = vmul.f32 %v2745, 1.442695
    %v2753 = vpow.pop %v2752
    %v2754 = vadd.f32 %v2747, 1.0
    %v2755 = vadd.f32 %v2749, 1.0
    %v2756 = vadd.f32 %v2751, 1.0
    %v2757 = vadd.f32 %v2753, 1.0
    %v2758 = vrcp.pop %v2754
    %v2759 = vmul.f32 1.0, %v2758
    %v2760 = vrcp.pop %v2755
    %v2761 = vmul.f32 1.0, %v2760
    %v2762 = vrcp.pop %v2756
    %v2763 = vmul.f32 1.0, %v2762
    %v2764 = vrcp.pop %v2757
    %v2765 = vmul.f32 1.0, %v2764
    %v2766 = vtanh.pop %v2728
    %v2767 = vtanh.pop %v2731
    %v2768 = vtanh.pop %v2736
    %v2769 = vtanh.pop %v2739
    %v2770 = vmul.f32 %v2759, %v2439
    %v2771 = vmul.f32 %v2761, %v2440
    %v2772 = vmul.f32 %v2763, %v2441
    %v2773 = vmul.f32 %v2765, %v2442
    %2778 = vrot.lane.b32.xlu0 %v2766, 64
    %v2779 = vpop.permute.xlu0 %2778
    %2780 = vrot.lane.b32.xlu0 %v2767, 64
    %v2781 = vpop.permute.xlu0 %2780
    %2782 = vrot.lane.b32.xlu0 %v2768, 64
    %v2783 = vpop.permute.xlu0 %2782
    %2784 = vrot.lane.b32.xlu0 %v2769, 64
    %v2785 = vpop.permute.xlu0 %2784
    %v2790 = vmul.f32 %v2759, %v2779
    %v2791 = vmul.f32 %v2761, %v2781
    %v2792 = vmul.f32 %v2763, %v2783
    %v2793 = vmul.f32 %v2765, %v2785
    %2798 = vrot.lane.b32.xlu0 %v2790, 32
    %v2799 = vpop.permute.xlu0 %2798
    %2800 = vrot.lane.b32.xlu0 %v2791, 32
    %v2801 = vpop.permute.xlu0 %2800
    %2802 = vrot.lane.b32.xlu0 %v2792, 32
    %v2803 = vpop.permute.xlu0 %2802
    %2804 = vrot.lane.b32.xlu0 %v2793, 32
    %v2805 = vpop.permute.xlu0 %2804
    %v2810 = vadd.f32 %v2770, %v2799
    %v2811 = vadd.f32 %v2771, %v2801
    %v2812 = vadd.f32 %v2772, %v2803
    %v2813 = vadd.f32 %v2773, %v2805
    %v2814 = vtanh.pop %v2810
    %v2815 = vtanh.pop %v2811
    %v2816 = vtanh.pop %v2812
    %v2817 = vtanh.pop %v2813
    %2822 = vrot.lane.b32.xlu0 %v2814, 64
    %v2823 = vpop.permute.xlu0 %2822
    %2824 = vrot.lane.b32.xlu0 %v2815, 64
    %v2825 = vpop.permute.xlu0 %2824
    %2826 = vrot.lane.b32.xlu0 %v2816, 64
    %v2827 = vpop.permute.xlu0 %2826
    %2828 = vrot.lane.b32.xlu0 %v2817, 64
    %v2829 = vpop.permute.xlu0 %2828
    %v2834 = vmul.f32 %v2759, %v2823
    %v2835 = vmul.f32 %v2761, %v2825
    %v2836 = vmul.f32 %v2763, %v2827
    %v2837 = vmul.f32 %v2765, %v2829
    %v2838 = vpack.c.bf16 %v2835, %v2834
    %v2839 = vpack.c.bf16 %v2837, %v2836
    %2842 = vrot.lane.b32.xlu0 %v2838, 32
    %v2843 = vpop.permute.xlu0 %2842
    %2844 = vrot.lane.b32.xlu0 %v2839, 32
    %v2845 = vpop.permute.xlu0 %2844
    %v2847 = vsel %vm256, %v2843, 0
    %v2850 = vsel %vm256, %v2845, 0
    %2852 = vmatprep.subr.bf16.mxu0 0
    %2853 = vmatpush1.bf16.msra.mxu0 %v552
    %2854 = vmatprep.subr.bf16.mxu0 0
    %2855 = vmatpush1.bf16.msra.mxu0 %v553
    %2856 = vmatprep.subr.bf16.mxu0 0
    %2857 = vmatpush1.bf16.msra.mxu0 0
    %2858 = vmatprep.subr.bf16.mxu0 0
    %2859 = vmatpush1.bf16.msra.mxu0 0
    %2860 = vmatprep.subr.bf16.mxu0 0
    %2861 = vmatpush1.bf16.msra.mxu0 0
    %2862 = vmatprep.subr.bf16.mxu0 0
    %2863 = vmatpush1.bf16.msra.mxu0 0
    %2864 = vmatprep.subr.bf16.mxu0 0
    %2865 = vmatpush1.bf16.msra.mxu0 0
    %2866 = vmatprep.subr.bf16.mxu0 0
    %2867 = vmatpush1.bf16.msra.mxu0 0
    %2868 = vmatprep.subr.bf16.mxu0 0
    %2869 = vmatpush1.bf16.msra.mxu0 0
    %2870 = vmatprep.subr.bf16.mxu0 0
    %2871 = vmatpush1.bf16.msra.mxu0 0
    %2872 = vmatprep.subr.bf16.mxu0 0
    %2873 = vmatpush1.bf16.msra.mxu0 0
    %2874 = vmatprep.subr.bf16.mxu0 0
    %2875 = vmatpush1.bf16.msra.mxu0 0
    %2876 = vmatprep.subr.bf16.mxu0 0
    %2877 = vmatpush1.bf16.msra.mxu0 0
    %2878 = vmatprep.subr.bf16.mxu0 0
    %2879 = vmatpush1.bf16.msra.mxu0 0
    %2880 = vmatprep.subr.bf16.mxu0 0
    %2881 = vmatpush1.bf16.msra.mxu0 0
    %2882 = vmatprep.subr.bf16.mxu0 0
    %2883 = vmatpush1.bf16.msra.mxu0 0
    %2884 = vmatprep.mubr.bf16.mxu0 0
    %2885 = vmatmul.mubr.bf16.gmra.mrb[0].mxu0 %v2847
    %v2886 = vpop.f32.mrb[0].mxu0
    %v2887 = vadd.f32 %v522, %v2886
    %v2888 = vpop.f32.mrb[0].mxu0
    %v2889 = vpop.f32.mrb[0].mxu0
    %v2890 = vadd.f32 %v522, %v2889
    %v2891 = vpop.f32.mrb[0].mxu0
    %2892 = vmatprep.mubr.bf16.mxu0 0
    %2893 = vmatmul.mubr.bf16.gmra.mrb[0].mxu0 %v2850
    %v2894 = vpop.f32.mrb[0].mxu0
    %v2895 = vadd.f32 %v522, %v2894
    %v2896 = vpop.f32.mrb[0].mxu0
    %v2897 = vpop.f32.mrb[0].mxu0
    %v2898 = vadd.f32 %v522, %v2897
    %v2899 = vpop.f32.mrb[0].mxu0
    %2900 = vdwg.mxu0
    %2901 = vmatprep.subr.bf16.mxu0 0
    %2902 = vmatpush1.bf16.msra.mxu0 %v621
    %2903 = vmatprep.subr.bf16.mxu0 0
    %2904 = vmatpush1.bf16.msra.mxu0 %v622
    %2905 = vmatprep.subr.bf16.mxu0 0
    %2906 = vmatpush1.bf16.msra.mxu0 0
    %2907 = vmatprep.subr.bf16.mxu0 0
    %2908 = vmatpush1.bf16.msra.mxu0 0
    %2909 = vmatprep.subr.bf16.mxu0 0
    %2910 = vmatpush1.bf16.msra.mxu0 0
    %2911 = vmatprep.subr.bf16.mxu0 0
    %2912 = vmatpush1.bf16.msra.mxu0 0
    %2913 = vmatprep.subr.bf16.mxu0 0
    %2914 = vmatpush1.bf16.msra.mxu0 0
    %2915 = vmatprep.subr.bf16.mxu0 0
    %2916 = vmatpush1.bf16.msra.mxu0 0
    %2917 = vmatprep.subr.bf16.mxu0 0
    %2918 = vmatpush1.bf16.msra.mxu0 0
    %2919 = vmatprep.subr.bf16.mxu0 0
    %2920 = vmatpush1.bf16.msra.mxu0 0
    %2921 = vmatprep.subr.bf16.mxu0 0
    %2922 = vmatpush1.bf16.msra.mxu0 0
    %2923 = vmatprep.subr.bf16.mxu0 0
    %2924 = vmatpush1.bf16.msra.mxu0 0
    %2925 = vmatprep.subr.bf16.mxu0 0
    %2926 = vmatpush1.bf16.msra.mxu0 0
    %2927 = vmatprep.subr.bf16.mxu0 0
    %2928 = vmatpush1.bf16.msra.mxu0 0
    %2929 = vmatprep.subr.bf16.mxu0 0
    %2930 = vmatpush1.bf16.msra.mxu0 0
    %2931 = vmatprep.subr.bf16.mxu0 0
    %2932 = vmatpush1.bf16.msra.mxu0 0
    %2933 = vmatprep.mubr.bf16.mxu0 0
    %2934 = vmatmul.mubr.bf16.gmra.mrb[0].mxu0 %v2688
    %v2935 = vpop.f32.mrb[0].mxu0
    %v2936 = vadd.f32 0.0, %v2935
    %v2937 = vpop.f32.mrb[0].mxu0
    %v2938 = vpop.f32.mrb[0].mxu0
    %v2939 = vadd.f32 0.0, %v2938
    %v2940 = vpop.f32.mrb[0].mxu0
    %2941 = vmatprep.mubr.bf16.mxu0 0
    %2942 = vmatmul.mubr.bf16.gmra.mrb[0].mxu0 %v2691
    %v2943 = vpop.f32.mrb[0].mxu0
    %v2944 = vadd.f32 0.0, %v2943
    %v2945 = vpop.f32.mrb[0].mxu0
    %v2946 = vpop.f32.mrb[0].mxu0
    %v2947 = vadd.f32 0.0, %v2946
    %v2948 = vpop.f32.mrb[0].mxu0
    %2949 = vdwg.mxu0
    %v2950 = vadd.f32 %v497, %v2936
    %v2951 = vadd.f32 %v498, %v2939
    %v2952 = vadd.f32 %v499, %v2944
    %v2953 = vadd.f32 %v500, %v2947
    %v2954 = vxor.u32 %v2950, 2147483648
    %v2955 = vxor.u32 %v2951, 2147483648
    %v2956 = vxor.u32 %v2952, 2147483648
    %v2957 = vxor.u32 %v2953, 2147483648
    %v2958 = vmul.f32 %v2954, 1.442695
    %v2959 = vpow.pop %v2958
    %v2960 = vmul.f32 %v2955, 1.442695
    %v2961 = vpow.pop %v2960
    %v2962 = vmul.f32 %v2956, 1.442695
    %v2963 = vpow.pop %v2962
    %v2964 = vmul.f32 %v2957, 1.442695
    %v2965 = vpow.pop %v2964
    %v2966 = vadd.f32 %v2959, 1.0
    %v2967 = vadd.f32 %v2961, 1.0
    %v2968 = vadd.f32 %v2963, 1.0
    %v2969 = vadd.f32 %v2965, 1.0
    %v2970 = vrcp.pop %v2966
    %v2971 = vmul.f32 1.0, %v2970
    %v2972 = vrcp.pop %v2967
    %v2973 = vmul.f32 1.0, %v2972
    %v2974 = vrcp.pop %v2968
    %v2975 = vmul.f32 1.0, %v2974
    %v2976 = vrcp.pop %v2969
    %v2977 = vmul.f32 1.0, %v2976
    %v2978 = vtanh.pop %v2950
    %v2979 = vtanh.pop %v2951
    %v2980 = vtanh.pop %v2952
    %v2981 = vtanh.pop %v2953
    %v2982 = vmul.f32 %v2971, %v2651
    %v2983 = vmul.f32 %v2973, %v2652
    %v2984 = vmul.f32 %v2975, %v2653
    %v2985 = vmul.f32 %v2977, %v2654
    %2990 = vrot.lane.b32.xlu0 %v2978, 64
    %v2991 = vpop.permute.xlu0 %2990
    %2992 = vrot.lane.b32.xlu0 %v2979, 64
    %v2993 = vpop.permute.xlu0 %2992
    %2994 = vrot.lane.b32.xlu0 %v2980, 64
    %v2995 = vpop.permute.xlu0 %2994
    %2996 = vrot.lane.b32.xlu0 %v2981, 64
    %v2997 = vpop.permute.xlu0 %2996
    %v3002 = vmul.f32 %v2971, %v2991
    %v3003 = vmul.f32 %v2973, %v2993
    %v3004 = vmul.f32 %v2975, %v2995
    %v3005 = vmul.f32 %v2977, %v2997
    %3010 = vrot.lane.b32.xlu0 %v3002, 32
    %v3011 = vpop.permute.xlu0 %3010
    %3012 = vrot.lane.b32.xlu0 %v3003, 32
    %v3013 = vpop.permute.xlu0 %3012
    %3014 = vrot.lane.b32.xlu0 %v3004, 32
    %v3015 = vpop.permute.xlu0 %3014
    %3016 = vrot.lane.b32.xlu0 %v3005, 32
    %v3017 = vpop.permute.xlu0 %3016
    %v3022 = vadd.f32 %v2982, %v3011
    %v3023 = vadd.f32 %v2983, %v3013
    %v3024 = vadd.f32 %v2984, %v3015
    %v3025 = vadd.f32 %v2985, %v3017
    %v3026 = vtanh.pop %v3022
    %v3027 = vtanh.pop %v3023
    %v3028 = vtanh.pop %v3024
    %v3029 = vtanh.pop %v3025
    %3034 = vrot.lane.b32.xlu0 %v3026, 64
    %v3035 = vpop.permute.xlu0 %3034
    %3036 = vrot.lane.b32.xlu0 %v3027, 64
    %v3037 = vpop.permute.xlu0 %3036
    %3038 = vrot.lane.b32.xlu0 %v3028, 64
    %v3039 = vpop.permute.xlu0 %3038
    %3040 = vrot.lane.b32.xlu0 %v3029, 64
    %v3041 = vpop.permute.xlu0 %3040
    %v3046 = vmul.f32 %v2971, %v3035
    %v3047 = vmul.f32 %v2973, %v3037
    %v3048 = vmul.f32 %v2975, %v3039
    %v3049 = vmul.f32 %v2977, %v3041
    %v3050 = vpack.c.bf16 %v3047, %v3046
    %v3051 = vpack.c.bf16 %v3049, %v3048
    %3054 = vrot.lane.b32.xlu0 %v3050, 32
    %v3055 = vpop.permute.xlu0 %3054
    %3056 = vrot.lane.b32.xlu0 %v3051, 32
    %v3057 = vpop.permute.xlu0 %3056
    %v3059 = vsel %vm256, %v3055, 0
    %v3062 = vsel %vm256, %v3057, 0
    %3064 = vmatprep.subr.bf16.mxu0 0
    %3065 = vmatpush1.bf16.msra.mxu0 %v812
    %3066 = vmatprep.subr.bf16.mxu0 0
    %3067 = vmatpush1.bf16.msra.mxu0 %v813
    %3068 = vmatprep.subr.bf16.mxu0 0
    %3069 = vmatpush1.bf16.msra.mxu0 0
    %3070 = vmatprep.subr.bf16.mxu0 0
    %3071 = vmatpush1.bf16.msra.mxu0 0
    %3072 = vmatprep.subr.bf16.mxu0 0
    %3073 = vmatpush1.bf16.msra.mxu0 0
    %3074 = vmatprep.subr.bf16.mxu0 0
    %3075 = vmatpush1.bf16.msra.mxu0 0
    %3076 = vmatprep.subr.bf16.mxu0 0
    %3077 = vmatpush1.bf16.msra.mxu0 0
    %3078 = vmatprep.subr.bf16.mxu0 0
    %3079 = vmatpush1.bf16.msra.mxu0 0
    %3080 = vmatprep.subr.bf16.mxu0 0
    %3081 = vmatpush1.bf16.msra.mxu0 0
    %3082 = vmatprep.subr.bf16.mxu0 0
    %3083 = vmatpush1.bf16.msra.mxu0 0
    %3084 = vmatprep.subr.bf16.mxu0 0
    %3085 = vmatpush1.bf16.msra.mxu0 0
    %3086 = vmatprep.subr.bf16.mxu0 0
    %3087 = vmatpush1.bf16.msra.mxu0 0
    %3088 = vmatprep.subr.bf16.mxu0 0
    %3089 = vmatpush1.bf16.msra.mxu0 0
    %3090 = vmatprep.subr.bf16.mxu0 0
    %3091 = vmatpush1.bf16.msra.mxu0 0
    %3092 = vmatprep.subr.bf16.mxu0 0
    %3093 = vmatpush1.bf16.msra.mxu0 0
    %3094 = vmatprep.subr.bf16.mxu0 0
    %3095 = vmatpush1.bf16.msra.mxu0 0
    %3096 = vmatprep.mubr.bf16.mxu0 0
    %3097 = vmatmul.mubr.bf16.gmra.mrb[0].mxu0 %v3059
    %v3098 = vpop.f32.mrb[0].mxu0
    %v3099 = vadd.f32 %v2887, %v3098
    %v3100 = vpop.f32.mrb[0].mxu0
    %v3101 = vpop.f32.mrb[0].mxu0
    %v3102 = vadd.f32 %v2890, %v3101
    %v3103 = vpop.f32.mrb[0].mxu0
    %3104 = vmatprep.mubr.bf16.mxu0 0
    %3105 = vmatmul.mubr.bf16.gmra.mrb[0].mxu0 %v3062
    %v3106 = vpop.f32.mrb[0].mxu0
    %v3107 = vadd.f32 %v2895, %v3106
    %v3108 = vpop.f32.mrb[0].mxu0
    %v3109 = vpop.f32.mrb[0].mxu0
    %v3110 = vadd.f32 %v2898, %v3109
    %v3111 = vpop.f32.mrb[0].mxu0
    %3112 = vdwg.mxu0
    %v3113 = vxor.u32 %v3099, 2147483648
    %v3114 = vxor.u32 %v3102, 2147483648
    %v3115 = vxor.u32 %v3107, 2147483648
    %v3116 = vxor.u32 %v3110, 2147483648
    %v3117 = vmul.f32 %v3113, 1.442695
    %v3118 = vpow.pop %v3117
    %v3119 = vmul.f32 %v3114, 1.442695
    %v3120 = vpow.pop %v3119
    %v3121 = vmul.f32 %v3115, 1.442695
    %v3122 = vpow.pop %v3121
    %v3123 = vmul.f32 %v3116, 1.442695
    %v3124 = vpow.pop %v3123
    %v3125 = vadd.f32 %v3118, 1.0
    %v3126 = vadd.f32 %v3120, 1.0
    %v3127 = vadd.f32 %v3122, 1.0
    %v3128 = vadd.f32 %v3124, 1.0
    %v3129 = vrcp.pop %v3125
    %v3130 = vmul.f32 1.0, %v3129
    %v3131 = vrcp.pop %v3126
    %v3132 = vmul.f32 1.0, %v3131
    %v3133 = vrcp.pop %v3127
    %v3134 = vmul.f32 1.0, %v3133
    %v3135 = vrcp.pop %v3128
    %v3136 = vmul.f32 1.0, %v3135
    %v3137 = vtanh.pop %v3099
    %v3138 = vtanh.pop %v3102
    %v3139 = vtanh.pop %v3107
    %v3140 = vtanh.pop %v3110
    %v3141 = vmul.f32 %v3130, %v2810
    %v3142 = vmul.f32 %v3132, %v2811
    %v3143 = vmul.f32 %v3134, %v2812
    %v3144 = vmul.f32 %v3136, %v2813
    %3149 = vrot.lane.b32.xlu0 %v3137, 64
    %v3150 = vpop.permute.xlu0 %3149
    %3151 = vrot.lane.b32.xlu0 %v3138, 64
    %v3152 = vpop.permute.xlu0 %3151
    %3153 = vrot.lane.b32.xlu0 %v3139, 64
    %v3154 = vpop.permute.xlu0 %3153
    %3155 = vrot.lane.b32.xlu0 %v3140, 64
    %v3156 = vpop.permute.xlu0 %3155
    %v3161 = vmul.f32 %v3130, %v3150
    %v3162 = vmul.f32 %v3132, %v3152
    %v3163 = vmul.f32 %v3134, %v3154
    %v3164 = vmul.f32 %v3136, %v3156
    %3169 = vrot.lane.b32.xlu0 %v3161, 32
    %v3170 = vpop.permute.xlu0 %3169
    %3171 = vrot.lane.b32.xlu0 %v3162, 32
    %v3172 = vpop.permute.xlu0 %3171
    %3173 = vrot.lane.b32.xlu0 %v3163, 32
    %v3174 = vpop.permute.xlu0 %3173
    %3175 = vrot.lane.b32.xlu0 %v3164, 32
    %v3176 = vpop.permute.xlu0 %3175
    %v3181 = vadd.f32 %v3141, %v3170
    %v3182 = vadd.f32 %v3142, %v3172
    %v3183 = vadd.f32 %v3143, %v3174
    %v3184 = vadd.f32 %v3144, %v3176
    %v3185 = vtanh.pop %v3181
    %v3186 = vtanh.pop %v3182
    %v3187 = vtanh.pop %v3183
    %v3188 = vtanh.pop %v3184
    %3193 = vrot.lane.b32.xlu0 %v3185, 64
    %v3194 = vpop.permute.xlu0 %3193
    %3195 = vrot.lane.b32.xlu0 %v3186, 64
    %v3196 = vpop.permute.xlu0 %3195
    %3197 = vrot.lane.b32.xlu0 %v3187, 64
    %v3198 = vpop.permute.xlu0 %3197
    %3199 = vrot.lane.b32.xlu0 %v3188, 64
    %v3200 = vpop.permute.xlu0 %3199
    %v3205 = vmul.f32 %v3130, %v3194
    %v3206 = vmul.f32 %v3132, %v3196
    %v3207 = vmul.f32 %v3134, %v3198
    %v3208 = vmul.f32 %v3136, %v3200
    %v3209 = vpack.c.bf16 %v3206, %v3205
    %v3210 = vpack.c.bf16 %v3208, %v3207
    %3213 = vrot.lane.b32.xlu0 %v3209, 32
    %v3214 = vpop.permute.xlu0 %3213
    %3215 = vrot.lane.b32.xlu0 %v3210, 32
    %v3216 = vpop.permute.xlu0 %3215
    %v3218 = vsel %vm256, %v3214, 0
    %v3221 = vsel %vm256, %v3216, 0
    %3223 = vmatprep.subr.bf16.mxu0 0
    %3224 = vmatpush1.bf16.msra.mxu0 %v552
    %3225 = vmatprep.subr.bf16.mxu0 0
    %3226 = vmatpush1.bf16.msra.mxu0 %v553
    %3227 = vmatprep.subr.bf16.mxu0 0
    %3228 = vmatpush1.bf16.msra.mxu0 0
    %3229 = vmatprep.subr.bf16.mxu0 0
    %3230 = vmatpush1.bf16.msra.mxu0 0
    %3231 = vmatprep.subr.bf16.mxu0 0
    %3232 = vmatpush1.bf16.msra.mxu0 0
    %3233 = vmatprep.subr.bf16.mxu0 0
    %3234 = vmatpush1.bf16.msra.mxu0 0
    %3235 = vmatprep.subr.bf16.mxu0 0
    %3236 = vmatpush1.bf16.msra.mxu0 0
    %3237 = vmatprep.subr.bf16.mxu0 0
    %3238 = vmatpush1.bf16.msra.mxu0 0
    %3239 = vmatprep.subr.bf16.mxu0 0
    %3240 = vmatpush1.bf16.msra.mxu0 0
    %3241 = vmatprep.subr.bf16.mxu0 0
    %3242 = vmatpush1.bf16.msra.mxu0 0
    %3243 = vmatprep.subr.bf16.mxu0 0
    %3244 = vmatpush1.bf16.msra.mxu0 0
    %3245 = vmatprep.subr.bf16.mxu0 0
    %3246 = vmatpush1.bf16.msra.mxu0 0
    %3247 = vmatprep.subr.bf16.mxu0 0
    %3248 = vmatpush1.bf16.msra.mxu0 0
    %3249 = vmatprep.subr.bf16.mxu0 0
    %3250 = vmatpush1.bf16.msra.mxu0 0
    %3251 = vmatprep.subr.bf16.mxu0 0
    %3252 = vmatpush1.bf16.msra.mxu0 0
    %3253 = vmatprep.subr.bf16.mxu0 0
    %3254 = vmatpush1.bf16.msra.mxu0 0
    %3255 = vmatprep.mubr.bf16.mxu0 0
    %3256 = vmatmul.mubr.bf16.gmra.mrb[0].mxu0 %v3218
    %v3257 = vpop.f32.mrb[0].mxu0
    %v3258 = vadd.f32 %v522, %v3257
    %v3259 = vpop.f32.mrb[0].mxu0
    %v3260 = vpop.f32.mrb[0].mxu0
    %v3261 = vadd.f32 %v522, %v3260
    %v3262 = vpop.f32.mrb[0].mxu0
    %3263 = vmatprep.mubr.bf16.mxu0 0
    %3264 = vmatmul.mubr.bf16.gmra.mrb[0].mxu0 %v3221
    %v3265 = vpop.f32.mrb[0].mxu0
    %v3266 = vadd.f32 %v522, %v3265
    %v3267 = vpop.f32.mrb[0].mxu0
    %v3268 = vpop.f32.mrb[0].mxu0
    %v3269 = vadd.f32 %v522, %v3268
    %v3270 = vpop.f32.mrb[0].mxu0
    %3271 = vdwg.mxu0
    %3272 = vmatprep.subr.bf16.mxu0 0
    %3273 = vmatpush1.bf16.msra.mxu0 %v621
    %3274 = vmatprep.subr.bf16.mxu0 0
    %3275 = vmatpush1.bf16.msra.mxu0 %v622
    %3276 = vmatprep.subr.bf16.mxu0 0
    %3277 = vmatpush1.bf16.msra.mxu0 0
    %3278 = vmatprep.subr.bf16.mxu0 0
    %3279 = vmatpush1.bf16.msra.mxu0 0
    %3280 = vmatprep.subr.bf16.mxu0 0
    %3281 = vmatpush1.bf16.msra.mxu0 0
    %3282 = vmatprep.subr.bf16.mxu0 0
    %3283 = vmatpush1.bf16.msra.mxu0 0
    %3284 = vmatprep.subr.bf16.mxu0 0
    %3285 = vmatpush1.bf16.msra.mxu0 0
    %3286 = vmatprep.subr.bf16.mxu0 0
    %3287 = vmatpush1.bf16.msra.mxu0 0
    %3288 = vmatprep.subr.bf16.mxu0 0
    %3289 = vmatpush1.bf16.msra.mxu0 0
    %3290 = vmatprep.subr.bf16.mxu0 0
    %3291 = vmatpush1.bf16.msra.mxu0 0
    %3292 = vmatprep.subr.bf16.mxu0 0
    %3293 = vmatpush1.bf16.msra.mxu0 0
    %3294 = vmatprep.subr.bf16.mxu0 0
    %3295 = vmatpush1.bf16.msra.mxu0 0
    %3296 = vmatprep.subr.bf16.mxu0 0
    %3297 = vmatpush1.bf16.msra.mxu0 0
    %3298 = vmatprep.subr.bf16.mxu0 0
    %3299 = vmatpush1.bf16.msra.mxu0 0
    %3300 = vmatprep.subr.bf16.mxu0 0
    %3301 = vmatpush1.bf16.msra.mxu0 0
    %3302 = vmatprep.subr.bf16.mxu0 0
    %3303 = vmatpush1.bf16.msra.mxu0 0
    %3304 = vmatprep.mubr.bf16.mxu0 0
    %3305 = vmatmul.mubr.bf16.gmra.mrb[0].mxu0 %v3059
    %v3306 = vpop.f32.mrb[0].mxu0
    %v3307 = vadd.f32 0.0, %v3306
    %v3308 = vpop.f32.mrb[0].mxu0
    %v3309 = vpop.f32.mrb[0].mxu0
    %v3310 = vadd.f32 0.0, %v3309
    %v3311 = vpop.f32.mrb[0].mxu0
    %3312 = vmatprep.mubr.bf16.mxu0 0
    %3313 = vmatmul.mubr.bf16.gmra.mrb[0].mxu0 %v3062
    %v3314 = vpop.f32.mrb[0].mxu0
    %v3315 = vadd.f32 0.0, %v3314
    %v3316 = vpop.f32.mrb[0].mxu0
    %v3317 = vpop.f32.mrb[0].mxu0
    %v3318 = vadd.f32 0.0, %v3317
    %v3319 = vpop.f32.mrb[0].mxu0
    %3320 = vdwg.mxu0
    %v3321 = vadd.f32 %v501, %v3307
    %v3322 = vadd.f32 %v502, %v3310
    %v3323 = vadd.f32 %v503, %v3315
    %v3324 = vadd.f32 %v504, %v3318
    %v3325 = vxor.u32 %v3321, 2147483648
    %v3326 = vxor.u32 %v3322, 2147483648
    %v3327 = vxor.u32 %v3323, 2147483648
    %v3328 = vxor.u32 %v3324, 2147483648
    %v3329 = vmul.f32 %v3325, 1.442695
    %v3330 = vpow.pop %v3329
    %v3331 = vmul.f32 %v3326, 1.442695
    %v3332 = vpow.pop %v3331
    %v3333 = vmul.f32 %v3327, 1.442695
    %v3334 = vpow.pop %v3333
    %v3335 = vmul.f32 %v3328, 1.442695
    %v3336 = vpow.pop %v3335
    %v3337 = vadd.f32 %v3330, 1.0
    %v3338 = vadd.f32 %v3332, 1.0
    %v3339 = vadd.f32 %v3334, 1.0
    %v3340 = vadd.f32 %v3336, 1.0
    %v3341 = vrcp.pop %v3337
    %v3342 = vmul.f32 1.0, %v3341
    %v3343 = vrcp.pop %v3338
    %v3344 = vmul.f32 1.0, %v3343
    %v3345 = vrcp.pop %v3339
    %v3346 = vmul.f32 1.0, %v3345
    %v3347 = vrcp.pop %v3340
    %v3348 = vmul.f32 1.0, %v3347
    %v3349 = vtanh.pop %v3321
    %v3350 = vtanh.pop %v3322
    %v3351 = vtanh.pop %v3323
    %v3352 = vtanh.pop %v3324
    %v3353 = vmul.f32 %v3342, %v3022
    %v3354 = vmul.f32 %v3344, %v3023
    %v3355 = vmul.f32 %v3346, %v3024
    %v3356 = vmul.f32 %v3348, %v3025
    %3361 = vrot.lane.b32.xlu0 %v3349, 64
    %v3362 = vpop.permute.xlu0 %3361
    %3363 = vrot.lane.b32.xlu0 %v3350, 64
    %v3364 = vpop.permute.xlu0 %3363
    %3365 = vrot.lane.b32.xlu0 %v3351, 64
    %v3366 = vpop.permute.xlu0 %3365
    %3367 = vrot.lane.b32.xlu0 %v3352, 64
    %v3368 = vpop.permute.xlu0 %3367
    %v3373 = vmul.f32 %v3342, %v3362
    %v3374 = vmul.f32 %v3344, %v3364
    %v3375 = vmul.f32 %v3346, %v3366
    %v3376 = vmul.f32 %v3348, %v3368
    %3381 = vrot.lane.b32.xlu0 %v3373, 32
    %v3382 = vpop.permute.xlu0 %3381
    %3383 = vrot.lane.b32.xlu0 %v3374, 32
    %v3384 = vpop.permute.xlu0 %3383
    %3385 = vrot.lane.b32.xlu0 %v3375, 32
    %v3386 = vpop.permute.xlu0 %3385
    %3387 = vrot.lane.b32.xlu0 %v3376, 32
    %v3388 = vpop.permute.xlu0 %3387
    %v3393 = vadd.f32 %v3353, %v3382
    %v3394 = vadd.f32 %v3354, %v3384
    %v3395 = vadd.f32 %v3355, %v3386
    %v3396 = vadd.f32 %v3356, %v3388
    %v3397 = vtanh.pop %v3393
    %v3398 = vtanh.pop %v3394
    %v3399 = vtanh.pop %v3395
    %v3400 = vtanh.pop %v3396
    %3405 = vrot.lane.b32.xlu0 %v3397, 64
    %v3406 = vpop.permute.xlu0 %3405
    %3407 = vrot.lane.b32.xlu0 %v3398, 64
    %v3408 = vpop.permute.xlu0 %3407
    %3409 = vrot.lane.b32.xlu0 %v3399, 64
    %v3410 = vpop.permute.xlu0 %3409
    %3411 = vrot.lane.b32.xlu0 %v3400, 64
    %v3412 = vpop.permute.xlu0 %3411
    %v3417 = vmul.f32 %v3342, %v3406
    %v3418 = vmul.f32 %v3344, %v3408
    %v3419 = vmul.f32 %v3346, %v3410
    %v3420 = vmul.f32 %v3348, %v3412
    %v3421 = vpack.c.bf16 %v3418, %v3417
    %v3422 = vpack.c.bf16 %v3420, %v3419
    %3425 = vrot.lane.b32.xlu0 %v3421, 32
    %v3426 = vpop.permute.xlu0 %3425
    %3427 = vrot.lane.b32.xlu0 %v3422, 32
    %v3428 = vpop.permute.xlu0 %3427
    %v3430 = vsel %vm256, %v3426, 0
    %v3433 = vsel %vm256, %v3428, 0
    %3435 = vmatprep.subr.bf16.mxu0 0
    %3436 = vmatpush1.bf16.msra.mxu0 %v812
    %3437 = vmatprep.subr.bf16.mxu0 0
    %3438 = vmatpush1.bf16.msra.mxu0 %v813
    %3439 = vmatprep.subr.bf16.mxu0 0
    %3440 = vmatpush1.bf16.msra.mxu0 0
    %3441 = vmatprep.subr.bf16.mxu0 0
    %3442 = vmatpush1.bf16.msra.mxu0 0
    %3443 = vmatprep.subr.bf16.mxu0 0
    %3444 = vmatpush1.bf16.msra.mxu0 0
    %3445 = vmatprep.subr.bf16.mxu0 0
    %3446 = vmatpush1.bf16.msra.mxu0 0
    %3447 = vmatprep.subr.bf16.mxu0 0
    %3448 = vmatpush1.bf16.msra.mxu0 0
    %3449 = vmatprep.subr.bf16.mxu0 0
    %3450 = vmatpush1.bf16.msra.mxu0 0
    %3451 = vmatprep.subr.bf16.mxu0 0
    %3452 = vmatpush1.bf16.msra.mxu0 0
    %3453 = vmatprep.subr.bf16.mxu0 0
    %3454 = vmatpush1.bf16.msra.mxu0 0
    %3455 = vmatprep.subr.bf16.mxu0 0
    %3456 = vmatpush1.bf16.msra.mxu0 0
    %3457 = vmatprep.subr.bf16.mxu0 0
    %3458 = vmatpush1.bf16.msra.mxu0 0
    %3459 = vmatprep.subr.bf16.mxu0 0
    %3460 = vmatpush1.bf16.msra.mxu0 0
    %3461 = vmatprep.subr.bf16.mxu0 0
    %3462 = vmatpush1.bf16.msra.mxu0 0
    %3463 = vmatprep.subr.bf16.mxu0 0
    %3464 = vmatpush1.bf16.msra.mxu0 0
    %3465 = vmatprep.subr.bf16.mxu0 0
    %3466 = vmatpush1.bf16.msra.mxu0 0
    %3467 = vmatprep.mubr.bf16.mxu0 0
    %3468 = vmatmul.mubr.bf16.gmra.mrb[0].mxu0 %v3430
    %v3469 = vpop.f32.mrb[0].mxu0
    %v3470 = vadd.f32 %v3258, %v3469
    %v3471 = vpop.f32.mrb[0].mxu0
    %v3472 = vpop.f32.mrb[0].mxu0
    %v3473 = vadd.f32 %v3261, %v3472
    %v3474 = vpop.f32.mrb[0].mxu0
    %3475 = vmatprep.mubr.bf16.mxu0 0
    %3476 = vmatmul.mubr.bf16.gmra.mrb[0].mxu0 %v3433
    %v3477 = vpop.f32.mrb[0].mxu0
    %v3478 = vadd.f32 %v3266, %v3477
    %v3479 = vpop.f32.mrb[0].mxu0
    %v3480 = vpop.f32.mrb[0].mxu0
    %v3481 = vadd.f32 %v3269, %v3480
    %v3482 = vpop.f32.mrb[0].mxu0
    %3483 = vdwg.mxu0
    %v3484 = vxor.u32 %v3470, 2147483648
    %v3485 = vxor.u32 %v3473, 2147483648
    %v3486 = vxor.u32 %v3478, 2147483648
    %v3487 = vxor.u32 %v3481, 2147483648
    %v3488 = vmul.f32 %v3484, 1.442695
    %v3489 = vpow.pop %v3488
    %v3490 = vmul.f32 %v3485, 1.442695
    %v3491 = vpow.pop %v3490
    %v3492 = vmul.f32 %v3486, 1.442695
    %v3493 = vpow.pop %v3492
    %v3494 = vmul.f32 %v3487, 1.442695
    %v3495 = vpow.pop %v3494
    %v3496 = vadd.f32 %v3489, 1.0
    %v3497 = vadd.f32 %v3491, 1.0
    %v3498 = vadd.f32 %v3493, 1.0
    %v3499 = vadd.f32 %v3495, 1.0
    %v3500 = vrcp.pop %v3496
    %v3501 = vmul.f32 1.0, %v3500
    %v3502 = vrcp.pop %v3497
    %v3503 = vmul.f32 1.0, %v3502
    %v3504 = vrcp.pop %v3498
    %v3505 = vmul.f32 1.0, %v3504
    %v3506 = vrcp.pop %v3499
    %v3507 = vmul.f32 1.0, %v3506
    %v3508 = vtanh.pop %v3470
    %v3509 = vtanh.pop %v3473
    %v3510 = vtanh.pop %v3478
    %v3511 = vtanh.pop %v3481
    %v3512 = vmul.f32 %v3501, %v3181
    %v3513 = vmul.f32 %v3503, %v3182
    %v3514 = vmul.f32 %v3505, %v3183
    %v3515 = vmul.f32 %v3507, %v3184
    %3520 = vrot.lane.b32.xlu0 %v3508, 64
    %v3521 = vpop.permute.xlu0 %3520
    %3522 = vrot.lane.b32.xlu0 %v3509, 64
    %v3523 = vpop.permute.xlu0 %3522
    %3524 = vrot.lane.b32.xlu0 %v3510, 64
    %v3525 = vpop.permute.xlu0 %3524
    %3526 = vrot.lane.b32.xlu0 %v3511, 64
    %v3527 = vpop.permute.xlu0 %3526
    %v3532 = vmul.f32 %v3501, %v3521
    %v3533 = vmul.f32 %v3503, %v3523
    %v3534 = vmul.f32 %v3505, %v3525
    %v3535 = vmul.f32 %v3507, %v3527
    %3540 = vrot.lane.b32.xlu0 %v3532, 32
    %v3541 = vpop.permute.xlu0 %3540
    %3542 = vrot.lane.b32.xlu0 %v3533, 32
    %v3543 = vpop.permute.xlu0 %3542
    %3544 = vrot.lane.b32.xlu0 %v3534, 32
    %v3545 = vpop.permute.xlu0 %3544
    %3546 = vrot.lane.b32.xlu0 %v3535, 32
    %v3547 = vpop.permute.xlu0 %3546
    %v3552 = vadd.f32 %v3512, %v3541
    %v3553 = vadd.f32 %v3513, %v3543
    %v3554 = vadd.f32 %v3514, %v3545
    %v3555 = vadd.f32 %v3515, %v3547
    %v3556 = vtanh.pop %v3552
    %v3557 = vtanh.pop %v3553
    %v3558 = vtanh.pop %v3554
    %v3559 = vtanh.pop %v3555
    %3564 = vrot.lane.b32.xlu0 %v3556, 64
    %v3565 = vpop.permute.xlu0 %3564
    %3566 = vrot.lane.b32.xlu0 %v3557, 64
    %v3567 = vpop.permute.xlu0 %3566
    %3568 = vrot.lane.b32.xlu0 %v3558, 64
    %v3569 = vpop.permute.xlu0 %3568
    %3570 = vrot.lane.b32.xlu0 %v3559, 64
    %v3571 = vpop.permute.xlu0 %3570
    %v3576 = vmul.f32 %v3501, %v3565
    %v3577 = vmul.f32 %v3503, %v3567
    %v3578 = vmul.f32 %v3505, %v3569
    %v3579 = vmul.f32 %v3507, %v3571
    %3584 = vrot.lane.b32.xlu0 %v3417, 32
    %v3585 = vpop.permute.xlu0 %3584
    %3586 = vrot.lane.b32.xlu0 %v3418, 32
    %v3587 = vpop.permute.xlu0 %3586
    %3588 = vrot.lane.b32.xlu0 %v3419, 32
    %v3589 = vpop.permute.xlu0 %3588
    %3590 = vrot.lane.b32.xlu0 %v3420, 32
    %v3591 = vpop.permute.xlu0 %3590
    %3596 = vst.msk [vmem:[#allocation15] sm:$0xff] %vm256, %v3585
    %3597 = vst.msk [vmem:[#allocation15 + $0x8] sm:$0xff] %vm256, %v3587
    %3598 = vst.msk [vmem:[#allocation15 + $0x10] sm:$0xff] %vm256, %v3589
    %3599 = vst.msk [vmem:[#allocation15 + $0x18] sm:$0xff] %vm256, %v3591
    %3604 = vrot.lane.b32.xlu0 %v3393, 96
    %v3605 = vpop.permute.xlu0 %3604
    %3606 = vrot.lane.b32.xlu0 %v3394, 96
    %v3607 = vpop.permute.xlu0 %3606
    %3608 = vrot.lane.b32.xlu0 %v3395, 96
    %v3609 = vpop.permute.xlu0 %3608
    %3610 = vrot.lane.b32.xlu0 %v3396, 96
    %v3611 = vpop.permute.xlu0 %3610
    %3616 = vst.msk [vmem:[#allocation17] sm:$0xff] %vm256, %v3605
    %3617 = vst.msk [vmem:[#allocation17 + $0x8] sm:$0xff] %vm256, %v3607
    %3618 = vst.msk [vmem:[#allocation17 + $0x10] sm:$0xff] %vm256, %v3609
    %3619 = vst.msk [vmem:[#allocation17 + $0x18] sm:$0xff] %vm256, %v3611
    %3624 = vrot.lane.b32.xlu0 %v3576, 32
    %v3625 = vpop.permute.xlu0 %3624
    %3626 = vrot.lane.b32.xlu0 %v3577, 32
    %v3627 = vpop.permute.xlu0 %3626
    %3628 = vrot.lane.b32.xlu0 %v3578, 32
    %v3629 = vpop.permute.xlu0 %3628
    %3630 = vrot.lane.b32.xlu0 %v3579, 32
    %v3631 = vpop.permute.xlu0 %3630
    %s3636 = scalar_lea.vmem [#allocation15], 32
    %3637 = vst.msk [vmem:[%s3636] sm:$0xff] %vm256, %v3625
    %3638 = vst.msk [vmem:[%s3636 + $0x8] sm:$0xff] %vm256, %v3627
    %3639 = vst.msk [vmem:[%s3636 + $0x10] sm:$0xff] %vm256, %v3629
    %3640 = vst.msk [vmem:[%s3636 + $0x18] sm:$0xff] %vm256, %v3631
    %3645 = vrot.lane.b32.xlu0 %v3552, 96
    %v3646 = vpop.permute.xlu0 %3645
    %3647 = vrot.lane.b32.xlu0 %v3553, 96
    %v3648 = vpop.permute.xlu0 %3647
    %3649 = vrot.lane.b32.xlu0 %v3554, 96
    %v3650 = vpop.permute.xlu0 %3649
    %3651 = vrot.lane.b32.xlu0 %v3555, 96
    %v3652 = vpop.permute.xlu0 %3651
    %s3657 = scalar_lea.vmem [#allocation17], 32
    %3658 = vst.msk [vmem:[%s3657] sm:$0xff] %vm256, %v3646
    %3659 = vst.msk [vmem:[%s3657 + $0x8] sm:$0xff] %vm256, %v3648
    %3660 = vst.msk [vmem:[%s3657 + $0x10] sm:$0xff] %vm256, %v3650
    %3661 = vst.msk [vmem:[%s3657 + $0x18] sm:$0xff] %vm256, %v3652
    %v3662 = vld [vmem:[%s7] sm:$0x1]
    %v3664 = vlaneseq
    %v3665 = vshrl.u32 %v3664, 7
    %v3666 = vsub.s32 0, %v3665
    %v3667 = vrot.slane %v3662, %v3666
    %3668 = vrot.lane.b32.xlu0 %v3667, 96
    %v3669 = vpop.permute.xlu0 %3668
    %v3671 = vmul.f32 %v3576, %v3669
    %v3672 = vmul.f32 %v3577, %v3669
    %v3673 = vmul.f32 %v3578, %v3669
    %v3674 = vmul.f32 %v3579, %v3669
    %3679 = vrot.lane.b32.xlu0 %v3671, 32
    %v3680 = vpop.permute.xlu0 %3679
    %3681 = vrot.lane.b32.xlu0 %v3672, 32
    %v3682 = vpop.permute.xlu0 %3681
    %3683 = vrot.lane.b32.xlu0 %v3673, 32
    %v3684 = vpop.permute.xlu0 %3683
    %3685 = vrot.lane.b32.xlu0 %v3674, 32
    %v3686 = vpop.permute.xlu0 %3685
    %v3691 = vsel %vm256, %v3680, 0.0
    %3692 = vadd.xlane.f32.xlu0 %v3691
    %v3693 = vpop.xlane.xlu0 %3692
    %v3694 = vsel %vm256, %v3682, 0.0
    %3695 = vadd.xlane.f32.xlu0 %v3694
    %v3696 = vpop.xlane.xlu0 %3695
    %v3697 = vsel %vm256, %v3684, 0.0
    %3698 = vadd.xlane.f32.xlu0 %v3697
    %v3699 = vpop.xlane.xlu0 %3698
    %v3700 = vsel %vm256, %v3686, 0.0
    %3701 = vadd.xlane.f32.xlu0 %v3700
    %v3702 = vpop.xlane.xlu0 %3701
    %v3703 = vld [vmem:[#allocation2] sm:$0x1]
    %3705 = vset.pattern.permute.xlu0 0
    %3706 = vperm.xlu0 %3705, %v3703
    %v3707 = vpop.permute.xlu0 %3706
    %v3709 = vlaneseq
    %v3710 = vshrl.u32 %v3709, 7
    %v3711 = vsub.s32 0, %v3710
    %v3712 = vrot.slane %v3707, %v3711
    %v3713 = vadd.f32 %v3693, %v3712
    %v3714 = vadd.f32 %v3696, %v3712
    %v3715 = vadd.f32 %v3699, %v3712
    %v3716 = vadd.f32 %v3702, %v3712
    %v3717 = vxor.u32 %v3713, 2147483648
    %v3718 = vxor.u32 %v3714, 2147483648
    %v3719 = vxor.u32 %v3715, 2147483648
    %v3720 = vxor.u32 %v3716, 2147483648
    %v3721 = vmul.f32 %v3717, 1.442695
    %v3722 = vpow.pop %v3721
    %v3723 = vmul.f32 %v3718, 1.442695
    %v3724 = vpow.pop %v3723
    %v3725 = vmul.f32 %v3719, 1.442695
    %v3726 = vpow.pop %v3725
    %v3727 = vmul.f32 %v3720, 1.442695
    %v3728 = vpow.pop %v3727
    %v3729 = vadd.f32 %v3722, 1.0
    %v3730 = vadd.f32 %v3724, 1.0
    %v3731 = vadd.f32 %v3726, 1.0
    %v3732 = vadd.f32 %v3728, 1.0
    %v3733 = vrcp.pop %v3729
    %v3734 = vmul.f32 1.0, %v3733
    %v3735 = vrcp.pop %v3730
    %v3736 = vmul.f32 1.0, %v3735
    %v3737 = vrcp.pop %v3731
    %v3738 = vmul.f32 1.0, %v3737
    %v3739 = vrcp.pop %v3732
    %v3740 = vmul.f32 1.0, %v3739
    %v3745 = vlaneseq
    %v3746 = vand.u32 %v3745, 127
    %v3747 = vlaneseq
    %v3748 = vshrl.u32 %v3747, 7
    %v3749 = vsub.s32 %v3746, %v3748
    %v3750 = vrot.slane %v3734, %v3749
    %v3751 = vadd.s32 %v3746, 4294967288
    %v3752 = vlaneseq
    %v3753 = vshrl.u32 %v3752, 7
    %v3754 = vsub.s32 %v3751, %v3753
    %v3755 = vrot.slane %v3736, %v3754
    %vm3756 = vcmask 130112
    %v3757 = vsel %vm3756, %v3755, %v3750
    %v3758 = vadd.s32 %v3746, 4294967280
    %v3759 = vlaneseq
    %v3760 = vshrl.u32 %v3759, 7
    %v3761 = vsub.s32 %v3758, %v3760
    %v3762 = vrot.slane %v3738, %v3761
    %vm3763 = vcmask 195712
    %v3764 = vsel %vm3763, %v3762, %v3757
    %v3765 = vadd.s32 %v3746, 4294967272
    %v3766 = vlaneseq
    %v3767 = vshrl.u32 %v3766, 7
    %v3768 = vsub.s32 %v3765, %v3767
    %v3769 = vrot.slane %v3740, %v3768
    %vm3770 = vcmask 261312
    %v3771 = vsel %vm3770, %v3769, %v3764
    %vm3773 = vcmask 253952
    %3774 = vst.msk [vmem:[#allocation14] sm:$0x1] %vm3773, %v3771
    // Predicated region
    $region70: #{tpu_custom_call.1} parent=1 // pred_check
      _
    $region71: #{tpu_custom_call.1} parent=1 // pred_check_branch
      %3776 = sbr.rel (0) target = $region73
    $region72: #{tpu_custom_call.1} parent=1 // pred_region
      %s3778 = ssub.s32 16, 16
      %3779 = vsyncadd [#allocation5], %s3778
      %s3781 = sshll.u32 [#allocation14], 4
      %s3782 = int_to_ptr.vmem [resolvable:$true] %s3781
      %3784 = dma.vmem_to_hbm [thread:$0]  %s3782, 16, %s11, [#allocation5]
    $region73: #{tpu_custom_call.1} parent=1 // pred_fallthru
      _
    // Predicated region
    $region74: #{tpu_custom_call.1} parent=1 // pred_check
      _
    $region75: #{tpu_custom_call.1} parent=1 // pred_check_branch
      %3786 = sbr.rel (0) target = $region77
    $region76: #{tpu_custom_call.1} parent=1 // pred_region
      %s3788 = ssub.s32 1024, 1024
      %3789 = vsyncadd [#allocation16], %s3788
      %s3790 = sshll.u32 [#allocation15], 4
      %s3791 = int_to_ptr.vmem [resolvable:$true] %s3790
      %3796 = dma.vmem_to_hbm [thread:$0]  %s3791, 1024, %s12, [#allocation16], 128, 128, 8
    $region77: #{tpu_custom_call.1} parent=1 // pred_fallthru
      _
    // Predicated region
    $region78: #{tpu_custom_call.1} parent=1 // pred_check
      _
    $region79: #{tpu_custom_call.1} parent=1 // pred_check_branch
      %3798 = sbr.rel (0) target = $region81
    $region80: #{tpu_custom_call.1} parent=1 // pred_region
      %s3800 = ssub.s32 1024, 1024
      %3801 = vsyncadd [#allocation16], %s3800
      %s3802 = sshll.u32 [#allocation17], 4
      %s3803 = int_to_ptr.vmem [resolvable:$true] %s3802
      %3808 = dma.vmem_to_hbm [thread:$0]  %s3803, 1024, %s13, [#allocation16], 128, 128, 8
    $region81: #{tpu_custom_call.1} parent=1 // pred_fallthru
      _
    // Predicated region
    $region82: #{tpu_custom_call.1} parent=1 // pred_check
      _
    $region83: #{tpu_custom_call.1} parent=1 // pred_check_branch
      %3810 = sbr.rel (0) target = $region85
    $region84: #{tpu_custom_call.1} parent=1 // pred_region
      %3811 = dma.done [#allocation5], 16
    $region85: #{tpu_custom_call.1} parent=1 // pred_fallthru
      _
    // Predicated region
    $region86: #{tpu_custom_call.1} parent=1 // pred_check
      _
    $region87: #{tpu_custom_call.1} parent=1 // pred_check_branch
      %3813 = sbr.rel (0) target = $region89
    $region88: #{tpu_custom_call.1} parent=1 // pred_region
      %3814 = dma.done [#allocation16], 1024
    $region89: #{tpu_custom_call.1} parent=1 // pred_fallthru
      _
    // Predicated region
    $region90: #{tpu_custom_call.1} parent=1 // pred_check
      _
    $region91: #{tpu_custom_call.1} parent=1 // pred_check_branch
      %3816 = sbr.rel (0) target = $region93
    $region92: #{tpu_custom_call.1} parent=1 // pred_region
      %3817 = dma.done [#allocation16], 1024
    $region93: #{tpu_custom_call.1} parent=1 // pred_fallthru
      _
    %3818 = vsyncpa [#allocation4], 1
    %3819 = vsyncpa [#allocation7], 1
    %3820 = vsyncpa [#allocation10], 1
    %3821 = vsyncpa [#allocation13], 1
    %3822 = vsyncpa [#allocation5], 1
    %3823 = vsyncpa [#allocation16], 1

</llo_original>
